<compile_context>
chip_gen: v7x
topology: tpu7x:2x2x1
jax: 0.10.0
libtpu: 0.0.40
codegen_flags: <defaults>
</compile_context>

<pallas_src>
import functools

import jax
import jax.numpy as jnp
from jax import lax
from jax.experimental import pallas as pl
from jax.experimental.pallas import tpu as pltpu

NUM_TRAJ = 6
NUM_SIM = 4
MOVE_COST = 0.01


# ----------------------------------------------------------------------------
# Pallas kernel: build one-hot weight accumulators on the VPU, then do a
# single weighted full-map reduction.
# ----------------------------------------------------------------------------
def _loss_kernel(cm_ref, pred_ref, occ_ref,
                 rows_p_ref, cols_p_ref, coefs_p_ref,
                 rows_s_ref, cols_s_ref,
                 out_ref, *, mc_const):
    H, W = cm_ref.shape
    row_ids = lax.broadcasted_iota(jnp.int32, (H, W), 0)
    col_ids = lax.broadcasted_iota(jnp.int32, (H, W), 1)

    # --- accumulate-then-reduce (review item #1) -----------------------------
    # Plain-cm points: +3 per exp point, -1 per gen point, -w/sum(w) per
    # similarity candidate.  Each point is a one-hot select+add per vreg (VPU),
    # no per-point cross-lane reduction.
    w_plain = jnp.zeros((H, W), jnp.float32)
    for i in range(rows_p_ref.shape[0]):          # static, small trip count
        sel = (row_ids == rows_p_ref[i]) & (col_ids == cols_p_ref[i])
        w_plain = w_plain + jnp.where(sel, coefs_p_ref[i], jnp.float32(0.0))

    # Scan-masked points (gen + best, coefficient -1 each).
    w_scan = jnp.zeros((H, W), jnp.float32)
    for i in range(rows_s_ref.shape[0]):          # static, small trip count
        sel = (row_ids == rows_s_ref[i]) & (col_ids == cols_s_ref[i])
        w_scan = w_scan + jnp.where(sel, jnp.float32(-1.0), jnp.float32(0.0))

    # --- scan mask applied to the weights, not to cm (review item #2) --------
    # Equivalent to gathering from cm*scan_mask at the scan points, but with no
    # full-map cm_scan temporary: one compare/and/select over the map.
    scan_ok = (occ_ref[...] == 1.0) & (pred_ref[...] == 1.0)
    w_total = w_plain + jnp.where(scan_ok, w_scan, jnp.float32(0.0))

    # Single final reduction (the only cross-lane work in the kernel).
    # mc_const is the compile-time folded move-cost term (it cancels to 0 for
    # equal-length trajectories: 3*mc*T - mc*T - 2*mc*T).
    out_ref[0] = jnp.sum(cm_ref[...] * w_total) + jnp.float32(mc_const)


# ----------------------------------------------------------------------------
# Plain-JAX glue: tiny integer index arithmetic for the similarity candidates
# ----------------------------------------------------------------------------
def _sim_candidates(exp, best, num_sim, H, W):
    diff = best - exp                                            # [T, 2]
    # torch mask only tests the row component (matches the original module).
    cond = (jnp.sign(diff[:, 0]) != 0) & (jnp.abs(diff[:, 0]) > 1)
    sgn = jnp.sign(diff)                                         # [T, 2]
    # torch: cat((best_sel, best_sel + 0*sign, ..., best_sel + (num_sim-1)*sign))
    coeffs = jnp.array([0] + list(range(num_sim)), dtype=jnp.int32)
    cand = best[None, :, :] + coeffs[:, None, None] * sgn[None, :, :]
    cand = cand.reshape(-1, 2)
    # TODO(synk): torch would index out of bounds for border trajectories;
    # we clip instead (weight-0 rows never contribute anyway).
    cand = jnp.stack([jnp.clip(cand[:, 0], 0, H - 1),
                      jnp.clip(cand[:, 1], 0, W - 1)], axis=1).astype(jnp.int32)
    w = jnp.broadcast_to(cond[None, :], (num_sim + 1, exp.shape[0]))
    w = w.reshape(-1).astype(jnp.float32)
    return cand, w


@functools.partial(jax.jit, static_argnames=("move_cost", "num_sim"))
def loss_forward(cm, pred_map, occ, exp_traj, best_traj, gen,
                 move_cost=MOVE_COST, num_sim=NUM_SIM):
    H, W = cm.shape
    exp = exp_traj.astype(jnp.int32)
    best = best_traj.astype(jnp.int32)
    gen = gen.astype(jnp.int32)
    T = exp.shape[0]

    cand_eb, w_eb = _sim_candidates(exp, best, num_sim, H, W)
    cand_eg, w_eg = _sim_candidates(exp, gen, num_sim, H, W)
    # Normalized similarity weights (0/0 -> NaN, same corner case as torch's
    # mean over an empty selection).
    coef_eb = -(w_eb / jnp.sum(w_eb))
    coef_eg = -(w_eg / jnp.sum(w_eg))

    # Flattened 1-D SMEM index/coefficient arrays (review item: avoid 2-D SMEM
    # padding).  Plain-cm points: exp(+3), gen(-1), sim candidates(-w/sum).
    rows_p = jnp.concatenate(
        [exp[:, 0], gen[:, 0], cand_eb[:, 0], cand_eg[:, 0]]).astype(jnp.int32)
    cols_p = jnp.concatenate(
        [exp[:, 1], gen[:, 1], cand_eb[:, 1], cand_eg[:, 1]]).astype(jnp.int32)
    coefs_p = jnp.concatenate(
        [jnp.full((T,), 3.0, jnp.float32),
         jnp.full((T,), -1.0, jnp.float32),
         coef_eb.astype(jnp.float32),
         coef_eg.astype(jnp.float32)])

    # Scan-masked points: gen and best, coefficient -1 each (constant in-kernel).
    rows_s = jnp.concatenate([gen[:, 0], best[:, 0]]).astype(jnp.int32)
    cols_s = jnp.concatenate([gen[:, 1], best[:, 1]]).astype(jnp.int32)

    # Move-cost terms folded at compile time: 3*mc*T (exp) - mc*T (gen)
    # - 2*mc*T (scan) == 0 for equal-length trajectories.
    # TODO(synk): `trajectories.compute_cost` source is not provided; assumed
    # semantics = sum of map values along the trajectory + move_cost per point.
    mc_const = float(move_cost) * float(3 * T - T - 2 * T)

    smem = pl.BlockSpec(memory_space=pltpu.MemorySpace.SMEM)
    vmem = pl.BlockSpec(memory_space=pltpu.MemorySpace.VMEM)
    # TODO(synk): for production-size maps (e.g. 2048x2048) switch the three
    # full-map VMEM inputs to PrefetchScalarGridSpec row gathering so only the
    # touched rows are DMA'd (v7x has 64 MiB VMEM); at test size full-map
    # residency is both correct and fastest.
    out = pl.pallas_call(
        functools.partial(_loss_kernel, mc_const=mc_const),
        out_shape=jax.ShapeDtypeStruct((1,), jnp.float32),
        in_specs=[vmem, vmem, vmem,                # cm, pred_map, occ (full maps)
                  smem, smem, smem,                # plain rows / cols / coefs
                  smem, smem],                     # scan rows / cols
        out_specs=smem,
    )(cm.astype(jnp.float32), pred_map.astype(jnp.float32),
      occ.astype(jnp.float32),
      rows_p, cols_p, coefs_p, rows_s, cols_s)
    return out[0]


# ----------------------------------------------------------------------------
# Pure-JAX reference (same assumed compute_cost semantics) for validation
# ----------------------------------------------------------------------------
def reference_loss(cm, pred_map, occ, exp, best, gen, move_cost, num_sim):
    exp = exp.astype(jnp.int32)
    best = best.astype(jnp.int32)
    gen = gen.astype(jnp.int32)
    H, W = cm.shape

    def cc(m, traj):
        vals = m[traj[:, 0], traj[:, 1]]
        return jnp.sum(vals) + move_cost * traj.shape[0]

    def sim(m, e, b):
        cand, w = _sim_candidates(e, b, num_sim, H, W)
        vals = m[cand[:, 0], cand[:, 1]]
        return jnp.sum(w * vals) / jnp.sum(w)

    scan_mask = ((occ == 1.0) & (pred_map == 1.0)).astype(jnp.float32)
    cms = cm * scan_mask
    exp_loss = cc(cm, exp)
    gen_loss = cc(cm, gen)
    scan_loss = cc(cms, gen) + cc(cms, best)
    sim_loss = sim(cm, exp, best) + sim(cm, exp, gen)
    return 3.0 * exp_loss - scan_loss - gen_loss - sim_loss


if __name__ == "__main__":
    key = jax.random.PRNGKey(0)
    H, W, T = 32, 128, NUM_TRAJ
    k1, k2, k3, k4, k5, k6 = jax.random.split(key, 6)

    cm = jax.random.uniform(k1, (H, W), dtype=jnp.float32)
    pred_map = jax.random.randint(k2, (H, W), 0, 4).astype(jnp.float32)
    occ = jax.random.randint(k3, (H, W), 0, 2).astype(jnp.float32)

    # Trajectories kept away from the borders so similarity candidates
    # (best + j*sign, j < num_sim) stay in bounds, as the torch code assumes.
    def rand_traj(k):
        kr, kc = jax.random.split(k)
        r = jax.random.randint(kr, (T,), NUM_SIM, H - 2 * NUM_SIM)
        c = jax.random.randint(kc, (T,), NUM_SIM, W - 2 * NUM_SIM)
        return jnp.stack([r, c], axis=1).astype(jnp.int32)

    exp_traj = rand_traj(k4)
    best_traj = rand_traj(k5)
    gen_traj = rand_traj(k6)
    # Guarantee at least one similarity-condition row per pair (avoids the
    # empty-mean NaN corner case of the torch code).
    best_traj = best_traj.at[0, 0].set(exp_traj[0, 0] + 3)
    gen_traj = gen_traj.at[0, 0].set(exp_traj[0, 0] + 3)

    out = loss_forward(cm, pred_map, occ, exp_traj, best_traj, gen_traj)
    out = jax.block_until_ready(out)

    ref = reference_loss(cm, pred_map, occ, exp_traj, best_traj, gen_traj,
                         MOVE_COST, NUM_SIM)
    assert jnp.allclose(out, ref, rtol=1e-4, atol=1e-4), (out, ref)
    print("KERNEL_OK")
</pallas_src>

<mosaic_0001>
module attributes {stable_mosaic.version = 11 : i64} {
  func.func @_loss_kernel(%arg0: memref<32x128xf32, #tpu.memory_space<vmem>>, %arg1: memref<32x128xf32, #tpu.memory_space<vmem>>, %arg2: memref<32x128xf32, #tpu.memory_space<vmem>>, %arg3: memref<72xi32, #tpu.memory_space<smem>>, %arg4: memref<72xi32, #tpu.memory_space<smem>>, %arg5: memref<72xf32, #tpu.memory_space<smem>>, %arg6: memref<12xi32, #tpu.memory_space<smem>>, %arg7: memref<12xi32, #tpu.memory_space<smem>>, %arg8: memref<1xf32, #tpu.memory_space<smem>>) attributes {dimension_semantics = [], scalar_prefetch = 0 : i64, scratch_operands = 0 : i64, tpu.core_type = #tpu.core_type<tc>} {
    %0 = tpu.iota {dimensions = array<i32: 0>} : vector<32x128xi32>
    %1 = tpu.iota {dimensions = array<i32: 1>} : vector<32x128xi32>
    %cst = arith.constant 0.000000e+00 : f32
    %2 = vector.broadcast %cst : f32 to vector<32x128xf32>
    %c0 = arith.constant 0 : index
    %3 = memref.load %arg3[%c0] : memref<72xi32, #tpu.memory_space<smem>>
    %4 = vector.broadcast %3 : i32 to vector<32x128xi32>
    %5 = arith.cmpi eq, %0, %4 : vector<32x128xi32>
    %c0_0 = arith.constant 0 : index
    %6 = memref.load %arg4[%c0_0] : memref<72xi32, #tpu.memory_space<smem>>
    %7 = vector.broadcast %6 : i32 to vector<32x128xi32>
    %8 = arith.cmpi eq, %1, %7 : vector<32x128xi32>
    %9 = arith.andi %5, %8 : vector<32x128xi1>
    %c0_1 = arith.constant 0 : index
    %10 = memref.load %arg5[%c0_1] : memref<72xf32, #tpu.memory_space<smem>>
    %cst_2 = arith.constant 0.000000e+00 : f32
    %11 = vector.broadcast %10 : f32 to vector<32x128xf32>
    %12 = vector.broadcast %cst_2 : f32 to vector<32x128xf32>
    %13 = arith.select %9, %11, %12 : vector<32x128xi1>, vector<32x128xf32>
    %14 = arith.addf %2, %13 : vector<32x128xf32>
    %c1 = arith.constant 1 : index
    %15 = memref.load %arg3[%c1] : memref<72xi32, #tpu.memory_space<smem>>
    %16 = vector.broadcast %15 : i32 to vector<32x128xi32>
    %17 = arith.cmpi eq, %0, %16 : vector<32x128xi32>
    %c1_3 = arith.constant 1 : index
    %18 = memref.load %arg4[%c1_3] : memref<72xi32, #tpu.memory_space<smem>>
    %19 = vector.broadcast %18 : i32 to vector<32x128xi32>
    %20 = arith.cmpi eq, %1, %19 : vector<32x128xi32>
    %21 = arith.andi %17, %20 : vector<32x128xi1>
    %c1_4 = arith.constant 1 : index
    %22 = memref.load %arg5[%c1_4] : memref<72xf32, #tpu.memory_space<smem>>
    %cst_5 = arith.constant 0.000000e+00 : f32
    %23 = vector.broadcast %22 : f32 to vector<32x128xf32>
    %24 = vector.broadcast %cst_5 : f32 to vector<32x128xf32>
    %25 = arith.select %21, %23, %24 : vector<32x128xi1>, vector<32x128xf32>
    %26 = arith.addf %14, %25 : vector<32x128xf32>
    %c2 = arith.constant 2 : index
    %27 = memref.load %arg3[%c2] : memref<72xi32, #tpu.memory_space<smem>>
    %28 = vector.broadcast %27 : i32 to vector<32x128xi32>
    %29 = arith.cmpi eq, %0, %28 : vector<32x128xi32>
    %c2_6 = arith.constant 2 : index
    %30 = memref.load %arg4[%c2_6] : memref<72xi32, #tpu.memory_space<smem>>
    %31 = vector.broadcast %30 : i32 to vector<32x128xi32>
    %32 = arith.cmpi eq, %1, %31 : vector<32x128xi32>
    %33 = arith.andi %29, %32 : vector<32x128xi1>
    %c2_7 = arith.constant 2 : index
    %34 = memref.load %arg5[%c2_7] : memref<72xf32, #tpu.memory_space<smem>>
    %cst_8 = arith.constant 0.000000e+00 : f32
    %35 = vector.broadcast %34 : f32 to vector<32x128xf32>
    %36 = vector.broadcast %cst_8 : f32 to vector<32x128xf32>
    %37 = arith.select %33, %35, %36 : vector<32x128xi1>, vector<32x128xf32>
    %38 = arith.addf %26, %37 : vector<32x128xf32>
    %c3 = arith.constant 3 : index
    %39 = memref.load %arg3[%c3] : memref<72xi32, #tpu.memory_space<smem>>
    %40 = vector.broadcast %39 : i32 to vector<32x128xi32>
    %41 = arith.cmpi eq, %0, %40 : vector<32x128xi32>
    %c3_9 = arith.constant 3 : index
    %42 = memref.load %arg4[%c3_9] : memref<72xi32, #tpu.memory_space<smem>>
    %43 = vector.broadcast %42 : i32 to vector<32x128xi32>
    %44 = arith.cmpi eq, %1, %43 : vector<32x128xi32>
    %45 = arith.andi %41, %44 : vector<32x128xi1>
    %c3_10 = arith.constant 3 : index
    %46 = memref.load %arg5[%c3_10] : memref<72xf32, #tpu.memory_space<smem>>
    %cst_11 = arith.constant 0.000000e+00 : f32
    %47 = vector.broadcast %46 : f32 to vector<32x128xf32>
    %48 = vector.broadcast %cst_11 : f32 to vector<32x128xf32>
    %49 = arith.select %45, %47, %48 : vector<32x128xi1>, vector<32x128xf32>
    %50 = arith.addf %38, %49 : vector<32x128xf32>
    %c4 = arith.constant 4 : index
    %51 = memref.load %arg3[%c4] : memref<72xi32, #tpu.memory_space<smem>>
    %52 = vector.broadcast %51 : i32 to vector<32x128xi32>
    %53 = arith.cmpi eq, %0, %52 : vector<32x128xi32>
    %c4_12 = arith.constant 4 : index
    %54 = memref.load %arg4[%c4_12] : memref<72xi32, #tpu.memory_space<smem>>
    %55 = vector.broadcast %54 : i32 to vector<32x128xi32>
    %56 = arith.cmpi eq, %1, %55 : vector<32x128xi32>
    %57 = arith.andi %53, %56 : vector<32x128xi1>
    %c4_13 = arith.constant 4 : index
    %58 = memref.load %arg5[%c4_13] : memref<72xf32, #tpu.memory_space<smem>>
    %cst_14 = arith.constant 0.000000e+00 : f32
    %59 = vector.broadcast %58 : f32 to vector<32x128xf32>
    %60 = vector.broadcast %cst_14 : f32 to vector<32x128xf32>
    %61 = arith.select %57, %59, %60 : vector<32x128xi1>, vector<32x128xf32>
    %62 = arith.addf %50, %61 : vector<32x128xf32>
    %c5 = arith.constant 5 : index
    %63 = memref.load %arg3[%c5] : memref<72xi32, #tpu.memory_space<smem>>
    %64 = vector.broadcast %63 : i32 to vector<32x128xi32>
    %65 = arith.cmpi eq, %0, %64 : vector<32x128xi32>
    %c5_15 = arith.constant 5 : index
    %66 = memref.load %arg4[%c5_15] : memref<72xi32, #tpu.memory_space<smem>>
    %67 = vector.broadcast %66 : i32 to vector<32x128xi32>
    %68 = arith.cmpi eq, %1, %67 : vector<32x128xi32>
    %69 = arith.andi %65, %68 : vector<32x128xi1>
    %c5_16 = arith.constant 5 : index
    %70 = memref.load %arg5[%c5_16] : memref<72xf32, #tpu.memory_space<smem>>
    %cst_17 = arith.constant 0.000000e+00 : f32
    %71 = vector.broadcast %70 : f32 to vector<32x128xf32>
    %72 = vector.broadcast %cst_17 : f32 to vector<32x128xf32>
    %73 = arith.select %69, %71, %72 : vector<32x128xi1>, vector<32x128xf32>
    %74 = arith.addf %62, %73 : vector<32x128xf32>
    %c6 = arith.constant 6 : index
    %75 = memref.load %arg3[%c6] : memref<72xi32, #tpu.memory_space<smem>>
    %76 = vector.broadcast %75 : i32 to vector<32x128xi32>
    %77 = arith.cmpi eq, %0, %76 : vector<32x128xi32>
    %c6_18 = arith.constant 6 : index
    %78 = memref.load %arg4[%c6_18] : memref<72xi32, #tpu.memory_space<smem>>
    %79 = vector.broadcast %78 : i32 to vector<32x128xi32>
    %80 = arith.cmpi eq, %1, %79 : vector<32x128xi32>
    %81 = arith.andi %77, %80 : vector<32x128xi1>
    %c6_19 = arith.constant 6 : index
    %82 = memref.load %arg5[%c6_19] : memref<72xf32, #tpu.memory_space<smem>>
    %cst_20 = arith.constant 0.000000e+00 : f32
    %83 = vector.broadcast %82 : f32 to vector<32x128xf32>
    %84 = vector.broadcast %cst_20 : f32 to vector<32x128xf32>
    %85 = arith.select %81, %83, %84 : vector<32x128xi1>, vector<32x128xf32>
    %86 = arith.addf %74, %85 : vector<32x128xf32>
    %c7 = arith.constant 7 : index
    %87 = memref.load %arg3[%c7] : memref<72xi32, #tpu.memory_space<smem>>
    %88 = vector.broadcast %87 : i32 to vector<32x128xi32>
    %89 = arith.cmpi eq, %0, %88 : vector<32x128xi32>
    %c7_21 = arith.constant 7 : index
    %90 = memref.load %arg4[%c7_21] : memref<72xi32, #tpu.memory_space<smem>>
    %91 = vector.broadcast %90 : i32 to vector<32x128xi32>
    %92 = arith.cmpi eq, %1, %91 : vector<32x128xi32>
    %93 = arith.andi %89, %92 : vector<32x128xi1>
    %c7_22 = arith.constant 7 : index
    %94 = memref.load %arg5[%c7_22] : memref<72xf32, #tpu.memory_space<smem>>
    %cst_23 = arith.constant 0.000000e+00 : f32
    %95 = vector.broadcast %94 : f32 to vector<32x128xf32>
    %96 = vector.broadcast %cst_23 : f32 to vector<32x128xf32>
    %97 = arith.select %93, %95, %96 : vector<32x128xi1>, vector<32x128xf32>
    %98 = arith.addf %86, %97 : vector<32x128xf32>
    %c8 = arith.constant 8 : index
    %99 = memref.load %arg3[%c8] : memref<72xi32, #tpu.memory_space<smem>>
    %100 = vector.broadcast %99 : i32 to vector<32x128xi32>
    %101 = arith.cmpi eq, %0, %100 : vector<32x128xi32>
    %c8_24 = arith.constant 8 : index
    %102 = memref.load %arg4[%c8_24] : memref<72xi32, #tpu.memory_space<smem>>
    %103 = vector.broadcast %102 : i32 to vector<32x128xi32>
    %104 = arith.cmpi eq, %1, %103 : vector<32x128xi32>
    %105 = arith.andi %101, %104 : vector<32x128xi1>
    %c8_25 = arith.constant 8 : index
    %106 = memref.load %arg5[%c8_25] : memref<72xf32, #tpu.memory_space<smem>>
    %cst_26 = arith.constant 0.000000e+00 : f32
    %107 = vector.broadcast %106 : f32 to vector<32x128xf32>
    %108 = vector.broadcast %cst_26 : f32 to vector<32x128xf32>
    %109 = arith.select %105, %107, %108 : vector<32x128xi1>, vector<32x128xf32>
    %110 = arith.addf %98, %109 : vector<32x128xf32>
    %c9 = arith.constant 9 : index
    %111 = memref.load %arg3[%c9] : memref<72xi32, #tpu.memory_space<smem>>
    %112 = vector.broadcast %111 : i32 to vector<32x128xi32>
    %113 = arith.cmpi eq, %0, %112 : vector<32x128xi32>
    %c9_27 = arith.constant 9 : index
    %114 = memref.load %arg4[%c9_27] : memref<72xi32, #tpu.memory_space<smem>>
    %115 = vector.broadcast %114 : i32 to vector<32x128xi32>
    %116 = arith.cmpi eq, %1, %115 : vector<32x128xi32>
    %117 = arith.andi %113, %116 : vector<32x128xi1>
    %c9_28 = arith.constant 9 : index
    %118 = memref.load %arg5[%c9_28] : memref<72xf32, #tpu.memory_space<smem>>
    %cst_29 = arith.constant 0.000000e+00 : f32
    %119 = vector.broadcast %118 : f32 to vector<32x128xf32>
    %120 = vector.broadcast %cst_29 : f32 to vector<32x128xf32>
    %121 = arith.select %117, %119, %120 : vector<32x128xi1>, vector<32x128xf32>
    %122 = arith.addf %110, %121 : vector<32x128xf32>
    %c10 = arith.constant 10 : index
    %123 = memref.load %arg3[%c10] : memref<72xi32, #tpu.memory_space<smem>>
    %124 = vector.broadcast %123 : i32 to vector<32x128xi32>
    %125 = arith.cmpi eq, %0, %124 : vector<32x128xi32>
    %c10_30 = arith.constant 10 : index
    %126 = memref.load %arg4[%c10_30] : memref<72xi32, #tpu.memory_space<smem>>
    %127 = vector.broadcast %126 : i32 to vector<32x128xi32>
    %128 = arith.cmpi eq, %1, %127 : vector<32x128xi32>
    %129 = arith.andi %125, %128 : vector<32x128xi1>
    %c10_31 = arith.constant 10 : index
    %130 = memref.load %arg5[%c10_31] : memref<72xf32, #tpu.memory_space<smem>>
    %cst_32 = arith.constant 0.000000e+00 : f32
    %131 = vector.broadcast %130 : f32 to vector<32x128xf32>
    %132 = vector.broadcast %cst_32 : f32 to vector<32x128xf32>
    %133 = arith.select %129, %131, %132 : vector<32x128xi1>, vector<32x128xf32>
    %134 = arith.addf %122, %133 : vector<32x128xf32>
    %c11 = arith.constant 11 : index
    %135 = memref.load %arg3[%c11] : memref<72xi32, #tpu.memory_space<smem>>
    %136 = vector.broadcast %135 : i32 to vector<32x128xi32>
    %137 = arith.cmpi eq, %0, %136 : vector<32x128xi32>
    %c11_33 = arith.constant 11 : index
    %138 = memref.load %arg4[%c11_33] : memref<72xi32, #tpu.memory_space<smem>>
    %139 = vector.broadcast %138 : i32 to vector<32x128xi32>
    %140 = arith.cmpi eq, %1, %139 : vector<32x128xi32>
    %141 = arith.andi %137, %140 : vector<32x128xi1>
    %c11_34 = arith.constant 11 : index
    %142 = memref.load %arg5[%c11_34] : memref<72xf32, #tpu.memory_space<smem>>
    %cst_35 = arith.constant 0.000000e+00 : f32
    %143 = vector.broadcast %142 : f32 to vector<32x128xf32>
    %144 = vector.broadcast %cst_35 : f32 to vector<32x128xf32>
    %145 = arith.select %141, %143, %144 : vector<32x128xi1>, vector<32x128xf32>
    %146 = arith.addf %134, %145 : vector<32x128xf32>
    %c12 = arith.constant 12 : index
    %147 = memref.load %arg3[%c12] : memref<72xi32, #tpu.memory_space<smem>>
    %148 = vector.broadcast %147 : i32 to vector<32x128xi32>
    %149 = arith.cmpi eq, %0, %148 : vector<32x128xi32>
    %c12_36 = arith.constant 12 : index
    %150 = memref.load %arg4[%c12_36] : memref<72xi32, #tpu.memory_space<smem>>
    %151 = vector.broadcast %150 : i32 to vector<32x128xi32>
    %152 = arith.cmpi eq, %1, %151 : vector<32x128xi32>
    %153 = arith.andi %149, %152 : vector<32x128xi1>
    %c12_37 = arith.constant 12 : index
    %154 = memref.load %arg5[%c12_37] : memref<72xf32, #tpu.memory_space<smem>>
    %cst_38 = arith.constant 0.000000e+00 : f32
    %155 = vector.broadcast %154 : f32 to vector<32x128xf32>
    %156 = vector.broadcast %cst_38 : f32 to vector<32x128xf32>
    %157 = arith.select %153, %155, %156 : vector<32x128xi1>, vector<32x128xf32>
    %158 = arith.addf %146, %157 : vector<32x128xf32>
    %c13 = arith.constant 13 : index
    %159 = memref.load %arg3[%c13] : memref<72xi32, #tpu.memory_space<smem>>
    %160 = vector.broadcast %159 : i32 to vector<32x128xi32>
    %161 = arith.cmpi eq, %0, %160 : vector<32x128xi32>
    %c13_39 = arith.constant 13 : index
    %162 = memref.load %arg4[%c13_39] : memref<72xi32, #tpu.memory_space<smem>>
    %163 = vector.broadcast %162 : i32 to vector<32x128xi32>
    %164 = arith.cmpi eq, %1, %163 : vector<32x128xi32>
    %165 = arith.andi %161, %164 : vector<32x128xi1>
    %c13_40 = arith.constant 13 : index
    %166 = memref.load %arg5[%c13_40] : memref<72xf32, #tpu.memory_space<smem>>
    %cst_41 = arith.constant 0.000000e+00 : f32
    %167 = vector.broadcast %166 : f32 to vector<32x128xf32>
    %168 = vector.broadcast %cst_41 : f32 to vector<32x128xf32>
    %169 = arith.select %165, %167, %168 : vector<32x128xi1>, vector<32x128xf32>
    %170 = arith.addf %158, %169 : vector<32x128xf32>
    %c14 = arith.constant 14 : index
    %171 = memref.load %arg3[%c14] : memref<72xi32, #tpu.memory_space<smem>>
    %172 = vector.broadcast %171 : i32 to vector<32x128xi32>
    %173 = arith.cmpi eq, %0, %172 : vector<32x128xi32>
    %c14_42 = arith.constant 14 : index
    %174 = memref.load %arg4[%c14_42] : memref<72xi32, #tpu.memory_space<smem>>
    %175 = vector.broadcast %174 : i32 to vector<32x128xi32>
    %176 = arith.cmpi eq, %1, %175 : vector<32x128xi32>
    %177 = arith.andi %173, %176 : vector<32x128xi1>
    %c14_43 = arith.constant 14 : index
    %178 = memref.load %arg5[%c14_43] : memref<72xf32, #tpu.memory_space<smem>>
    %cst_44 = arith.constant 0.000000e+00 : f32
    %179 = vector.broadcast %178 : f32 to vector<32x128xf32>
    %180 = vector.broadcast %cst_44 : f32 to vector<32x128xf32>
    %181 = arith.select %177, %179, %180 : vector<32x128xi1>, vector<32x128xf32>
    %182 = arith.addf %170, %181 : vector<32x128xf32>
    %c15 = arith.constant 15 : index
    %183 = memref.load %arg3[%c15] : memref<72xi32, #tpu.memory_space<smem>>
    %184 = vector.broadcast %183 : i32 to vector<32x128xi32>
    %185 = arith.cmpi eq, %0, %184 : vector<32x128xi32>
    %c15_45 = arith.constant 15 : index
    %186 = memref.load %arg4[%c15_45] : memref<72xi32, #tpu.memory_space<smem>>
    %187 = vector.broadcast %186 : i32 to vector<32x128xi32>
    %188 = arith.cmpi eq, %1, %187 : vector<32x128xi32>
    %189 = arith.andi %185, %188 : vector<32x128xi1>
    %c15_46 = arith.constant 15 : index
    %190 = memref.load %arg5[%c15_46] : memref<72xf32, #tpu.memory_space<smem>>
    %cst_47 = arith.constant 0.000000e+00 : f32
    %191 = vector.broadcast %190 : f32 to vector<32x128xf32>
    %192 = vector.broadcast %cst_47 : f32 to vector<32x128xf32>
    %193 = arith.select %189, %191, %192 : vector<32x128xi1>, vector<32x128xf32>
    %194 = arith.addf %182, %193 : vector<32x128xf32>
    %c16 = arith.constant 16 : index
    %195 = memref.load %arg3[%c16] : memref<72xi32, #tpu.memory_space<smem>>
    %196 = vector.broadcast %195 : i32 to vector<32x128xi32>
    %197 = arith.cmpi eq, %0, %196 : vector<32x128xi32>
    %c16_48 = arith.constant 16 : index
    %198 = memref.load %arg4[%c16_48] : memref<72xi32, #tpu.memory_space<smem>>
    %199 = vector.broadcast %198 : i32 to vector<32x128xi32>
    %200 = arith.cmpi eq, %1, %199 : vector<32x128xi32>
    %201 = arith.andi %197, %200 : vector<32x128xi1>
    %c16_49 = arith.constant 16 : index
    %202 = memref.load %arg5[%c16_49] : memref<72xf32, #tpu.memory_space<smem>>
    %cst_50 = arith.constant 0.000000e+00 : f32
    %203 = vector.broadcast %202 : f32 to vector<32x128xf32>
    %204 = vector.broadcast %cst_50 : f32 to vector<32x128xf32>
    %205 = arith.select %201, %203, %204 : vector<32x128xi1>, vector<32x128xf32>
    %206 = arith.addf %194, %205 : vector<32x128xf32>
    %c17 = arith.constant 17 : index
    %207 = memref.load %arg3[%c17] : memref<72xi32, #tpu.memory_space<smem>>
    %208 = vector.broadcast %207 : i32 to vector<32x128xi32>
    %209 = arith.cmpi eq, %0, %208 : vector<32x128xi32>
    %c17_51 = arith.constant 17 : index
    %210 = memref.load %arg4[%c17_51] : memref<72xi32, #tpu.memory_space<smem>>
    %211 = vector.broadcast %210 : i32 to vector<32x128xi32>
    %212 = arith.cmpi eq, %1, %211 : vector<32x128xi32>
    %213 = arith.andi %209, %212 : vector<32x128xi1>
    %c17_52 = arith.constant 17 : index
    %214 = memref.load %arg5[%c17_52] : memref<72xf32, #tpu.memory_space<smem>>
    %cst_53 = arith.constant 0.000000e+00 : f32
    %215 = vector.broadcast %214 : f32 to vector<32x128xf32>
    %216 = vector.broadcast %cst_53 : f32 to vector<32x128xf32>
    %217 = arith.select %213, %215, %216 : vector<32x128xi1>, vector<32x128xf32>
    %218 = arith.addf %206, %217 : vector<32x128xf32>
    %c18 = arith.constant 18 : index
    %219 = memref.load %arg3[%c18] : memref<72xi32, #tpu.memory_space<smem>>
    %220 = vector.broadcast %219 : i32 to vector<32x128xi32>
    %221 = arith.cmpi eq, %0, %220 : vector<32x128xi32>
    %c18_54 = arith.constant 18 : index
    %222 = memref.load %arg4[%c18_54] : memref<72xi32, #tpu.memory_space<smem>>
    %223 = vector.broadcast %222 : i32 to vector<32x128xi32>
    %224 = arith.cmpi eq, %1, %223 : vector<32x128xi32>
    %225 = arith.andi %221, %224 : vector<32x128xi1>
    %c18_55 = arith.constant 18 : index
    %226 = memref.load %arg5[%c18_55] : memref<72xf32, #tpu.memory_space<smem>>
    %cst_56 = arith.constant 0.000000e+00 : f32
    %227 = vector.broadcast %226 : f32 to vector<32x128xf32>
    %228 = vector.broadcast %cst_56 : f32 to vector<32x128xf32>
    %229 = arith.select %225, %227, %228 : vector<32x128xi1>, vector<32x128xf32>
    %230 = arith.addf %218, %229 : vector<32x128xf32>
    %c19 = arith.constant 19 : index
    %231 = memref.load %arg3[%c19] : memref<72xi32, #tpu.memory_space<smem>>
    %232 = vector.broadcast %231 : i32 to vector<32x128xi32>
    %233 = arith.cmpi eq, %0, %232 : vector<32x128xi32>
    %c19_57 = arith.constant 19 : index
    %234 = memref.load %arg4[%c19_57] : memref<72xi32, #tpu.memory_space<smem>>
    %235 = vector.broadcast %234 : i32 to vector<32x128xi32>
    %236 = arith.cmpi eq, %1, %235 : vector<32x128xi32>
    %237 = arith.andi %233, %236 : vector<32x128xi1>
    %c19_58 = arith.constant 19 : index
    %238 = memref.load %arg5[%c19_58] : memref<72xf32, #tpu.memory_space<smem>>
    %cst_59 = arith.constant 0.000000e+00 : f32
    %239 = vector.broadcast %238 : f32 to vector<32x128xf32>
    %240 = vector.broadcast %cst_59 : f32 to vector<32x128xf32>
    %241 = arith.select %237, %239, %240 : vector<32x128xi1>, vector<32x128xf32>
    %242 = arith.addf %230, %241 : vector<32x128xf32>
    %c20 = arith.constant 20 : index
    %243 = memref.load %arg3[%c20] : memref<72xi32, #tpu.memory_space<smem>>
    %244 = vector.broadcast %243 : i32 to vector<32x128xi32>
    %245 = arith.cmpi eq, %0, %244 : vector<32x128xi32>
    %c20_60 = arith.constant 20 : index
    %246 = memref.load %arg4[%c20_60] : memref<72xi32, #tpu.memory_space<smem>>
    %247 = vector.broadcast %246 : i32 to vector<32x128xi32>
    %248 = arith.cmpi eq, %1, %247 : vector<32x128xi32>
    %249 = arith.andi %245, %248 : vector<32x128xi1>
    %c20_61 = arith.constant 20 : index
    %250 = memref.load %arg5[%c20_61] : memref<72xf32, #tpu.memory_space<smem>>
    %cst_62 = arith.constant 0.000000e+00 : f32
    %251 = vector.broadcast %250 : f32 to vector<32x128xf32>
    %252 = vector.broadcast %cst_62 : f32 to vector<32x128xf32>
    %253 = arith.select %249, %251, %252 : vector<32x128xi1>, vector<32x128xf32>
    %254 = arith.addf %242, %253 : vector<32x128xf32>
    %c21 = arith.constant 21 : index
    %255 = memref.load %arg3[%c21] : memref<72xi32, #tpu.memory_space<smem>>
    %256 = vector.broadcast %255 : i32 to vector<32x128xi32>
    %257 = arith.cmpi eq, %0, %256 : vector<32x128xi32>
    %c21_63 = arith.constant 21 : index
    %258 = memref.load %arg4[%c21_63] : memref<72xi32, #tpu.memory_space<smem>>
    %259 = vector.broadcast %258 : i32 to vector<32x128xi32>
    %260 = arith.cmpi eq, %1, %259 : vector<32x128xi32>
    %261 = arith.andi %257, %260 : vector<32x128xi1>
    %c21_64 = arith.constant 21 : index
    %262 = memref.load %arg5[%c21_64] : memref<72xf32, #tpu.memory_space<smem>>
    %cst_65 = arith.constant 0.000000e+00 : f32
    %263 = vector.broadcast %262 : f32 to vector<32x128xf32>
    %264 = vector.broadcast %cst_65 : f32 to vector<32x128xf32>
    %265 = arith.select %261, %263, %264 : vector<32x128xi1>, vector<32x128xf32>
    %266 = arith.addf %254, %265 : vector<32x128xf32>
    %c22 = arith.constant 22 : index
    %267 = memref.load %arg3[%c22] : memref<72xi32, #tpu.memory_space<smem>>
    %268 = vector.broadcast %267 : i32 to vector<32x128xi32>
    %269 = arith.cmpi eq, %0, %268 : vector<32x128xi32>
    %c22_66 = arith.constant 22 : index
    %270 = memref.load %arg4[%c22_66] : memref<72xi32, #tpu.memory_space<smem>>
    %271 = vector.broadcast %270 : i32 to vector<32x128xi32>
    %272 = arith.cmpi eq, %1, %271 : vector<32x128xi32>
    %273 = arith.andi %269, %272 : vector<32x128xi1>
    %c22_67 = arith.constant 22 : index
    %274 = memref.load %arg5[%c22_67] : memref<72xf32, #tpu.memory_space<smem>>
    %cst_68 = arith.constant 0.000000e+00 : f32
    %275 = vector.broadcast %274 : f32 to vector<32x128xf32>
    %276 = vector.broadcast %cst_68 : f32 to vector<32x128xf32>
    %277 = arith.select %273, %275, %276 : vector<32x128xi1>, vector<32x128xf32>
    %278 = arith.addf %266, %277 : vector<32x128xf32>
    %c23 = arith.constant 23 : index
    %279 = memref.load %arg3[%c23] : memref<72xi32, #tpu.memory_space<smem>>
    %280 = vector.broadcast %279 : i32 to vector<32x128xi32>
    %281 = arith.cmpi eq, %0, %280 : vector<32x128xi32>
    %c23_69 = arith.constant 23 : index
    %282 = memref.load %arg4[%c23_69] : memref<72xi32, #tpu.memory_space<smem>>
    %283 = vector.broadcast %282 : i32 to vector<32x128xi32>
    %284 = arith.cmpi eq, %1, %283 : vector<32x128xi32>
    %285 = arith.andi %281, %284 : vector<32x128xi1>
    %c23_70 = arith.constant 23 : index
    %286 = memref.load %arg5[%c23_70] : memref<72xf32, #tpu.memory_space<smem>>
    %cst_71 = arith.constant 0.000000e+00 : f32
    %287 = vector.broadcast %286 : f32 to vector<32x128xf32>
    %288 = vector.broadcast %cst_71 : f32 to vector<32x128xf32>
    %289 = arith.select %285, %287, %288 : vector<32x128xi1>, vector<32x128xf32>
    %290 = arith.addf %278, %289 : vector<32x128xf32>
    %c24 = arith.constant 24 : index
    %291 = memref.load %arg3[%c24] : memref<72xi32, #tpu.memory_space<smem>>
    %292 = vector.broadcast %291 : i32 to vector<32x128xi32>
    %293 = arith.cmpi eq, %0, %292 : vector<32x128xi32>
    %c24_72 = arith.constant 24 : index
    %294 = memref.load %arg4[%c24_72] : memref<72xi32, #tpu.memory_space<smem>>
    %295 = vector.broadcast %294 : i32 to vector<32x128xi32>
    %296 = arith.cmpi eq, %1, %295 : vector<32x128xi32>
    %297 = arith.andi %293, %296 : vector<32x128xi1>
    %c24_73 = arith.constant 24 : index
    %298 = memref.load %arg5[%c24_73] : memref<72xf32, #tpu.memory_space<smem>>
    %cst_74 = arith.constant 0.000000e+00 : f32
    %299 = vector.broadcast %298 : f32 to vector<32x128xf32>
    %300 = vector.broadcast %cst_74 : f32 to vector<32x128xf32>
    %301 = arith.select %297, %299, %300 : vector<32x128xi1>, vector<32x128xf32>
    %302 = arith.addf %290, %301 : vector<32x128xf32>
    %c25 = arith.constant 25 : index
    %303 = memref.load %arg3[%c25] : memref<72xi32, #tpu.memory_space<smem>>
    %304 = vector.broadcast %303 : i32 to vector<32x128xi32>
    %305 = arith.cmpi eq, %0, %304 : vector<32x128xi32>
    %c25_75 = arith.constant 25 : index
    %306 = memref.load %arg4[%c25_75] : memref<72xi32, #tpu.memory_space<smem>>
    %307 = vector.broadcast %306 : i32 to vector<32x128xi32>
    %308 = arith.cmpi eq, %1, %307 : vector<32x128xi32>
    %309 = arith.andi %305, %308 : vector<32x128xi1>
    %c25_76 = arith.constant 25 : index
    %310 = memref.load %arg5[%c25_76] : memref<72xf32, #tpu.memory_space<smem>>
    %cst_77 = arith.constant 0.000000e+00 : f32
    %311 = vector.broadcast %310 : f32 to vector<32x128xf32>
    %312 = vector.broadcast %cst_77 : f32 to vector<32x128xf32>
    %313 = arith.select %309, %311, %312 : vector<32x128xi1>, vector<32x128xf32>
    %314 = arith.addf %302, %313 : vector<32x128xf32>
    %c26 = arith.constant 26 : index
    %315 = memref.load %arg3[%c26] : memref<72xi32, #tpu.memory_space<smem>>
    %316 = vector.broadcast %315 : i32 to vector<32x128xi32>
    %317 = arith.cmpi eq, %0, %316 : vector<32x128xi32>
    %c26_78 = arith.constant 26 : index
    %318 = memref.load %arg4[%c26_78] : memref<72xi32, #tpu.memory_space<smem>>
    %319 = vector.broadcast %318 : i32 to vector<32x128xi32>
    %320 = arith.cmpi eq, %1, %319 : vector<32x128xi32>
    %321 = arith.andi %317, %320 : vector<32x128xi1>
    %c26_79 = arith.constant 26 : index
    %322 = memref.load %arg5[%c26_79] : memref<72xf32, #tpu.memory_space<smem>>
    %cst_80 = arith.constant 0.000000e+00 : f32
    %323 = vector.broadcast %322 : f32 to vector<32x128xf32>
    %324 = vector.broadcast %cst_80 : f32 to vector<32x128xf32>
    %325 = arith.select %321, %323, %324 : vector<32x128xi1>, vector<32x128xf32>
    %326 = arith.addf %314, %325 : vector<32x128xf32>
    %c27 = arith.constant 27 : index
    %327 = memref.load %arg3[%c27] : memref<72xi32, #tpu.memory_space<smem>>
    %328 = vector.broadcast %327 : i32 to vector<32x128xi32>
    %329 = arith.cmpi eq, %0, %328 : vector<32x128xi32>
    %c27_81 = arith.constant 27 : index
    %330 = memref.load %arg4[%c27_81] : memref<72xi32, #tpu.memory_space<smem>>
    %331 = vector.broadcast %330 : i32 to vector<32x128xi32>
    %332 = arith.cmpi eq, %1, %331 : vector<32x128xi32>
    %333 = arith.andi %329, %332 : vector<32x128xi1>
    %c27_82 = arith.constant 27 : index
    %334 = memref.load %arg5[%c27_82] : memref<72xf32, #tpu.memory_space<smem>>
    %cst_83 = arith.constant 0.000000e+00 : f32
    %335 = vector.broadcast %334 : f32 to vector<32x128xf32>
    %336 = vector.broadcast %cst_83 : f32 to vector<32x128xf32>
    %337 = arith.select %333, %335, %336 : vector<32x128xi1>, vector<32x128xf32>
    %338 = arith.addf %326, %337 : vector<32x128xf32>
    %c28 = arith.constant 28 : index
    %339 = memref.load %arg3[%c28] : memref<72xi32, #tpu.memory_space<smem>>
    %340 = vector.broadcast %339 : i32 to vector<32x128xi32>
    %341 = arith.cmpi eq, %0, %340 : vector<32x128xi32>
    %c28_84 = arith.constant 28 : index
    %342 = memref.load %arg4[%c28_84] : memref<72xi32, #tpu.memory_space<smem>>
    %343 = vector.broadcast %342 : i32 to vector<32x128xi32>
    %344 = arith.cmpi eq, %1, %343 : vector<32x128xi32>
    %345 = arith.andi %341, %344 : vector<32x128xi1>
    %c28_85 = arith.constant 28 : index
    %346 = memref.load %arg5[%c28_85] : memref<72xf32, #tpu.memory_space<smem>>
    %cst_86 = arith.constant 0.000000e+00 : f32
    %347 = vector.broadcast %346 : f32 to vector<32x128xf32>
    %348 = vector.broadcast %cst_86 : f32 to vector<32x128xf32>
    %349 = arith.select %345, %347, %348 : vector<32x128xi1>, vector<32x128xf32>
    %350 = arith.addf %338, %349 : vector<32x128xf32>
    %c29 = arith.constant 29 : index
    %351 = memref.load %arg3[%c29] : memref<72xi32, #tpu.memory_space<smem>>
    %352 = vector.broadcast %351 : i32 to vector<32x128xi32>
    %353 = arith.cmpi eq, %0, %352 : vector<32x128xi32>
    %c29_87 = arith.constant 29 : index
    %354 = memref.load %arg4[%c29_87] : memref<72xi32, #tpu.memory_space<smem>>
    %355 = vector.broadcast %354 : i32 to vector<32x128xi32>
    %356 = arith.cmpi eq, %1, %355 : vector<32x128xi32>
    %357 = arith.andi %353, %356 : vector<32x128xi1>
    %c29_88 = arith.constant 29 : index
    %358 = memref.load %arg5[%c29_88] : memref<72xf32, #tpu.memory_space<smem>>
    %cst_89 = arith.constant 0.000000e+00 : f32
    %359 = vector.broadcast %358 : f32 to vector<32x128xf32>
    %360 = vector.broadcast %cst_89 : f32 to vector<32x128xf32>
    %361 = arith.select %357, %359, %360 : vector<32x128xi1>, vector<32x128xf32>
    %362 = arith.addf %350, %361 : vector<32x128xf32>
    %c30 = arith.constant 30 : index
    %363 = memref.load %arg3[%c30] : memref<72xi32, #tpu.memory_space<smem>>
    %364 = vector.broadcast %363 : i32 to vector<32x128xi32>
    %365 = arith.cmpi eq, %0, %364 : vector<32x128xi32>
    %c30_90 = arith.constant 30 : index
    %366 = memref.load %arg4[%c30_90] : memref<72xi32, #tpu.memory_space<smem>>
    %367 = vector.broadcast %366 : i32 to vector<32x128xi32>
    %368 = arith.cmpi eq, %1, %367 : vector<32x128xi32>
    %369 = arith.andi %365, %368 : vector<32x128xi1>
    %c30_91 = arith.constant 30 : index
    %370 = memref.load %arg5[%c30_91] : memref<72xf32, #tpu.memory_space<smem>>
    %cst_92 = arith.constant 0.000000e+00 : f32
    %371 = vector.broadcast %370 : f32 to vector<32x128xf32>
    %372 = vector.broadcast %cst_92 : f32 to vector<32x128xf32>
    %373 = arith.select %369, %371, %372 : vector<32x128xi1>, vector<32x128xf32>
    %374 = arith.addf %362, %373 : vector<32x128xf32>
    %c31 = arith.constant 31 : index
    %375 = memref.load %arg3[%c31] : memref<72xi32, #tpu.memory_space<smem>>
    %376 = vector.broadcast %375 : i32 to vector<32x128xi32>
    %377 = arith.cmpi eq, %0, %376 : vector<32x128xi32>
    %c31_93 = arith.constant 31 : index
    %378 = memref.load %arg4[%c31_93] : memref<72xi32, #tpu.memory_space<smem>>
    %379 = vector.broadcast %378 : i32 to vector<32x128xi32>
    %380 = arith.cmpi eq, %1, %379 : vector<32x128xi32>
    %381 = arith.andi %377, %380 : vector<32x128xi1>
    %c31_94 = arith.constant 31 : index
    %382 = memref.load %arg5[%c31_94] : memref<72xf32, #tpu.memory_space<smem>>
    %cst_95 = arith.constant 0.000000e+00 : f32
    %383 = vector.broadcast %382 : f32 to vector<32x128xf32>
    %384 = vector.broadcast %cst_95 : f32 to vector<32x128xf32>
    %385 = arith.select %381, %383, %384 : vector<32x128xi1>, vector<32x128xf32>
    %386 = arith.addf %374, %385 : vector<32x128xf32>
    %c32 = arith.constant 32 : index
    %387 = memref.load %arg3[%c32] : memref<72xi32, #tpu.memory_space<smem>>
    %388 = vector.broadcast %387 : i32 to vector<32x128xi32>
    %389 = arith.cmpi eq, %0, %388 : vector<32x128xi32>
    %c32_96 = arith.constant 32 : index
    %390 = memref.load %arg4[%c32_96] : memref<72xi32, #tpu.memory_space<smem>>
    %391 = vector.broadcast %390 : i32 to vector<32x128xi32>
    %392 = arith.cmpi eq, %1, %391 : vector<32x128xi32>
    %393 = arith.andi %389, %392 : vector<32x128xi1>
    %c32_97 = arith.constant 32 : index
    %394 = memref.load %arg5[%c32_97] : memref<72xf32, #tpu.memory_space<smem>>
    %cst_98 = arith.constant 0.000000e+00 : f32
    %395 = vector.broadcast %394 : f32 to vector<32x128xf32>
    %396 = vector.broadcast %cst_98 : f32 to vector<32x128xf32>
    %397 = arith.select %393, %395, %396 : vector<32x128xi1>, vector<32x128xf32>
    %398 = arith.addf %386, %397 : vector<32x128xf32>
    %c33 = arith.constant 33 : index
    %399 = memref.load %arg3[%c33] : memref<72xi32, #tpu.memory_space<smem>>
    %400 = vector.broadcast %399 : i32 to vector<32x128xi32>
    %401 = arith.cmpi eq, %0, %400 : vector<32x128xi32>
    %c33_99 = arith.constant 33 : index
    %402 = memref.load %arg4[%c33_99] : memref<72xi32, #tpu.memory_space<smem>>
    %403 = vector.broadcast %402 : i32 to vector<32x128xi32>
    %404 = arith.cmpi eq, %1, %403 : vector<32x128xi32>
    %405 = arith.andi %401, %404 : vector<32x128xi1>
    %c33_100 = arith.constant 33 : index
    %406 = memref.load %arg5[%c33_100] : memref<72xf32, #tpu.memory_space<smem>>
    %cst_101 = arith.constant 0.000000e+00 : f32
    %407 = vector.broadcast %406 : f32 to vector<32x128xf32>
    %408 = vector.broadcast %cst_101 : f32 to vector<32x128xf32>
    %409 = arith.select %405, %407, %408 : vector<32x128xi1>, vector<32x128xf32>
    %410 = arith.addf %398, %409 : vector<32x128xf32>
    %c34 = arith.constant 34 : index
    %411 = memref.load %arg3[%c34] : memref<72xi32, #tpu.memory_space<smem>>
    %412 = vector.broadcast %411 : i32 to vector<32x128xi32>
    %413 = arith.cmpi eq, %0, %412 : vector<32x128xi32>
    %c34_102 = arith.constant 34 : index
    %414 = memref.load %arg4[%c34_102] : memref<72xi32, #tpu.memory_space<smem>>
    %415 = vector.broadcast %414 : i32 to vector<32x128xi32>
    %416 = arith.cmpi eq, %1, %415 : vector<32x128xi32>
    %417 = arith.andi %413, %416 : vector<32x128xi1>
    %c34_103 = arith.constant 34 : index
    %418 = memref.load %arg5[%c34_103] : memref<72xf32, #tpu.memory_space<smem>>
    %cst_104 = arith.constant 0.000000e+00 : f32
    %419 = vector.broadcast %418 : f32 to vector<32x128xf32>
    %420 = vector.broadcast %cst_104 : f32 to vector<32x128xf32>
    %421 = arith.select %417, %419, %420 : vector<32x128xi1>, vector<32x128xf32>
    %422 = arith.addf %410, %421 : vector<32x128xf32>
    %c35 = arith.constant 35 : index
    %423 = memref.load %arg3[%c35] : memref<72xi32, #tpu.memory_space<smem>>
    %424 = vector.broadcast %423 : i32 to vector<32x128xi32>
    %425 = arith.cmpi eq, %0, %424 : vector<32x128xi32>
    %c35_105 = arith.constant 35 : index
    %426 = memref.load %arg4[%c35_105] : memref<72xi32, #tpu.memory_space<smem>>
    %427 = vector.broadcast %426 : i32 to vector<32x128xi32>
    %428 = arith.cmpi eq, %1, %427 : vector<32x128xi32>
    %429 = arith.andi %425, %428 : vector<32x128xi1>
    %c35_106 = arith.constant 35 : index
    %430 = memref.load %arg5[%c35_106] : memref<72xf32, #tpu.memory_space<smem>>
    %cst_107 = arith.constant 0.000000e+00 : f32
    %431 = vector.broadcast %430 : f32 to vector<32x128xf32>
    %432 = vector.broadcast %cst_107 : f32 to vector<32x128xf32>
    %433 = arith.select %429, %431, %432 : vector<32x128xi1>, vector<32x128xf32>
    %434 = arith.addf %422, %433 : vector<32x128xf32>
    %c36 = arith.constant 36 : index
    %435 = memref.load %arg3[%c36] : memref<72xi32, #tpu.memory_space<smem>>
    %436 = vector.broadcast %435 : i32 to vector<32x128xi32>
    %437 = arith.cmpi eq, %0, %436 : vector<32x128xi32>
    %c36_108 = arith.constant 36 : index
    %438 = memref.load %arg4[%c36_108] : memref<72xi32, #tpu.memory_space<smem>>
    %439 = vector.broadcast %438 : i32 to vector<32x128xi32>
    %440 = arith.cmpi eq, %1, %439 : vector<32x128xi32>
    %441 = arith.andi %437, %440 : vector<32x128xi1>
    %c36_109 = arith.constant 36 : index
    %442 = memref.load %arg5[%c36_109] : memref<72xf32, #tpu.memory_space<smem>>
    %cst_110 = arith.constant 0.000000e+00 : f32
    %443 = vector.broadcast %442 : f32 to vector<32x128xf32>
    %444 = vector.broadcast %cst_110 : f32 to vector<32x128xf32>
    %445 = arith.select %441, %443, %444 : vector<32x128xi1>, vector<32x128xf32>
    %446 = arith.addf %434, %445 : vector<32x128xf32>
    %c37 = arith.constant 37 : index
    %447 = memref.load %arg3[%c37] : memref<72xi32, #tpu.memory_space<smem>>
    %448 = vector.broadcast %447 : i32 to vector<32x128xi32>
    %449 = arith.cmpi eq, %0, %448 : vector<32x128xi32>
    %c37_111 = arith.constant 37 : index
    %450 = memref.load %arg4[%c37_111] : memref<72xi32, #tpu.memory_space<smem>>
    %451 = vector.broadcast %450 : i32 to vector<32x128xi32>
    %452 = arith.cmpi eq, %1, %451 : vector<32x128xi32>
    %453 = arith.andi %449, %452 : vector<32x128xi1>
    %c37_112 = arith.constant 37 : index
    %454 = memref.load %arg5[%c37_112] : memref<72xf32, #tpu.memory_space<smem>>
    %cst_113 = arith.constant 0.000000e+00 : f32
    %455 = vector.broadcast %454 : f32 to vector<32x128xf32>
    %456 = vector.broadcast %cst_113 : f32 to vector<32x128xf32>
    %457 = arith.select %453, %455, %456 : vector<32x128xi1>, vector<32x128xf32>
    %458 = arith.addf %446, %457 : vector<32x128xf32>
    %c38 = arith.constant 38 : index
    %459 = memref.load %arg3[%c38] : memref<72xi32, #tpu.memory_space<smem>>
    %460 = vector.broadcast %459 : i32 to vector<32x128xi32>
    %461 = arith.cmpi eq, %0, %460 : vector<32x128xi32>
    %c38_114 = arith.constant 38 : index
    %462 = memref.load %arg4[%c38_114] : memref<72xi32, #tpu.memory_space<smem>>
    %463 = vector.broadcast %462 : i32 to vector<32x128xi32>
    %464 = arith.cmpi eq, %1, %463 : vector<32x128xi32>
    %465 = arith.andi %461, %464 : vector<32x128xi1>
    %c38_115 = arith.constant 38 : index
    %466 = memref.load %arg5[%c38_115] : memref<72xf32, #tpu.memory_space<smem>>
    %cst_116 = arith.constant 0.000000e+00 : f32
    %467 = vector.broadcast %466 : f32 to vector<32x128xf32>
    %468 = vector.broadcast %cst_116 : f32 to vector<32x128xf32>
    %469 = arith.select %465, %467, %468 : vector<32x128xi1>, vector<32x128xf32>
    %470 = arith.addf %458, %469 : vector<32x128xf32>
    %c39 = arith.constant 39 : index
    %471 = memref.load %arg3[%c39] : memref<72xi32, #tpu.memory_space<smem>>
    %472 = vector.broadcast %471 : i32 to vector<32x128xi32>
    %473 = arith.cmpi eq, %0, %472 : vector<32x128xi32>
    %c39_117 = arith.constant 39 : index
    %474 = memref.load %arg4[%c39_117] : memref<72xi32, #tpu.memory_space<smem>>
    %475 = vector.broadcast %474 : i32 to vector<32x128xi32>
    %476 = arith.cmpi eq, %1, %475 : vector<32x128xi32>
    %477 = arith.andi %473, %476 : vector<32x128xi1>
    %c39_118 = arith.constant 39 : index
    %478 = memref.load %arg5[%c39_118] : memref<72xf32, #tpu.memory_space<smem>>
    %cst_119 = arith.constant 0.000000e+00 : f32
    %479 = vector.broadcast %478 : f32 to vector<32x128xf32>
    %480 = vector.broadcast %cst_119 : f32 to vector<32x128xf32>
    %481 = arith.select %477, %479, %480 : vector<32x128xi1>, vector<32x128xf32>
    %482 = arith.addf %470, %481 : vector<32x128xf32>
    %c40 = arith.constant 40 : index
    %483 = memref.load %arg3[%c40] : memref<72xi32, #tpu.memory_space<smem>>
    %484 = vector.broadcast %483 : i32 to vector<32x128xi32>
    %485 = arith.cmpi eq, %0, %484 : vector<32x128xi32>
    %c40_120 = arith.constant 40 : index
    %486 = memref.load %arg4[%c40_120] : memref<72xi32, #tpu.memory_space<smem>>
    %487 = vector.broadcast %486 : i32 to vector<32x128xi32>
    %488 = arith.cmpi eq, %1, %487 : vector<32x128xi32>
    %489 = arith.andi %485, %488 : vector<32x128xi1>
    %c40_121 = arith.constant 40 : index
    %490 = memref.load %arg5[%c40_121] : memref<72xf32, #tpu.memory_space<smem>>
    %cst_122 = arith.constant 0.000000e+00 : f32
    %491 = vector.broadcast %490 : f32 to vector<32x128xf32>
    %492 = vector.broadcast %cst_122 : f32 to vector<32x128xf32>
    %493 = arith.select %489, %491, %492 : vector<32x128xi1>, vector<32x128xf32>
    %494 = arith.addf %482, %493 : vector<32x128xf32>
    %c41 = arith.constant 41 : index
    %495 = memref.load %arg3[%c41] : memref<72xi32, #tpu.memory_space<smem>>
    %496 = vector.broadcast %495 : i32 to vector<32x128xi32>
    %497 = arith.cmpi eq, %0, %496 : vector<32x128xi32>
    %c41_123 = arith.constant 41 : index
    %498 = memref.load %arg4[%c41_123] : memref<72xi32, #tpu.memory_space<smem>>
    %499 = vector.broadcast %498 : i32 to vector<32x128xi32>
    %500 = arith.cmpi eq, %1, %499 : vector<32x128xi32>
    %501 = arith.andi %497, %500 : vector<32x128xi1>
    %c41_124 = arith.constant 41 : index
    %502 = memref.load %arg5[%c41_124] : memref<72xf32, #tpu.memory_space<smem>>
    %cst_125 = arith.constant 0.000000e+00 : f32
    %503 = vector.broadcast %502 : f32 to vector<32x128xf32>
    %504 = vector.broadcast %cst_125 : f32 to vector<32x128xf32>
    %505 = arith.select %501, %503, %504 : vector<32x128xi1>, vector<32x128xf32>
    %506 = arith.addf %494, %505 : vector<32x128xf32>
    %c42 = arith.constant 42 : index
    %507 = memref.load %arg3[%c42] : memref<72xi32, #tpu.memory_space<smem>>
    %508 = vector.broadcast %507 : i32 to vector<32x128xi32>
    %509 = arith.cmpi eq, %0, %508 : vector<32x128xi32>
    %c42_126 = arith.constant 42 : index
    %510 = memref.load %arg4[%c42_126] : memref<72xi32, #tpu.memory_space<smem>>
    %511 = vector.broadcast %510 : i32 to vector<32x128xi32>
    %512 = arith.cmpi eq, %1, %511 : vector<32x128xi32>
    %513 = arith.andi %509, %512 : vector<32x128xi1>
    %c42_127 = arith.constant 42 : index
    %514 = memref.load %arg5[%c42_127] : memref<72xf32, #tpu.memory_space<smem>>
    %cst_128 = arith.constant 0.000000e+00 : f32
    %515 = vector.broadcast %514 : f32 to vector<32x128xf32>
    %516 = vector.broadcast %cst_128 : f32 to vector<32x128xf32>
    %517 = arith.select %513, %515, %516 : vector<32x128xi1>, vector<32x128xf32>
    %518 = arith.addf %506, %517 : vector<32x128xf32>
    %c43 = arith.constant 43 : index
    %519 = memref.load %arg3[%c43] : memref<72xi32, #tpu.memory_space<smem>>
    %520 = vector.broadcast %519 : i32 to vector<32x128xi32>
    %521 = arith.cmpi eq, %0, %520 : vector<32x128xi32>
    %c43_129 = arith.constant 43 : index
    %522 = memref.load %arg4[%c43_129] : memref<72xi32, #tpu.memory_space<smem>>
    %523 = vector.broadcast %522 : i32 to vector<32x128xi32>
    %524 = arith.cmpi eq, %1, %523 : vector<32x128xi32>
    %525 = arith.andi %521, %524 : vector<32x128xi1>
    %c43_130 = arith.constant 43 : index
    %526 = memref.load %arg5[%c43_130] : memref<72xf32, #tpu.memory_space<smem>>
    %cst_131 = arith.constant 0.000000e+00 : f32
    %527 = vector.broadcast %526 : f32 to vector<32x128xf32>
    %528 = vector.broadcast %cst_131 : f32 to vector<32x128xf32>
    %529 = arith.select %525, %527, %528 : vector<32x128xi1>, vector<32x128xf32>
    %530 = arith.addf %518, %529 : vector<32x128xf32>
    %c44 = arith.constant 44 : index
    %531 = memref.load %arg3[%c44] : memref<72xi32, #tpu.memory_space<smem>>
    %532 = vector.broadcast %531 : i32 to vector<32x128xi32>
    %533 = arith.cmpi eq, %0, %532 : vector<32x128xi32>
    %c44_132 = arith.constant 44 : index
    %534 = memref.load %arg4[%c44_132] : memref<72xi32, #tpu.memory_space<smem>>
    %535 = vector.broadcast %534 : i32 to vector<32x128xi32>
    %536 = arith.cmpi eq, %1, %535 : vector<32x128xi32>
    %537 = arith.andi %533, %536 : vector<32x128xi1>
    %c44_133 = arith.constant 44 : index
    %538 = memref.load %arg5[%c44_133] : memref<72xf32, #tpu.memory_space<smem>>
    %cst_134 = arith.constant 0.000000e+00 : f32
    %539 = vector.broadcast %538 : f32 to vector<32x128xf32>
    %540 = vector.broadcast %cst_134 : f32 to vector<32x128xf32>
    %541 = arith.select %537, %539, %540 : vector<32x128xi1>, vector<32x128xf32>
    %542 = arith.addf %530, %541 : vector<32x128xf32>
    %c45 = arith.constant 45 : index
    %543 = memref.load %arg3[%c45] : memref<72xi32, #tpu.memory_space<smem>>
    %544 = vector.broadcast %543 : i32 to vector<32x128xi32>
    %545 = arith.cmpi eq, %0, %544 : vector<32x128xi32>
    %c45_135 = arith.constant 45 : index
    %546 = memref.load %arg4[%c45_135] : memref<72xi32, #tpu.memory_space<smem>>
    %547 = vector.broadcast %546 : i32 to vector<32x128xi32>
    %548 = arith.cmpi eq, %1, %547 : vector<32x128xi32>
    %549 = arith.andi %545, %548 : vector<32x128xi1>
    %c45_136 = arith.constant 45 : index
    %550 = memref.load %arg5[%c45_136] : memref<72xf32, #tpu.memory_space<smem>>
    %cst_137 = arith.constant 0.000000e+00 : f32
    %551 = vector.broadcast %550 : f32 to vector<32x128xf32>
    %552 = vector.broadcast %cst_137 : f32 to vector<32x128xf32>
    %553 = arith.select %549, %551, %552 : vector<32x128xi1>, vector<32x128xf32>
    %554 = arith.addf %542, %553 : vector<32x128xf32>
    %c46 = arith.constant 46 : index
    %555 = memref.load %arg3[%c46] : memref<72xi32, #tpu.memory_space<smem>>
    %556 = vector.broadcast %555 : i32 to vector<32x128xi32>
    %557 = arith.cmpi eq, %0, %556 : vector<32x128xi32>
    %c46_138 = arith.constant 46 : index
    %558 = memref.load %arg4[%c46_138] : memref<72xi32, #tpu.memory_space<smem>>
    %559 = vector.broadcast %558 : i32 to vector<32x128xi32>
    %560 = arith.cmpi eq, %1, %559 : vector<32x128xi32>
    %561 = arith.andi %557, %560 : vector<32x128xi1>
    %c46_139 = arith.constant 46 : index
    %562 = memref.load %arg5[%c46_139] : memref<72xf32, #tpu.memory_space<smem>>
    %cst_140 = arith.constant 0.000000e+00 : f32
    %563 = vector.broadcast %562 : f32 to vector<32x128xf32>
    %564 = vector.broadcast %cst_140 : f32 to vector<32x128xf32>
    %565 = arith.select %561, %563, %564 : vector<32x128xi1>, vector<32x128xf32>
    %566 = arith.addf %554, %565 : vector<32x128xf32>
    %c47 = arith.constant 47 : index
    %567 = memref.load %arg3[%c47] : memref<72xi32, #tpu.memory_space<smem>>
    %568 = vector.broadcast %567 : i32 to vector<32x128xi32>
    %569 = arith.cmpi eq, %0, %568 : vector<32x128xi32>
    %c47_141 = arith.constant 47 : index
    %570 = memref.load %arg4[%c47_141] : memref<72xi32, #tpu.memory_space<smem>>
    %571 = vector.broadcast %570 : i32 to vector<32x128xi32>
    %572 = arith.cmpi eq, %1, %571 : vector<32x128xi32>
    %573 = arith.andi %569, %572 : vector<32x128xi1>
    %c47_142 = arith.constant 47 : index
    %574 = memref.load %arg5[%c47_142] : memref<72xf32, #tpu.memory_space<smem>>
    %cst_143 = arith.constant 0.000000e+00 : f32
    %575 = vector.broadcast %574 : f32 to vector<32x128xf32>
    %576 = vector.broadcast %cst_143 : f32 to vector<32x128xf32>
    %577 = arith.select %573, %575, %576 : vector<32x128xi1>, vector<32x128xf32>
    %578 = arith.addf %566, %577 : vector<32x128xf32>
    %c48 = arith.constant 48 : index
    %579 = memref.load %arg3[%c48] : memref<72xi32, #tpu.memory_space<smem>>
    %580 = vector.broadcast %579 : i32 to vector<32x128xi32>
    %581 = arith.cmpi eq, %0, %580 : vector<32x128xi32>
    %c48_144 = arith.constant 48 : index
    %582 = memref.load %arg4[%c48_144] : memref<72xi32, #tpu.memory_space<smem>>
    %583 = vector.broadcast %582 : i32 to vector<32x128xi32>
    %584 = arith.cmpi eq, %1, %583 : vector<32x128xi32>
    %585 = arith.andi %581, %584 : vector<32x128xi1>
    %c48_145 = arith.constant 48 : index
    %586 = memref.load %arg5[%c48_145] : memref<72xf32, #tpu.memory_space<smem>>
    %cst_146 = arith.constant 0.000000e+00 : f32
    %587 = vector.broadcast %586 : f32 to vector<32x128xf32>
    %588 = vector.broadcast %cst_146 : f32 to vector<32x128xf32>
    %589 = arith.select %585, %587, %588 : vector<32x128xi1>, vector<32x128xf32>
    %590 = arith.addf %578, %589 : vector<32x128xf32>
    %c49 = arith.constant 49 : index
    %591 = memref.load %arg3[%c49] : memref<72xi32, #tpu.memory_space<smem>>
    %592 = vector.broadcast %591 : i32 to vector<32x128xi32>
    %593 = arith.cmpi eq, %0, %592 : vector<32x128xi32>
    %c49_147 = arith.constant 49 : index
    %594 = memref.load %arg4[%c49_147] : memref<72xi32, #tpu.memory_space<smem>>
    %595 = vector.broadcast %594 : i32 to vector<32x128xi32>
    %596 = arith.cmpi eq, %1, %595 : vector<32x128xi32>
    %597 = arith.andi %593, %596 : vector<32x128xi1>
    %c49_148 = arith.constant 49 : index
    %598 = memref.load %arg5[%c49_148] : memref<72xf32, #tpu.memory_space<smem>>
    %cst_149 = arith.constant 0.000000e+00 : f32
    %599 = vector.broadcast %598 : f32 to vector<32x128xf32>
    %600 = vector.broadcast %cst_149 : f32 to vector<32x128xf32>
    %601 = arith.select %597, %599, %600 : vector<32x128xi1>, vector<32x128xf32>
    %602 = arith.addf %590, %601 : vector<32x128xf32>
    %c50 = arith.constant 50 : index
    %603 = memref.load %arg3[%c50] : memref<72xi32, #tpu.memory_space<smem>>
    %604 = vector.broadcast %603 : i32 to vector<32x128xi32>
    %605 = arith.cmpi eq, %0, %604 : vector<32x128xi32>
    %c50_150 = arith.constant 50 : index
    %606 = memref.load %arg4[%c50_150] : memref<72xi32, #tpu.memory_space<smem>>
    %607 = vector.broadcast %606 : i32 to vector<32x128xi32>
    %608 = arith.cmpi eq, %1, %607 : vector<32x128xi32>
    %609 = arith.andi %605, %608 : vector<32x128xi1>
    %c50_151 = arith.constant 50 : index
    %610 = memref.load %arg5[%c50_151] : memref<72xf32, #tpu.memory_space<smem>>
    %cst_152 = arith.constant 0.000000e+00 : f32
    %611 = vector.broadcast %610 : f32 to vector<32x128xf32>
    %612 = vector.broadcast %cst_152 : f32 to vector<32x128xf32>
    %613 = arith.select %609, %611, %612 : vector<32x128xi1>, vector<32x128xf32>
    %614 = arith.addf %602, %613 : vector<32x128xf32>
    %c51 = arith.constant 51 : index
    %615 = memref.load %arg3[%c51] : memref<72xi32, #tpu.memory_space<smem>>
    %616 = vector.broadcast %615 : i32 to vector<32x128xi32>
    %617 = arith.cmpi eq, %0, %616 : vector<32x128xi32>
    %c51_153 = arith.constant 51 : index
    %618 = memref.load %arg4[%c51_153] : memref<72xi32, #tpu.memory_space<smem>>
    %619 = vector.broadcast %618 : i32 to vector<32x128xi32>
    %620 = arith.cmpi eq, %1, %619 : vector<32x128xi32>
    %621 = arith.andi %617, %620 : vector<32x128xi1>
    %c51_154 = arith.constant 51 : index
    %622 = memref.load %arg5[%c51_154] : memref<72xf32, #tpu.memory_space<smem>>
    %cst_155 = arith.constant 0.000000e+00 : f32
    %623 = vector.broadcast %622 : f32 to vector<32x128xf32>
    %624 = vector.broadcast %cst_155 : f32 to vector<32x128xf32>
    %625 = arith.select %621, %623, %624 : vector<32x128xi1>, vector<32x128xf32>
    %626 = arith.addf %614, %625 : vector<32x128xf32>
    %c52 = arith.constant 52 : index
    %627 = memref.load %arg3[%c52] : memref<72xi32, #tpu.memory_space<smem>>
    %628 = vector.broadcast %627 : i32 to vector<32x128xi32>
    %629 = arith.cmpi eq, %0, %628 : vector<32x128xi32>
    %c52_156 = arith.constant 52 : index
    %630 = memref.load %arg4[%c52_156] : memref<72xi32, #tpu.memory_space<smem>>
    %631 = vector.broadcast %630 : i32 to vector<32x128xi32>
    %632 = arith.cmpi eq, %1, %631 : vector<32x128xi32>
    %633 = arith.andi %629, %632 : vector<32x128xi1>
    %c52_157 = arith.constant 52 : index
    %634 = memref.load %arg5[%c52_157] : memref<72xf32, #tpu.memory_space<smem>>
    %cst_158 = arith.constant 0.000000e+00 : f32
    %635 = vector.broadcast %634 : f32 to vector<32x128xf32>
    %636 = vector.broadcast %cst_158 : f32 to vector<32x128xf32>
    %637 = arith.select %633, %635, %636 : vector<32x128xi1>, vector<32x128xf32>
    %638 = arith.addf %626, %637 : vector<32x128xf32>
    %c53 = arith.constant 53 : index
    %639 = memref.load %arg3[%c53] : memref<72xi32, #tpu.memory_space<smem>>
    %640 = vector.broadcast %639 : i32 to vector<32x128xi32>
    %641 = arith.cmpi eq, %0, %640 : vector<32x128xi32>
    %c53_159 = arith.constant 53 : index
    %642 = memref.load %arg4[%c53_159] : memref<72xi32, #tpu.memory_space<smem>>
    %643 = vector.broadcast %642 : i32 to vector<32x128xi32>
    %644 = arith.cmpi eq, %1, %643 : vector<32x128xi32>
    %645 = arith.andi %641, %644 : vector<32x128xi1>
    %c53_160 = arith.constant 53 : index
    %646 = memref.load %arg5[%c53_160] : memref<72xf32, #tpu.memory_space<smem>>
    %cst_161 = arith.constant 0.000000e+00 : f32
    %647 = vector.broadcast %646 : f32 to vector<32x128xf32>
    %648 = vector.broadcast %cst_161 : f32 to vector<32x128xf32>
    %649 = arith.select %645, %647, %648 : vector<32x128xi1>, vector<32x128xf32>
    %650 = arith.addf %638, %649 : vector<32x128xf32>
    %c54 = arith.constant 54 : index
    %651 = memref.load %arg3[%c54] : memref<72xi32, #tpu.memory_space<smem>>
    %652 = vector.broadcast %651 : i32 to vector<32x128xi32>
    %653 = arith.cmpi eq, %0, %652 : vector<32x128xi32>
    %c54_162 = arith.constant 54 : index
    %654 = memref.load %arg4[%c54_162] : memref<72xi32, #tpu.memory_space<smem>>
    %655 = vector.broadcast %654 : i32 to vector<32x128xi32>
    %656 = arith.cmpi eq, %1, %655 : vector<32x128xi32>
    %657 = arith.andi %653, %656 : vector<32x128xi1>
    %c54_163 = arith.constant 54 : index
    %658 = memref.load %arg5[%c54_163] : memref<72xf32, #tpu.memory_space<smem>>
    %cst_164 = arith.constant 0.000000e+00 : f32
    %659 = vector.broadcast %658 : f32 to vector<32x128xf32>
    %660 = vector.broadcast %cst_164 : f32 to vector<32x128xf32>
    %661 = arith.select %657, %659, %660 : vector<32x128xi1>, vector<32x128xf32>
    %662 = arith.addf %650, %661 : vector<32x128xf32>
    %c55 = arith.constant 55 : index
    %663 = memref.load %arg3[%c55] : memref<72xi32, #tpu.memory_space<smem>>
    %664 = vector.broadcast %663 : i32 to vector<32x128xi32>
    %665 = arith.cmpi eq, %0, %664 : vector<32x128xi32>
    %c55_165 = arith.constant 55 : index
    %666 = memref.load %arg4[%c55_165] : memref<72xi32, #tpu.memory_space<smem>>
    %667 = vector.broadcast %666 : i32 to vector<32x128xi32>
    %668 = arith.cmpi eq, %1, %667 : vector<32x128xi32>
    %669 = arith.andi %665, %668 : vector<32x128xi1>
    %c55_166 = arith.constant 55 : index
    %670 = memref.load %arg5[%c55_166] : memref<72xf32, #tpu.memory_space<smem>>
    %cst_167 = arith.constant 0.000000e+00 : f32
    %671 = vector.broadcast %670 : f32 to vector<32x128xf32>
    %672 = vector.broadcast %cst_167 : f32 to vector<32x128xf32>
    %673 = arith.select %669, %671, %672 : vector<32x128xi1>, vector<32x128xf32>
    %674 = arith.addf %662, %673 : vector<32x128xf32>
    %c56 = arith.constant 56 : index
    %675 = memref.load %arg3[%c56] : memref<72xi32, #tpu.memory_space<smem>>
    %676 = vector.broadcast %675 : i32 to vector<32x128xi32>
    %677 = arith.cmpi eq, %0, %676 : vector<32x128xi32>
    %c56_168 = arith.constant 56 : index
    %678 = memref.load %arg4[%c56_168] : memref<72xi32, #tpu.memory_space<smem>>
    %679 = vector.broadcast %678 : i32 to vector<32x128xi32>
    %680 = arith.cmpi eq, %1, %679 : vector<32x128xi32>
    %681 = arith.andi %677, %680 : vector<32x128xi1>
    %c56_169 = arith.constant 56 : index
    %682 = memref.load %arg5[%c56_169] : memref<72xf32, #tpu.memory_space<smem>>
    %cst_170 = arith.constant 0.000000e+00 : f32
    %683 = vector.broadcast %682 : f32 to vector<32x128xf32>
    %684 = vector.broadcast %cst_170 : f32 to vector<32x128xf32>
    %685 = arith.select %681, %683, %684 : vector<32x128xi1>, vector<32x128xf32>
    %686 = arith.addf %674, %685 : vector<32x128xf32>
    %c57 = arith.constant 57 : index
    %687 = memref.load %arg3[%c57] : memref<72xi32, #tpu.memory_space<smem>>
    %688 = vector.broadcast %687 : i32 to vector<32x128xi32>
    %689 = arith.cmpi eq, %0, %688 : vector<32x128xi32>
    %c57_171 = arith.constant 57 : index
    %690 = memref.load %arg4[%c57_171] : memref<72xi32, #tpu.memory_space<smem>>
    %691 = vector.broadcast %690 : i32 to vector<32x128xi32>
    %692 = arith.cmpi eq, %1, %691 : vector<32x128xi32>
    %693 = arith.andi %689, %692 : vector<32x128xi1>
    %c57_172 = arith.constant 57 : index
    %694 = memref.load %arg5[%c57_172] : memref<72xf32, #tpu.memory_space<smem>>
    %cst_173 = arith.constant 0.000000e+00 : f32
    %695 = vector.broadcast %694 : f32 to vector<32x128xf32>
    %696 = vector.broadcast %cst_173 : f32 to vector<32x128xf32>
    %697 = arith.select %693, %695, %696 : vector<32x128xi1>, vector<32x128xf32>
    %698 = arith.addf %686, %697 : vector<32x128xf32>
    %c58 = arith.constant 58 : index
    %699 = memref.load %arg3[%c58] : memref<72xi32, #tpu.memory_space<smem>>
    %700 = vector.broadcast %699 : i32 to vector<32x128xi32>
    %701 = arith.cmpi eq, %0, %700 : vector<32x128xi32>
    %c58_174 = arith.constant 58 : index
    %702 = memref.load %arg4[%c58_174] : memref<72xi32, #tpu.memory_space<smem>>
    %703 = vector.broadcast %702 : i32 to vector<32x128xi32>
    %704 = arith.cmpi eq, %1, %703 : vector<32x128xi32>
    %705 = arith.andi %701, %704 : vector<32x128xi1>
    %c58_175 = arith.constant 58 : index
    %706 = memref.load %arg5[%c58_175] : memref<72xf32, #tpu.memory_space<smem>>
    %cst_176 = arith.constant 0.000000e+00 : f32
    %707 = vector.broadcast %706 : f32 to vector<32x128xf32>
    %708 = vector.broadcast %cst_176 : f32 to vector<32x128xf32>
    %709 = arith.select %705, %707, %708 : vector<32x128xi1>, vector<32x128xf32>
    %710 = arith.addf %698, %709 : vector<32x128xf32>
    %c59 = arith.constant 59 : index
    %711 = memref.load %arg3[%c59] : memref<72xi32, #tpu.memory_space<smem>>
    %712 = vector.broadcast %711 : i32 to vector<32x128xi32>
    %713 = arith.cmpi eq, %0, %712 : vector<32x128xi32>
    %c59_177 = arith.constant 59 : index
    %714 = memref.load %arg4[%c59_177] : memref<72xi32, #tpu.memory_space<smem>>
    %715 = vector.broadcast %714 : i32 to vector<32x128xi32>
    %716 = arith.cmpi eq, %1, %715 : vector<32x128xi32>
    %717 = arith.andi %713, %716 : vector<32x128xi1>
    %c59_178 = arith.constant 59 : index
    %718 = memref.load %arg5[%c59_178] : memref<72xf32, #tpu.memory_space<smem>>
    %cst_179 = arith.constant 0.000000e+00 : f32
    %719 = vector.broadcast %718 : f32 to vector<32x128xf32>
    %720 = vector.broadcast %cst_179 : f32 to vector<32x128xf32>
    %721 = arith.select %717, %719, %720 : vector<32x128xi1>, vector<32x128xf32>
    %722 = arith.addf %710, %721 : vector<32x128xf32>
    %c60 = arith.constant 60 : index
    %723 = memref.load %arg3[%c60] : memref<72xi32, #tpu.memory_space<smem>>
    %724 = vector.broadcast %723 : i32 to vector<32x128xi32>
    %725 = arith.cmpi eq, %0, %724 : vector<32x128xi32>
    %c60_180 = arith.constant 60 : index
    %726 = memref.load %arg4[%c60_180] : memref<72xi32, #tpu.memory_space<smem>>
    %727 = vector.broadcast %726 : i32 to vector<32x128xi32>
    %728 = arith.cmpi eq, %1, %727 : vector<32x128xi32>
    %729 = arith.andi %725, %728 : vector<32x128xi1>
    %c60_181 = arith.constant 60 : index
    %730 = memref.load %arg5[%c60_181] : memref<72xf32, #tpu.memory_space<smem>>
    %cst_182 = arith.constant 0.000000e+00 : f32
    %731 = vector.broadcast %730 : f32 to vector<32x128xf32>
    %732 = vector.broadcast %cst_182 : f32 to vector<32x128xf32>
    %733 = arith.select %729, %731, %732 : vector<32x128xi1>, vector<32x128xf32>
    %734 = arith.addf %722, %733 : vector<32x128xf32>
    %c61 = arith.constant 61 : index
    %735 = memref.load %arg3[%c61] : memref<72xi32, #tpu.memory_space<smem>>
    %736 = vector.broadcast %735 : i32 to vector<32x128xi32>
    %737 = arith.cmpi eq, %0, %736 : vector<32x128xi32>
    %c61_183 = arith.constant 61 : index
    %738 = memref.load %arg4[%c61_183] : memref<72xi32, #tpu.memory_space<smem>>
    %739 = vector.broadcast %738 : i32 to vector<32x128xi32>
    %740 = arith.cmpi eq, %1, %739 : vector<32x128xi32>
    %741 = arith.andi %737, %740 : vector<32x128xi1>
    %c61_184 = arith.constant 61 : index
    %742 = memref.load %arg5[%c61_184] : memref<72xf32, #tpu.memory_space<smem>>
    %cst_185 = arith.constant 0.000000e+00 : f32
    %743 = vector.broadcast %742 : f32 to vector<32x128xf32>
    %744 = vector.broadcast %cst_185 : f32 to vector<32x128xf32>
    %745 = arith.select %741, %743, %744 : vector<32x128xi1>, vector<32x128xf32>
    %746 = arith.addf %734, %745 : vector<32x128xf32>
    %c62 = arith.constant 62 : index
    %747 = memref.load %arg3[%c62] : memref<72xi32, #tpu.memory_space<smem>>
    %748 = vector.broadcast %747 : i32 to vector<32x128xi32>
    %749 = arith.cmpi eq, %0, %748 : vector<32x128xi32>
    %c62_186 = arith.constant 62 : index
    %750 = memref.load %arg4[%c62_186] : memref<72xi32, #tpu.memory_space<smem>>
    %751 = vector.broadcast %750 : i32 to vector<32x128xi32>
    %752 = arith.cmpi eq, %1, %751 : vector<32x128xi32>
    %753 = arith.andi %749, %752 : vector<32x128xi1>
    %c62_187 = arith.constant 62 : index
    %754 = memref.load %arg5[%c62_187] : memref<72xf32, #tpu.memory_space<smem>>
    %cst_188 = arith.constant 0.000000e+00 : f32
    %755 = vector.broadcast %754 : f32 to vector<32x128xf32>
    %756 = vector.broadcast %cst_188 : f32 to vector<32x128xf32>
    %757 = arith.select %753, %755, %756 : vector<32x128xi1>, vector<32x128xf32>
    %758 = arith.addf %746, %757 : vector<32x128xf32>
    %c63 = arith.constant 63 : index
    %759 = memref.load %arg3[%c63] : memref<72xi32, #tpu.memory_space<smem>>
    %760 = vector.broadcast %759 : i32 to vector<32x128xi32>
    %761 = arith.cmpi eq, %0, %760 : vector<32x128xi32>
    %c63_189 = arith.constant 63 : index
    %762 = memref.load %arg4[%c63_189] : memref<72xi32, #tpu.memory_space<smem>>
    %763 = vector.broadcast %762 : i32 to vector<32x128xi32>
    %764 = arith.cmpi eq, %1, %763 : vector<32x128xi32>
    %765 = arith.andi %761, %764 : vector<32x128xi1>
    %c63_190 = arith.constant 63 : index
    %766 = memref.load %arg5[%c63_190] : memref<72xf32, #tpu.memory_space<smem>>
    %cst_191 = arith.constant 0.000000e+00 : f32
    %767 = vector.broadcast %766 : f32 to vector<32x128xf32>
    %768 = vector.broadcast %cst_191 : f32 to vector<32x128xf32>
    %769 = arith.select %765, %767, %768 : vector<32x128xi1>, vector<32x128xf32>
    %770 = arith.addf %758, %769 : vector<32x128xf32>
    %c64 = arith.constant 64 : index
    %771 = memref.load %arg3[%c64] : memref<72xi32, #tpu.memory_space<smem>>
    %772 = vector.broadcast %771 : i32 to vector<32x128xi32>
    %773 = arith.cmpi eq, %0, %772 : vector<32x128xi32>
    %c64_192 = arith.constant 64 : index
    %774 = memref.load %arg4[%c64_192] : memref<72xi32, #tpu.memory_space<smem>>
    %775 = vector.broadcast %774 : i32 to vector<32x128xi32>
    %776 = arith.cmpi eq, %1, %775 : vector<32x128xi32>
    %777 = arith.andi %773, %776 : vector<32x128xi1>
    %c64_193 = arith.constant 64 : index
    %778 = memref.load %arg5[%c64_193] : memref<72xf32, #tpu.memory_space<smem>>
    %cst_194 = arith.constant 0.000000e+00 : f32
    %779 = vector.broadcast %778 : f32 to vector<32x128xf32>
    %780 = vector.broadcast %cst_194 : f32 to vector<32x128xf32>
    %781 = arith.select %777, %779, %780 : vector<32x128xi1>, vector<32x128xf32>
    %782 = arith.addf %770, %781 : vector<32x128xf32>
    %c65 = arith.constant 65 : index
    %783 = memref.load %arg3[%c65] : memref<72xi32, #tpu.memory_space<smem>>
    %784 = vector.broadcast %783 : i32 to vector<32x128xi32>
    %785 = arith.cmpi eq, %0, %784 : vector<32x128xi32>
    %c65_195 = arith.constant 65 : index
    %786 = memref.load %arg4[%c65_195] : memref<72xi32, #tpu.memory_space<smem>>
    %787 = vector.broadcast %786 : i32 to vector<32x128xi32>
    %788 = arith.cmpi eq, %1, %787 : vector<32x128xi32>
    %789 = arith.andi %785, %788 : vector<32x128xi1>
    %c65_196 = arith.constant 65 : index
    %790 = memref.load %arg5[%c65_196] : memref<72xf32, #tpu.memory_space<smem>>
    %cst_197 = arith.constant 0.000000e+00 : f32
    %791 = vector.broadcast %790 : f32 to vector<32x128xf32>
    %792 = vector.broadcast %cst_197 : f32 to vector<32x128xf32>
    %793 = arith.select %789, %791, %792 : vector<32x128xi1>, vector<32x128xf32>
    %794 = arith.addf %782, %793 : vector<32x128xf32>
    %c66 = arith.constant 66 : index
    %795 = memref.load %arg3[%c66] : memref<72xi32, #tpu.memory_space<smem>>
    %796 = vector.broadcast %795 : i32 to vector<32x128xi32>
    %797 = arith.cmpi eq, %0, %796 : vector<32x128xi32>
    %c66_198 = arith.constant 66 : index
    %798 = memref.load %arg4[%c66_198] : memref<72xi32, #tpu.memory_space<smem>>
    %799 = vector.broadcast %798 : i32 to vector<32x128xi32>
    %800 = arith.cmpi eq, %1, %799 : vector<32x128xi32>
    %801 = arith.andi %797, %800 : vector<32x128xi1>
    %c66_199 = arith.constant 66 : index
    %802 = memref.load %arg5[%c66_199] : memref<72xf32, #tpu.memory_space<smem>>
    %cst_200 = arith.constant 0.000000e+00 : f32
    %803 = vector.broadcast %802 : f32 to vector<32x128xf32>
    %804 = vector.broadcast %cst_200 : f32 to vector<32x128xf32>
    %805 = arith.select %801, %803, %804 : vector<32x128xi1>, vector<32x128xf32>
    %806 = arith.addf %794, %805 : vector<32x128xf32>
    %c67 = arith.constant 67 : index
    %807 = memref.load %arg3[%c67] : memref<72xi32, #tpu.memory_space<smem>>
    %808 = vector.broadcast %807 : i32 to vector<32x128xi32>
    %809 = arith.cmpi eq, %0, %808 : vector<32x128xi32>
    %c67_201 = arith.constant 67 : index
    %810 = memref.load %arg4[%c67_201] : memref<72xi32, #tpu.memory_space<smem>>
    %811 = vector.broadcast %810 : i32 to vector<32x128xi32>
    %812 = arith.cmpi eq, %1, %811 : vector<32x128xi32>
    %813 = arith.andi %809, %812 : vector<32x128xi1>
    %c67_202 = arith.constant 67 : index
    %814 = memref.load %arg5[%c67_202] : memref<72xf32, #tpu.memory_space<smem>>
    %cst_203 = arith.constant 0.000000e+00 : f32
    %815 = vector.broadcast %814 : f32 to vector<32x128xf32>
    %816 = vector.broadcast %cst_203 : f32 to vector<32x128xf32>
    %817 = arith.select %813, %815, %816 : vector<32x128xi1>, vector<32x128xf32>
    %818 = arith.addf %806, %817 : vector<32x128xf32>
    %c68 = arith.constant 68 : index
    %819 = memref.load %arg3[%c68] : memref<72xi32, #tpu.memory_space<smem>>
    %820 = vector.broadcast %819 : i32 to vector<32x128xi32>
    %821 = arith.cmpi eq, %0, %820 : vector<32x128xi32>
    %c68_204 = arith.constant 68 : index
    %822 = memref.load %arg4[%c68_204] : memref<72xi32, #tpu.memory_space<smem>>
    %823 = vector.broadcast %822 : i32 to vector<32x128xi32>
    %824 = arith.cmpi eq, %1, %823 : vector<32x128xi32>
    %825 = arith.andi %821, %824 : vector<32x128xi1>
    %c68_205 = arith.constant 68 : index
    %826 = memref.load %arg5[%c68_205] : memref<72xf32, #tpu.memory_space<smem>>
    %cst_206 = arith.constant 0.000000e+00 : f32
    %827 = vector.broadcast %826 : f32 to vector<32x128xf32>
    %828 = vector.broadcast %cst_206 : f32 to vector<32x128xf32>
    %829 = arith.select %825, %827, %828 : vector<32x128xi1>, vector<32x128xf32>
    %830 = arith.addf %818, %829 : vector<32x128xf32>
    %c69 = arith.constant 69 : index
    %831 = memref.load %arg3[%c69] : memref<72xi32, #tpu.memory_space<smem>>
    %832 = vector.broadcast %831 : i32 to vector<32x128xi32>
    %833 = arith.cmpi eq, %0, %832 : vector<32x128xi32>
    %c69_207 = arith.constant 69 : index
    %834 = memref.load %arg4[%c69_207] : memref<72xi32, #tpu.memory_space<smem>>
    %835 = vector.broadcast %834 : i32 to vector<32x128xi32>
    %836 = arith.cmpi eq, %1, %835 : vector<32x128xi32>
    %837 = arith.andi %833, %836 : vector<32x128xi1>
    %c69_208 = arith.constant 69 : index
    %838 = memref.load %arg5[%c69_208] : memref<72xf32, #tpu.memory_space<smem>>
    %cst_209 = arith.constant 0.000000e+00 : f32
    %839 = vector.broadcast %838 : f32 to vector<32x128xf32>
    %840 = vector.broadcast %cst_209 : f32 to vector<32x128xf32>
    %841 = arith.select %837, %839, %840 : vector<32x128xi1>, vector<32x128xf32>
    %842 = arith.addf %830, %841 : vector<32x128xf32>
    %c70 = arith.constant 70 : index
    %843 = memref.load %arg3[%c70] : memref<72xi32, #tpu.memory_space<smem>>
    %844 = vector.broadcast %843 : i32 to vector<32x128xi32>
    %845 = arith.cmpi eq, %0, %844 : vector<32x128xi32>
    %c70_210 = arith.constant 70 : index
    %846 = memref.load %arg4[%c70_210] : memref<72xi32, #tpu.memory_space<smem>>
    %847 = vector.broadcast %846 : i32 to vector<32x128xi32>
    %848 = arith.cmpi eq, %1, %847 : vector<32x128xi32>
    %849 = arith.andi %845, %848 : vector<32x128xi1>
    %c70_211 = arith.constant 70 : index
    %850 = memref.load %arg5[%c70_211] : memref<72xf32, #tpu.memory_space<smem>>
    %cst_212 = arith.constant 0.000000e+00 : f32
    %851 = vector.broadcast %850 : f32 to vector<32x128xf32>
    %852 = vector.broadcast %cst_212 : f32 to vector<32x128xf32>
    %853 = arith.select %849, %851, %852 : vector<32x128xi1>, vector<32x128xf32>
    %854 = arith.addf %842, %853 : vector<32x128xf32>
    %c71 = arith.constant 71 : index
    %855 = memref.load %arg3[%c71] : memref<72xi32, #tpu.memory_space<smem>>
    %856 = vector.broadcast %855 : i32 to vector<32x128xi32>
    %857 = arith.cmpi eq, %0, %856 : vector<32x128xi32>
    %c71_213 = arith.constant 71 : index
    %858 = memref.load %arg4[%c71_213] : memref<72xi32, #tpu.memory_space<smem>>
    %859 = vector.broadcast %858 : i32 to vector<32x128xi32>
    %860 = arith.cmpi eq, %1, %859 : vector<32x128xi32>
    %861 = arith.andi %857, %860 : vector<32x128xi1>
    %c71_214 = arith.constant 71 : index
    %862 = memref.load %arg5[%c71_214] : memref<72xf32, #tpu.memory_space<smem>>
    %cst_215 = arith.constant 0.000000e+00 : f32
    %863 = vector.broadcast %862 : f32 to vector<32x128xf32>
    %864 = vector.broadcast %cst_215 : f32 to vector<32x128xf32>
    %865 = arith.select %861, %863, %864 : vector<32x128xi1>, vector<32x128xf32>
    %866 = arith.addf %854, %865 : vector<32x128xf32>
    %cst_216 = arith.constant 0.000000e+00 : f32
    %867 = vector.broadcast %cst_216 : f32 to vector<32x128xf32>
    %c0_217 = arith.constant 0 : index
    %868 = memref.load %arg6[%c0_217] : memref<12xi32, #tpu.memory_space<smem>>
    %869 = vector.broadcast %868 : i32 to vector<32x128xi32>
    %870 = arith.cmpi eq, %0, %869 : vector<32x128xi32>
    %c0_218 = arith.constant 0 : index
    %871 = memref.load %arg7[%c0_218] : memref<12xi32, #tpu.memory_space<smem>>
    %872 = vector.broadcast %871 : i32 to vector<32x128xi32>
    %873 = arith.cmpi eq, %1, %872 : vector<32x128xi32>
    %874 = arith.andi %870, %873 : vector<32x128xi1>
    %cst_219 = arith.constant -1.000000e+00 : f32
    %cst_220 = arith.constant 0.000000e+00 : f32
    %875 = vector.broadcast %cst_219 : f32 to vector<32x128xf32>
    %876 = vector.broadcast %cst_220 : f32 to vector<32x128xf32>
    %877 = arith.select %874, %875, %876 : vector<32x128xi1>, vector<32x128xf32>
    %878 = arith.addf %867, %877 : vector<32x128xf32>
    %c1_221 = arith.constant 1 : index
    %879 = memref.load %arg6[%c1_221] : memref<12xi32, #tpu.memory_space<smem>>
    %880 = vector.broadcast %879 : i32 to vector<32x128xi32>
    %881 = arith.cmpi eq, %0, %880 : vector<32x128xi32>
    %c1_222 = arith.constant 1 : index
    %882 = memref.load %arg7[%c1_222] : memref<12xi32, #tpu.memory_space<smem>>
    %883 = vector.broadcast %882 : i32 to vector<32x128xi32>
    %884 = arith.cmpi eq, %1, %883 : vector<32x128xi32>
    %885 = arith.andi %881, %884 : vector<32x128xi1>
    %cst_223 = arith.constant -1.000000e+00 : f32
    %cst_224 = arith.constant 0.000000e+00 : f32
    %886 = vector.broadcast %cst_223 : f32 to vector<32x128xf32>
    %887 = vector.broadcast %cst_224 : f32 to vector<32x128xf32>
    %888 = arith.select %885, %886, %887 : vector<32x128xi1>, vector<32x128xf32>
    %889 = arith.addf %878, %888 : vector<32x128xf32>
    %c2_225 = arith.constant 2 : index
    %890 = memref.load %arg6[%c2_225] : memref<12xi32, #tpu.memory_space<smem>>
    %891 = vector.broadcast %890 : i32 to vector<32x128xi32>
    %892 = arith.cmpi eq, %0, %891 : vector<32x128xi32>
    %c2_226 = arith.constant 2 : index
    %893 = memref.load %arg7[%c2_226] : memref<12xi32, #tpu.memory_space<smem>>
    %894 = vector.broadcast %893 : i32 to vector<32x128xi32>
    %895 = arith.cmpi eq, %1, %894 : vector<32x128xi32>
    %896 = arith.andi %892, %895 : vector<32x128xi1>
    %cst_227 = arith.constant -1.000000e+00 : f32
    %cst_228 = arith.constant 0.000000e+00 : f32
    %897 = vector.broadcast %cst_227 : f32 to vector<32x128xf32>
    %898 = vector.broadcast %cst_228 : f32 to vector<32x128xf32>
    %899 = arith.select %896, %897, %898 : vector<32x128xi1>, vector<32x128xf32>
    %900 = arith.addf %889, %899 : vector<32x128xf32>
    %c3_229 = arith.constant 3 : index
    %901 = memref.load %arg6[%c3_229] : memref<12xi32, #tpu.memory_space<smem>>
    %902 = vector.broadcast %901 : i32 to vector<32x128xi32>
    %903 = arith.cmpi eq, %0, %902 : vector<32x128xi32>
    %c3_230 = arith.constant 3 : index
    %904 = memref.load %arg7[%c3_230] : memref<12xi32, #tpu.memory_space<smem>>
    %905 = vector.broadcast %904 : i32 to vector<32x128xi32>
    %906 = arith.cmpi eq, %1, %905 : vector<32x128xi32>
    %907 = arith.andi %903, %906 : vector<32x128xi1>
    %cst_231 = arith.constant -1.000000e+00 : f32
    %cst_232 = arith.constant 0.000000e+00 : f32
    %908 = vector.broadcast %cst_231 : f32 to vector<32x128xf32>
    %909 = vector.broadcast %cst_232 : f32 to vector<32x128xf32>
    %910 = arith.select %907, %908, %909 : vector<32x128xi1>, vector<32x128xf32>
    %911 = arith.addf %900, %910 : vector<32x128xf32>
    %c4_233 = arith.constant 4 : index
    %912 = memref.load %arg6[%c4_233] : memref<12xi32, #tpu.memory_space<smem>>
    %913 = vector.broadcast %912 : i32 to vector<32x128xi32>
    %914 = arith.cmpi eq, %0, %913 : vector<32x128xi32>
    %c4_234 = arith.constant 4 : index
    %915 = memref.load %arg7[%c4_234] : memref<12xi32, #tpu.memory_space<smem>>
    %916 = vector.broadcast %915 : i32 to vector<32x128xi32>
    %917 = arith.cmpi eq, %1, %916 : vector<32x128xi32>
    %918 = arith.andi %914, %917 : vector<32x128xi1>
    %cst_235 = arith.constant -1.000000e+00 : f32
    %cst_236 = arith.constant 0.000000e+00 : f32
    %919 = vector.broadcast %cst_235 : f32 to vector<32x128xf32>
    %920 = vector.broadcast %cst_236 : f32 to vector<32x128xf32>
    %921 = arith.select %918, %919, %920 : vector<32x128xi1>, vector<32x128xf32>
    %922 = arith.addf %911, %921 : vector<32x128xf32>
    %c5_237 = arith.constant 5 : index
    %923 = memref.load %arg6[%c5_237] : memref<12xi32, #tpu.memory_space<smem>>
    %924 = vector.broadcast %923 : i32 to vector<32x128xi32>
    %925 = arith.cmpi eq, %0, %924 : vector<32x128xi32>
    %c5_238 = arith.constant 5 : index
    %926 = memref.load %arg7[%c5_238] : memref<12xi32, #tpu.memory_space<smem>>
    %927 = vector.broadcast %926 : i32 to vector<32x128xi32>
    %928 = arith.cmpi eq, %1, %927 : vector<32x128xi32>
    %929 = arith.andi %925, %928 : vector<32x128xi1>
    %cst_239 = arith.constant -1.000000e+00 : f32
    %cst_240 = arith.constant 0.000000e+00 : f32
    %930 = vector.broadcast %cst_239 : f32 to vector<32x128xf32>
    %931 = vector.broadcast %cst_240 : f32 to vector<32x128xf32>
    %932 = arith.select %929, %930, %931 : vector<32x128xi1>, vector<32x128xf32>
    %933 = arith.addf %922, %932 : vector<32x128xf32>
    %c6_241 = arith.constant 6 : index
    %934 = memref.load %arg6[%c6_241] : memref<12xi32, #tpu.memory_space<smem>>
    %935 = vector.broadcast %934 : i32 to vector<32x128xi32>
    %936 = arith.cmpi eq, %0, %935 : vector<32x128xi32>
    %c6_242 = arith.constant 6 : index
    %937 = memref.load %arg7[%c6_242] : memref<12xi32, #tpu.memory_space<smem>>
    %938 = vector.broadcast %937 : i32 to vector<32x128xi32>
    %939 = arith.cmpi eq, %1, %938 : vector<32x128xi32>
    %940 = arith.andi %936, %939 : vector<32x128xi1>
    %cst_243 = arith.constant -1.000000e+00 : f32
    %cst_244 = arith.constant 0.000000e+00 : f32
    %941 = vector.broadcast %cst_243 : f32 to vector<32x128xf32>
    %942 = vector.broadcast %cst_244 : f32 to vector<32x128xf32>
    %943 = arith.select %940, %941, %942 : vector<32x128xi1>, vector<32x128xf32>
    %944 = arith.addf %933, %943 : vector<32x128xf32>
    %c7_245 = arith.constant 7 : index
    %945 = memref.load %arg6[%c7_245] : memref<12xi32, #tpu.memory_space<smem>>
    %946 = vector.broadcast %945 : i32 to vector<32x128xi32>
    %947 = arith.cmpi eq, %0, %946 : vector<32x128xi32>
    %c7_246 = arith.constant 7 : index
    %948 = memref.load %arg7[%c7_246] : memref<12xi32, #tpu.memory_space<smem>>
    %949 = vector.broadcast %948 : i32 to vector<32x128xi32>
    %950 = arith.cmpi eq, %1, %949 : vector<32x128xi32>
    %951 = arith.andi %947, %950 : vector<32x128xi1>
    %cst_247 = arith.constant -1.000000e+00 : f32
    %cst_248 = arith.constant 0.000000e+00 : f32
    %952 = vector.broadcast %cst_247 : f32 to vector<32x128xf32>
    %953 = vector.broadcast %cst_248 : f32 to vector<32x128xf32>
    %954 = arith.select %951, %952, %953 : vector<32x128xi1>, vector<32x128xf32>
    %955 = arith.addf %944, %954 : vector<32x128xf32>
    %c8_249 = arith.constant 8 : index
    %956 = memref.load %arg6[%c8_249] : memref<12xi32, #tpu.memory_space<smem>>
    %957 = vector.broadcast %956 : i32 to vector<32x128xi32>
    %958 = arith.cmpi eq, %0, %957 : vector<32x128xi32>
    %c8_250 = arith.constant 8 : index
    %959 = memref.load %arg7[%c8_250] : memref<12xi32, #tpu.memory_space<smem>>
    %960 = vector.broadcast %959 : i32 to vector<32x128xi32>
    %961 = arith.cmpi eq, %1, %960 : vector<32x128xi32>
    %962 = arith.andi %958, %961 : vector<32x128xi1>
    %cst_251 = arith.constant -1.000000e+00 : f32
    %cst_252 = arith.constant 0.000000e+00 : f32
    %963 = vector.broadcast %cst_251 : f32 to vector<32x128xf32>
    %964 = vector.broadcast %cst_252 : f32 to vector<32x128xf32>
    %965 = arith.select %962, %963, %964 : vector<32x128xi1>, vector<32x128xf32>
    %966 = arith.addf %955, %965 : vector<32x128xf32>
    %c9_253 = arith.constant 9 : index
    %967 = memref.load %arg6[%c9_253] : memref<12xi32, #tpu.memory_space<smem>>
    %968 = vector.broadcast %967 : i32 to vector<32x128xi32>
    %969 = arith.cmpi eq, %0, %968 : vector<32x128xi32>
    %c9_254 = arith.constant 9 : index
    %970 = memref.load %arg7[%c9_254] : memref<12xi32, #tpu.memory_space<smem>>
    %971 = vector.broadcast %970 : i32 to vector<32x128xi32>
    %972 = arith.cmpi eq, %1, %971 : vector<32x128xi32>
    %973 = arith.andi %969, %972 : vector<32x128xi1>
    %cst_255 = arith.constant -1.000000e+00 : f32
    %cst_256 = arith.constant 0.000000e+00 : f32
    %974 = vector.broadcast %cst_255 : f32 to vector<32x128xf32>
    %975 = vector.broadcast %cst_256 : f32 to vector<32x128xf32>
    %976 = arith.select %973, %974, %975 : vector<32x128xi1>, vector<32x128xf32>
    %977 = arith.addf %966, %976 : vector<32x128xf32>
    %c10_257 = arith.constant 10 : index
    %978 = memref.load %arg6[%c10_257] : memref<12xi32, #tpu.memory_space<smem>>
    %979 = vector.broadcast %978 : i32 to vector<32x128xi32>
    %980 = arith.cmpi eq, %0, %979 : vector<32x128xi32>
    %c10_258 = arith.constant 10 : index
    %981 = memref.load %arg7[%c10_258] : memref<12xi32, #tpu.memory_space<smem>>
    %982 = vector.broadcast %981 : i32 to vector<32x128xi32>
    %983 = arith.cmpi eq, %1, %982 : vector<32x128xi32>
    %984 = arith.andi %980, %983 : vector<32x128xi1>
    %cst_259 = arith.constant -1.000000e+00 : f32
    %cst_260 = arith.constant 0.000000e+00 : f32
    %985 = vector.broadcast %cst_259 : f32 to vector<32x128xf32>
    %986 = vector.broadcast %cst_260 : f32 to vector<32x128xf32>
    %987 = arith.select %984, %985, %986 : vector<32x128xi1>, vector<32x128xf32>
    %988 = arith.addf %977, %987 : vector<32x128xf32>
    %c11_261 = arith.constant 11 : index
    %989 = memref.load %arg6[%c11_261] : memref<12xi32, #tpu.memory_space<smem>>
    %990 = vector.broadcast %989 : i32 to vector<32x128xi32>
    %991 = arith.cmpi eq, %0, %990 : vector<32x128xi32>
    %c11_262 = arith.constant 11 : index
    %992 = memref.load %arg7[%c11_262] : memref<12xi32, #tpu.memory_space<smem>>
    %993 = vector.broadcast %992 : i32 to vector<32x128xi32>
    %994 = arith.cmpi eq, %1, %993 : vector<32x128xi32>
    %995 = arith.andi %991, %994 : vector<32x128xi1>
    %cst_263 = arith.constant -1.000000e+00 : f32
    %cst_264 = arith.constant 0.000000e+00 : f32
    %996 = vector.broadcast %cst_263 : f32 to vector<32x128xf32>
    %997 = vector.broadcast %cst_264 : f32 to vector<32x128xf32>
    %998 = arith.select %995, %996, %997 : vector<32x128xi1>, vector<32x128xf32>
    %999 = arith.addf %988, %998 : vector<32x128xf32>
    %c0_265 = arith.constant 0 : index
    %c0_266 = arith.constant 0 : index
    %1000 = vector.load %arg2[%c0_265, %c0_266] : memref<32x128xf32, #tpu.memory_space<vmem>>, vector<32x128xf32>
    %cst_267 = arith.constant 1.000000e+00 : f32
    %1001 = vector.broadcast %cst_267 : f32 to vector<32x128xf32>
    %1002 = arith.cmpf oeq, %1000, %1001 : vector<32x128xf32>
    %c0_268 = arith.constant 0 : index
    %c0_269 = arith.constant 0 : index
    %1003 = vector.load %arg1[%c0_268, %c0_269] : memref<32x128xf32, #tpu.memory_space<vmem>>, vector<32x128xf32>
    %cst_270 = arith.constant 1.000000e+00 : f32
    %1004 = vector.broadcast %cst_270 : f32 to vector<32x128xf32>
    %1005 = arith.cmpf oeq, %1003, %1004 : vector<32x128xf32>
    %1006 = arith.andi %1002, %1005 : vector<32x128xi1>
    %cst_271 = arith.constant 0.000000e+00 : f32
    %1007 = vector.broadcast %cst_271 : f32 to vector<32x128xf32>
    %1008 = arith.select %1006, %999, %1007 : vector<32x128xi1>, vector<32x128xf32>
    %1009 = arith.addf %866, %1008 : vector<32x128xf32>
    %c0_272 = arith.constant 0 : index
    %c0_273 = arith.constant 0 : index
    %1010 = vector.load %arg0[%c0_272, %c0_273] : memref<32x128xf32, #tpu.memory_space<vmem>>, vector<32x128xf32>
    %1011 = arith.mulf %1010, %1009 : vector<32x128xf32>
    %1012 = vector.shape_cast %1011 : vector<32x128xf32> to vector<1x32x128xf32>
    %cst_274 = arith.constant dense<0.000000e+00> : vector<1xf32>
    %1013 = vector.multi_reduction <add>, %1012, %cst_274 [1, 2] : vector<1x32x128xf32> to vector<1xf32>
    %1014 = vector.shape_cast %1013 : vector<1xf32> to vector<1x1x1xf32>
    %1015 = vector.extract %1014[0, 0, 0] : f32 from vector<1x1x1xf32>
    %cst_275 = arith.constant 0.000000e+00 : f32
    %1016 = arith.addf %1015, %cst_275 : f32
    %c0_276 = arith.constant 0 : index
    %1017 = memref.load %arg8[%c0_276] : memref<1xf32, #tpu.memory_space<smem>>
    memref.store %1016, %arg8[%c0_276] : memref<1xf32, #tpu.memory_space<smem>>
    return
  }
}

</mosaic_0001>

<llo_original>
// kernel: loss_forward.1
$region0: #{loss_forward.1}
  #allocation0 [shape = 'u32[]', space=smem, size = 0x4, offset = 0x4, fixed_abs, tag = 'smem constant byte address 0x4 - core index']
  #allocation1 [shape = 'u32[144,128]{1,0:T(1,128)}', space=vmem, size = 0x12000, scoped, tag = 'internal scratch']
  %s0 = inlined_call_operand.vmem [shape: f32[32,128], index: 0, kind: input, shape index: {}]
  %s1 = inlined_call_operand.vmem [shape: f32[32,128], index: 1, kind: input, shape index: {}]
  %s2 = inlined_call_operand.vmem [shape: f32[32,128], index: 2, kind: input, shape index: {}]
  %s3 = inlined_call_operand.vmem [shape: s32[72], index: 3, kind: input, shape index: {}]
  %s4 = inlined_call_operand.vmem [shape: s32[72], index: 4, kind: input, shape index: {}]
  %s5 = inlined_call_operand.vmem [shape: f32[72], index: 5, kind: input, shape index: {}]
  %s6 = inlined_call_operand.vmem [shape: s32[12], index: 6, kind: input, shape index: {}]
  %s7 = inlined_call_operand.vmem [shape: s32[12], index: 7, kind: input, shape index: {}]
  %s8 = inlined_call_operand.hbm [shape: f32[1], index: 8, kind: output, shape index: {}]
  %s9 = sld [smem:[#allocation0]]
  $region62: #{loss_forward.1} parent=0
    _
  %s11 = ssub.s32 1, %s9
  %s12 = scalar_select 0, %s11, %s9
  $region1: #{loss_forward.1} parent=0
    #allocation2 [shape = 'u8[512]{0}', space=smem, size = 0x200, scoped, tag = 'input window, operand 3, single buffered']
    #allocation3 [shape = 's32[1]{0}', space=sflag, size = 0x4, scoped, tag = 'scoped memory for loss_forward.1']
    #allocation4 [shape = 's32[1]{0}', space=sflag, size = 0x4, scoped, tag = 'scoped memory for loss_forward.1']
    #allocation5 [shape = 'u8[512]{0}', space=smem, size = 0x200, scoped, tag = 'input window, operand 4, single buffered']
    #allocation6 [shape = 's32[1]{0}', space=sflag, size = 0x4, scoped, tag = 'scoped memory for loss_forward.1']
    #allocation7 [shape = 'u8[512]{0}', space=smem, size = 0x200, scoped, tag = 'input window, operand 5, single buffered']
    #allocation8 [shape = 'u8[512]{0}', space=smem, size = 0x200, scoped, tag = 'input window, operand 6, single buffered']
    #allocation9 [shape = 's32[1]{0}', space=sflag, size = 0x4, scoped, tag = 'scoped memory for loss_forward.1']
    #allocation10 [shape = 'u8[512]{0}', space=smem, size = 0x200, scoped, tag = 'input window, operand 7, single buffered']
    #allocation11 [shape = 'u8[512]{0}', space=smem, size = 0x200, scoped, tag = 'output window, operand 0, single buffered']
    %13 = vsyncpa [#allocation4], 0
    %14 = vsyncpa [#allocation6], 0
    %15 = vsyncpa [#allocation9], 0
    %16 = vsyncpa [#allocation3], 0
    // Predicated region
    $region2: #{loss_forward.1} parent=1 // pred_check
      _
    $region3: #{loss_forward.1} parent=1 // pred_check_branch
      %18 = sbr.rel (0) target = $region5
    $region4: #{loss_forward.1} parent=1 // pred_region
      _
    $region5: #{loss_forward.1} parent=1 // pred_fallthru
      _
    // Predicated region
    $region6: #{loss_forward.1} parent=1 // pred_check
      _
    $region7: #{loss_forward.1} parent=1 // pred_check_branch
      %20 = sbr.rel (0) target = $region9
    $region8: #{loss_forward.1} parent=1 // pred_region
      _
    $region9: #{loss_forward.1} parent=1 // pred_fallthru
      _
    // Predicated region
    $region10: #{loss_forward.1} parent=1 // pred_check
      _
    $region11: #{loss_forward.1} parent=1 // pred_check_branch
      %22 = sbr.rel (0) target = $region13
    $region12: #{loss_forward.1} parent=1 // pred_region
      _
    $region13: #{loss_forward.1} parent=1 // pred_fallthru
      _
    // Predicated region
    $region14: #{loss_forward.1} parent=1 // pred_check
      _
    $region15: #{loss_forward.1} parent=1 // pred_check_branch
      %24 = sbr.rel (0) target = $region17
    $region16: #{loss_forward.1} parent=1 // pred_region
      %s26 = ssub.s32 16, 16
      %27 = vsyncadd [#allocation4], %s26
      %s29 = sshll.u32 %s3, 4
      %s30 = int_to_ptr.vmem [resolvable:$true] %s29
      %32 = dma.vmem_to_smem %s30, 16, [#allocation2], [#allocation4]
    $region17: #{loss_forward.1} parent=1 // pred_fallthru
      _
    // Predicated region
    $region18: #{loss_forward.1} parent=1 // pred_check
      _
    $region19: #{loss_forward.1} parent=1 // pred_check_branch
      %34 = sbr.rel (0) target = $region21
    $region20: #{loss_forward.1} parent=1 // pred_region
      %s36 = ssub.s32 16, 16
      %37 = vsyncadd [#allocation6], %s36
      %s39 = sshll.u32 %s4, 4
      %s40 = int_to_ptr.vmem [resolvable:$true] %s39
      %42 = dma.vmem_to_smem %s40, 16, [#allocation5], [#allocation6]
    $region21: #{loss_forward.1} parent=1 // pred_fallthru
      _
    // Predicated region
    $region22: #{loss_forward.1} parent=1 // pred_check
      _
    $region23: #{loss_forward.1} parent=1 // pred_check_branch
      %44 = sbr.rel (0) target = $region25
    $region24: #{loss_forward.1} parent=1 // pred_region
      %s46 = ssub.s32 16, 16
      %47 = vsyncadd [#allocation6], %s46
      %s49 = sshll.u32 %s5, 4
      %s50 = int_to_ptr.vmem [resolvable:$true] %s49
      %52 = dma.vmem_to_smem %s50, 16, [#allocation7], [#allocation6]
    $region25: #{loss_forward.1} parent=1 // pred_fallthru
      _
    // Predicated region
    $region26: #{loss_forward.1} parent=1 // pred_check
      _
    $region27: #{loss_forward.1} parent=1 // pred_check_branch
      %54 = sbr.rel (0) target = $region29
    $region28: #{loss_forward.1} parent=1 // pred_region
      %s56 = ssub.s32 16, 16
      %57 = vsyncadd [#allocation9], %s56
      %s59 = sshll.u32 %s6, 4
      %s60 = int_to_ptr.vmem [resolvable:$true] %s59
      %62 = dma.vmem_to_smem %s60, 16, [#allocation8], [#allocation9]
    $region29: #{loss_forward.1} parent=1 // pred_fallthru
      _
    // Predicated region
    $region30: #{loss_forward.1} parent=1 // pred_check
      _
    $region31: #{loss_forward.1} parent=1 // pred_check_branch
      %64 = sbr.rel (0) target = $region33
    $region32: #{loss_forward.1} parent=1 // pred_region
      %s66 = ssub.s32 16, 16
      %67 = vsyncadd [#allocation9], %s66
      %s69 = sshll.u32 %s7, 4
      %s70 = int_to_ptr.vmem [resolvable:$true] %s69
      %72 = dma.vmem_to_smem %s70, 16, [#allocation10], [#allocation9]
    $region33: #{loss_forward.1} parent=1 // pred_fallthru
      _
    // Predicated region
    $region34: #{loss_forward.1} parent=1 // pred_check
      _
    $region35: #{loss_forward.1} parent=1 // pred_check_branch
      %74 = sbr.rel (0) target = $region37
    $region36: #{loss_forward.1} parent=1 // pred_region
      %75 = dma.done [#allocation4], 16
    $region37: #{loss_forward.1} parent=1 // pred_fallthru
      _
    // Predicated region
    $region38: #{loss_forward.1} parent=1 // pred_check
      _
    $region39: #{loss_forward.1} parent=1 // pred_check_branch
      %77 = sbr.rel (0) target = $region41
    $region40: #{loss_forward.1} parent=1 // pred_region
      %78 = dma.done [#allocation6], 16
    $region41: #{loss_forward.1} parent=1 // pred_fallthru
      _
    // Predicated region
    $region42: #{loss_forward.1} parent=1 // pred_check
      _
    $region43: #{loss_forward.1} parent=1 // pred_check_branch
      %80 = sbr.rel (0) target = $region45
    $region44: #{loss_forward.1} parent=1 // pred_region
      %81 = dma.done [#allocation6], 16
    $region45: #{loss_forward.1} parent=1 // pred_fallthru
      _
    // Predicated region
    $region46: #{loss_forward.1} parent=1 // pred_check
      _
    $region47: #{loss_forward.1} parent=1 // pred_check_branch
      %83 = sbr.rel (0) target = $region49
    $region48: #{loss_forward.1} parent=1 // pred_region
      %84 = dma.done [#allocation9], 16
    $region49: #{loss_forward.1} parent=1 // pred_fallthru
      _
    // Predicated region
    $region50: #{loss_forward.1} parent=1 // pred_check
      _
    $region51: #{loss_forward.1} parent=1 // pred_check_branch
      %86 = sbr.rel (0) target = $region53
    $region52: #{loss_forward.1} parent=1 // pred_region
      %87 = dma.done [#allocation9], 16
    $region53: #{loss_forward.1} parent=1 // pred_fallthru
      _
    %88 = sfence
    %v89 = vlaneseq
    %v90 = vshrl.u32 %v89, 7
    %v91 = vadd.s32 %v90, 8
    %v92 = vadd.s32 %v90, 16
    %v93 = vadd.s32 %v90, 24
    %v94 = vlaneseq
    %v95 = vand.u32 %v94, 127
    %s96 = sld [smem:[#allocation2]]
    %v97 = vstv %s96
    %vm98 = vcmp.eq.s32.totalorder %v90, %v97
    %vm99 = vcmp.eq.s32.totalorder %v91, %v97
    %vm100 = vcmp.eq.s32.totalorder %v92, %v97
    %vm101 = vcmp.eq.s32.totalorder %v93, %v97
    %s102 = sld [smem:[#allocation5]]
    %v103 = vstv %s102
    %vm104 = vcmp.eq.s32.totalorder %v95, %v103
    %vm105 = vmand %vm98, %vm104
    %vm106 = vmand %vm99, %vm104
    %vm107 = vmand %vm100, %vm104
    %vm108 = vmand %vm101, %vm104
    %s109 = sld [smem:[#allocation7]]
    %v110 = vstv %s109
    %v111 = vsel %vm105, %v110, 0.0
    %v112 = vsel %vm106, %v110, 0.0
    %v113 = vsel %vm107, %v110, 0.0
    %v114 = vsel %vm108, %v110, 0.0
    %v115 = vadd.f32 %v111, 0.0
    %v116 = vadd.f32 %v112, 0.0
    %v117 = vadd.f32 %v113, 0.0
    %v118 = vadd.f32 %v114, 0.0
    %s119 = sld [smem:[#allocation2 + $0x1]]
    %v120 = vstv %s119
    %vm121 = vcmp.eq.s32.totalorder %v90, %v120
    %vm122 = vcmp.eq.s32.totalorder %v91, %v120
    %vm123 = vcmp.eq.s32.totalorder %v92, %v120
    %vm124 = vcmp.eq.s32.totalorder %v93, %v120
    %s125 = sld [smem:[#allocation5 + $0x1]]
    %v126 = vstv %s125
    %vm127 = vcmp.eq.s32.totalorder %v95, %v126
    %vm128 = vmand %vm121, %vm127
    %vm129 = vmand %vm122, %vm127
    %vm130 = vmand %vm123, %vm127
    %vm131 = vmand %vm124, %vm127
    %s132 = sld [smem:[#allocation7 + $0x1]]
    %v133 = vstv %s132
    %v134 = vsel %vm128, %v133, 0.0
    %v135 = vsel %vm129, %v133, 0.0
    %v136 = vsel %vm130, %v133, 0.0
    %v137 = vsel %vm131, %v133, 0.0
    %v138 = vadd.f32 %v115, %v134
    %v139 = vadd.f32 %v116, %v135
    %v140 = vadd.f32 %v117, %v136
    %v141 = vadd.f32 %v118, %v137
    %s142 = sld [smem:[#allocation2 + $0x2]]
    %v143 = vstv %s142
    %vm144 = vcmp.eq.s32.totalorder %v90, %v143
    %vm145 = vcmp.eq.s32.totalorder %v91, %v143
    %vm146 = vcmp.eq.s32.totalorder %v92, %v143
    %vm147 = vcmp.eq.s32.totalorder %v93, %v143
    %s148 = sld [smem:[#allocation5 + $0x2]]
    %v149 = vstv %s148
    %vm150 = vcmp.eq.s32.totalorder %v95, %v149
    %vm151 = vmand %vm144, %vm150
    %vm152 = vmand %vm145, %vm150
    %vm153 = vmand %vm146, %vm150
    %vm154 = vmand %vm147, %vm150
    %s155 = sld [smem:[#allocation7 + $0x2]]
    %v156 = vstv %s155
    %v157 = vsel %vm151, %v156, 0.0
    %v158 = vsel %vm152, %v156, 0.0
    %v159 = vsel %vm153, %v156, 0.0
    %v160 = vsel %vm154, %v156, 0.0
    %v161 = vadd.f32 %v138, %v157
    %v162 = vadd.f32 %v139, %v158
    %v163 = vadd.f32 %v140, %v159
    %v164 = vadd.f32 %v141, %v160
    %s165 = sld [smem:[#allocation2 + $0x3]]
    %v166 = vstv %s165
    %vm167 = vcmp.eq.s32.totalorder %v90, %v166
    %vm168 = vcmp.eq.s32.totalorder %v91, %v166
    %vm169 = vcmp.eq.s32.totalorder %v92, %v166
    %vm170 = vcmp.eq.s32.totalorder %v93, %v166
    %s171 = sld [smem:[#allocation5 + $0x3]]
    %v172 = vstv %s171
    %vm173 = vcmp.eq.s32.totalorder %v95, %v172
    %vm174 = vmand %vm167, %vm173
    %vm175 = vmand %vm168, %vm173
    %vm176 = vmand %vm169, %vm173
    %vm177 = vmand %vm170, %vm173
    %s178 = sld [smem:[#allocation7 + $0x3]]
    %v179 = vstv %s178
    %v180 = vsel %vm174, %v179, 0.0
    %v181 = vsel %vm175, %v179, 0.0
    %v182 = vsel %vm176, %v179, 0.0
    %v183 = vsel %vm177, %v179, 0.0
    %v184 = vadd.f32 %v161, %v180
    %v185 = vadd.f32 %v162, %v181
    %v186 = vadd.f32 %v163, %v182
    %v187 = vadd.f32 %v164, %v183
    %s188 = sld [smem:[#allocation2 + $0x4]]
    %v189 = vstv %s188
    %vm190 = vcmp.eq.s32.totalorder %v90, %v189
    %vm191 = vcmp.eq.s32.totalorder %v91, %v189
    %vm192 = vcmp.eq.s32.totalorder %v92, %v189
    %vm193 = vcmp.eq.s32.totalorder %v93, %v189
    %s194 = sld [smem:[#allocation5 + $0x4]]
    %v195 = vstv %s194
    %vm196 = vcmp.eq.s32.totalorder %v95, %v195
    %vm197 = vmand %vm190, %vm196
    %vm198 = vmand %vm191, %vm196
    %vm199 = vmand %vm192, %vm196
    %vm200 = vmand %vm193, %vm196
    %s201 = sld [smem:[#allocation7 + $0x4]]
    %v202 = vstv %s201
    %v203 = vsel %vm197, %v202, 0.0
    %v204 = vsel %vm198, %v202, 0.0
    %v205 = vsel %vm199, %v202, 0.0
    %v206 = vsel %vm200, %v202, 0.0
    %v207 = vadd.f32 %v184, %v203
    %v208 = vadd.f32 %v185, %v204
    %v209 = vadd.f32 %v186, %v205
    %v210 = vadd.f32 %v187, %v206
    %s211 = sld [smem:[#allocation2 + $0x5]]
    %v212 = vstv %s211
    %vm213 = vcmp.eq.s32.totalorder %v90, %v212
    %vm214 = vcmp.eq.s32.totalorder %v91, %v212
    %vm215 = vcmp.eq.s32.totalorder %v92, %v212
    %vm216 = vcmp.eq.s32.totalorder %v93, %v212
    %s217 = sld [smem:[#allocation5 + $0x5]]
    %v218 = vstv %s217
    %vm219 = vcmp.eq.s32.totalorder %v95, %v218
    %vm220 = vmand %vm213, %vm219
    %vm221 = vmand %vm214, %vm219
    %vm222 = vmand %vm215, %vm219
    %vm223 = vmand %vm216, %vm219
    %s224 = sld [smem:[#allocation7 + $0x5]]
    %v225 = vstv %s224
    %v226 = vsel %vm220, %v225, 0.0
    %v227 = vsel %vm221, %v225, 0.0
    %v228 = vsel %vm222, %v225, 0.0
    %v229 = vsel %vm223, %v225, 0.0
    %v230 = vadd.f32 %v207, %v226
    %v231 = vadd.f32 %v208, %v227
    %v232 = vadd.f32 %v209, %v228
    %v233 = vadd.f32 %v210, %v229
    %s234 = sld [smem:[#allocation2 + $0x6]]
    %v235 = vstv %s234
    %vm236 = vcmp.eq.s32.totalorder %v90, %v235
    %vm237 = vcmp.eq.s32.totalorder %v91, %v235
    %vm238 = vcmp.eq.s32.totalorder %v92, %v235
    %vm239 = vcmp.eq.s32.totalorder %v93, %v235
    %s240 = sld [smem:[#allocation5 + $0x6]]
    %v241 = vstv %s240
    %vm242 = vcmp.eq.s32.totalorder %v95, %v241
    %vm243 = vmand %vm236, %vm242
    %vm244 = vmand %vm237, %vm242
    %vm245 = vmand %vm238, %vm242
    %vm246 = vmand %vm239, %vm242
    %s247 = sld [smem:[#allocation7 + $0x6]]
    %v248 = vstv %s247
    %v249 = vsel %vm243, %v248, 0.0
    %v250 = vsel %vm244, %v248, 0.0
    %v251 = vsel %vm245, %v248, 0.0
    %v252 = vsel %vm246, %v248, 0.0
    %v253 = vadd.f32 %v230, %v249
    %v254 = vadd.f32 %v231, %v250
    %v255 = vadd.f32 %v232, %v251
    %v256 = vadd.f32 %v233, %v252
    %s257 = sld [smem:[#allocation2 + $0x7]]
    %v258 = vstv %s257
    %vm259 = vcmp.eq.s32.totalorder %v90, %v258
    %vm260 = vcmp.eq.s32.totalorder %v91, %v258
    %vm261 = vcmp.eq.s32.totalorder %v92, %v258
    %vm262 = vcmp.eq.s32.totalorder %v93, %v258
    %s263 = sld [smem:[#allocation5 + $0x7]]
    %v264 = vstv %s263
    %vm265 = vcmp.eq.s32.totalorder %v95, %v264
    %vm266 = vmand %vm259, %vm265
    %vm267 = vmand %vm260, %vm265
    %vm268 = vmand %vm261, %vm265
    %vm269 = vmand %vm262, %vm265
    %s270 = sld [smem:[#allocation7 + $0x7]]
    %v271 = vstv %s270
    %v272 = vsel %vm266, %v271, 0.0
    %v273 = vsel %vm267, %v271, 0.0
    %v274 = vsel %vm268, %v271, 0.0
    %v275 = vsel %vm269, %v271, 0.0
    %v276 = vadd.f32 %v253, %v272
    %v277 = vadd.f32 %v254, %v273
    %v278 = vadd.f32 %v255, %v274
    %v279 = vadd.f32 %v256, %v275
    %s280 = sld [smem:[#allocation2 + $0x8]]
    %v281 = vstv %s280
    %vm282 = vcmp.eq.s32.totalorder %v90, %v281
    %vm283 = vcmp.eq.s32.totalorder %v91, %v281
    %vm284 = vcmp.eq.s32.totalorder %v92, %v281
    %vm285 = vcmp.eq.s32.totalorder %v93, %v281
    %s286 = sld [smem:[#allocation5 + $0x8]]
    %v287 = vstv %s286
    %vm288 = vcmp.eq.s32.totalorder %v95, %v287
    %vm289 = vmand %vm282, %vm288
    %vm290 = vmand %vm283, %vm288
    %vm291 = vmand %vm284, %vm288
    %vm292 = vmand %vm285, %vm288
    %s293 = sld [smem:[#allocation7 + $0x8]]
    %v294 = vstv %s293
    %v295 = vsel %vm289, %v294, 0.0
    %v296 = vsel %vm290, %v294, 0.0
    %v297 = vsel %vm291, %v294, 0.0
    %v298 = vsel %vm292, %v294, 0.0
    %v299 = vadd.f32 %v276, %v295
    %v300 = vadd.f32 %v277, %v296
    %v301 = vadd.f32 %v278, %v297
    %v302 = vadd.f32 %v279, %v298
    %s303 = sld [smem:[#allocation2 + $0x9]]
    %v304 = vstv %s303
    %vm305 = vcmp.eq.s32.totalorder %v90, %v304
    %vm306 = vcmp.eq.s32.totalorder %v91, %v304
    %vm307 = vcmp.eq.s32.totalorder %v92, %v304
    %vm308 = vcmp.eq.s32.totalorder %v93, %v304
    %s309 = sld [smem:[#allocation5 + $0x9]]
    %v310 = vstv %s309
    %vm311 = vcmp.eq.s32.totalorder %v95, %v310
    %vm312 = vmand %vm305, %vm311
    %vm313 = vmand %vm306, %vm311
    %vm314 = vmand %vm307, %vm311
    %vm315 = vmand %vm308, %vm311
    %s316 = sld [smem:[#allocation7 + $0x9]]
    %v317 = vstv %s316
    %v318 = vsel %vm312, %v317, 0.0
    %v319 = vsel %vm313, %v317, 0.0
    %v320 = vsel %vm314, %v317, 0.0
    %v321 = vsel %vm315, %v317, 0.0
    %v322 = vadd.f32 %v299, %v318
    %v323 = vadd.f32 %v300, %v319
    %v324 = vadd.f32 %v301, %v320
    %v325 = vadd.f32 %v302, %v321
    %s326 = sld [smem:[#allocation2 + $0xa]]
    %v327 = vstv %s326
    %vm328 = vcmp.eq.s32.totalorder %v90, %v327
    %vm329 = vcmp.eq.s32.totalorder %v91, %v327
    %vm330 = vcmp.eq.s32.totalorder %v92, %v327
    %vm331 = vcmp.eq.s32.totalorder %v93, %v327
    %s332 = sld [smem:[#allocation5 + $0xa]]
    %v333 = vstv %s332
    %vm334 = vcmp.eq.s32.totalorder %v95, %v333
    %vm335 = vmand %vm328, %vm334
    %vm336 = vmand %vm329, %vm334
    %vm337 = vmand %vm330, %vm334
    %vm338 = vmand %vm331, %vm334
    %s339 = sld [smem:[#allocation7 + $0xa]]
    %v340 = vstv %s339
    %v341 = vsel %vm335, %v340, 0.0
    %v342 = vsel %vm336, %v340, 0.0
    %v343 = vsel %vm337, %v340, 0.0
    %v344 = vsel %vm338, %v340, 0.0
    %v345 = vadd.f32 %v322, %v341
    %v346 = vadd.f32 %v323, %v342
    %v347 = vadd.f32 %v324, %v343
    %v348 = vadd.f32 %v325, %v344
    %s349 = sld [smem:[#allocation2 + $0xb]]
    %v350 = vstv %s349
    %vm351 = vcmp.eq.s32.totalorder %v90, %v350
    %vm352 = vcmp.eq.s32.totalorder %v91, %v350
    %vm353 = vcmp.eq.s32.totalorder %v92, %v350
    %vm354 = vcmp.eq.s32.totalorder %v93, %v350
    %s355 = sld [smem:[#allocation5 + $0xb]]
    %v356 = vstv %s355
    %vm357 = vcmp.eq.s32.totalorder %v95, %v356
    %vm358 = vmand %vm351, %vm357
    %vm359 = vmand %vm352, %vm357
    %vm360 = vmand %vm353, %vm357
    %vm361 = vmand %vm354, %vm357
    %s362 = sld [smem:[#allocation7 + $0xb]]
    %v363 = vstv %s362
    %v364 = vsel %vm358, %v363, 0.0
    %v365 = vsel %vm359, %v363, 0.0
    %v366 = vsel %vm360, %v363, 0.0
    %v367 = vsel %vm361, %v363, 0.0
    %v368 = vadd.f32 %v345, %v364
    %v369 = vadd.f32 %v346, %v365
    %v370 = vadd.f32 %v347, %v366
    %v371 = vadd.f32 %v348, %v367
    %s372 = sld [smem:[#allocation2 + $0xc]]
    %v373 = vstv %s372
    %vm374 = vcmp.eq.s32.totalorder %v90, %v373
    %vm375 = vcmp.eq.s32.totalorder %v91, %v373
    %vm376 = vcmp.eq.s32.totalorder %v92, %v373
    %vm377 = vcmp.eq.s32.totalorder %v93, %v373
    %s378 = sld [smem:[#allocation5 + $0xc]]
    %v379 = vstv %s378
    %vm380 = vcmp.eq.s32.totalorder %v95, %v379
    %vm381 = vmand %vm374, %vm380
    %vm382 = vmand %vm375, %vm380
    %vm383 = vmand %vm376, %vm380
    %vm384 = vmand %vm377, %vm380
    %s385 = sld [smem:[#allocation7 + $0xc]]
    %v386 = vstv %s385
    %v387 = vsel %vm381, %v386, 0.0
    %v388 = vsel %vm382, %v386, 0.0
    %v389 = vsel %vm383, %v386, 0.0
    %v390 = vsel %vm384, %v386, 0.0
    %v391 = vadd.f32 %v368, %v387
    %v392 = vadd.f32 %v369, %v388
    %v393 = vadd.f32 %v370, %v389
    %v394 = vadd.f32 %v371, %v390
    %s395 = sld [smem:[#allocation2 + $0xd]]
    %v396 = vstv %s395
    %vm397 = vcmp.eq.s32.totalorder %v90, %v396
    %vm398 = vcmp.eq.s32.totalorder %v91, %v396
    %vm399 = vcmp.eq.s32.totalorder %v92, %v396
    %vm400 = vcmp.eq.s32.totalorder %v93, %v396
    %s401 = sld [smem:[#allocation5 + $0xd]]
    %v402 = vstv %s401
    %vm403 = vcmp.eq.s32.totalorder %v95, %v402
    %vm404 = vmand %vm397, %vm403
    %vm405 = vmand %vm398, %vm403
    %vm406 = vmand %vm399, %vm403
    %vm407 = vmand %vm400, %vm403
    %s408 = sld [smem:[#allocation7 + $0xd]]
    %v409 = vstv %s408
    %v410 = vsel %vm404, %v409, 0.0
    %v411 = vsel %vm405, %v409, 0.0
    %v412 = vsel %vm406, %v409, 0.0
    %v413 = vsel %vm407, %v409, 0.0
    %v414 = vadd.f32 %v391, %v410
    %v415 = vadd.f32 %v392, %v411
    %v416 = vadd.f32 %v393, %v412
    %v417 = vadd.f32 %v394, %v413
    %s418 = sld [smem:[#allocation2 + $0xe]]
    %v419 = vstv %s418
    %vm420 = vcmp.eq.s32.totalorder %v90, %v419
    %vm421 = vcmp.eq.s32.totalorder %v91, %v419
    %vm422 = vcmp.eq.s32.totalorder %v92, %v419
    %vm423 = vcmp.eq.s32.totalorder %v93, %v419
    %s424 = sld [smem:[#allocation5 + $0xe]]
    %v425 = vstv %s424
    %vm426 = vcmp.eq.s32.totalorder %v95, %v425
    %vm427 = vmand %vm420, %vm426
    %vm428 = vmand %vm421, %vm426
    %vm429 = vmand %vm422, %vm426
    %vm430 = vmand %vm423, %vm426
    %s431 = sld [smem:[#allocation7 + $0xe]]
    %v432 = vstv %s431
    %v433 = vsel %vm427, %v432, 0.0
    %v434 = vsel %vm428, %v432, 0.0
    %v435 = vsel %vm429, %v432, 0.0
    %v436 = vsel %vm430, %v432, 0.0
    %v437 = vadd.f32 %v414, %v433
    %v438 = vadd.f32 %v415, %v434
    %v439 = vadd.f32 %v416, %v435
    %v440 = vadd.f32 %v417, %v436
    %s441 = sld [smem:[#allocation2 + $0xf]]
    %v442 = vstv %s441
    %vm443 = vcmp.eq.s32.totalorder %v90, %v442
    %vm444 = vcmp.eq.s32.totalorder %v91, %v442
    %vm445 = vcmp.eq.s32.totalorder %v92, %v442
    %vm446 = vcmp.eq.s32.totalorder %v93, %v442
    %s447 = sld [smem:[#allocation5 + $0xf]]
    %v448 = vstv %s447
    %vm449 = vcmp.eq.s32.totalorder %v95, %v448
    %vm450 = vmand %vm443, %vm449
    %vm451 = vmand %vm444, %vm449
    %vm452 = vmand %vm445, %vm449
    %vm453 = vmand %vm446, %vm449
    %s454 = sld [smem:[#allocation7 + $0xf]]
    %v455 = vstv %s454
    %v456 = vsel %vm450, %v455, 0.0
    %v457 = vsel %vm451, %v455, 0.0
    %v458 = vsel %vm452, %v455, 0.0
    %v459 = vsel %vm453, %v455, 0.0
    %v460 = vadd.f32 %v437, %v456
    %v461 = vadd.f32 %v438, %v457
    %v462 = vadd.f32 %v439, %v458
    %v463 = vadd.f32 %v440, %v459
    %s464 = sld [smem:[#allocation2 + $0x10]]
    %v465 = vstv %s464
    %vm466 = vcmp.eq.s32.totalorder %v90, %v465
    %vm467 = vcmp.eq.s32.totalorder %v91, %v465
    %vm468 = vcmp.eq.s32.totalorder %v92, %v465
    %vm469 = vcmp.eq.s32.totalorder %v93, %v465
    %s470 = sld [smem:[#allocation5 + $0x10]]
    %v471 = vstv %s470
    %vm472 = vcmp.eq.s32.totalorder %v95, %v471
    %vm473 = vmand %vm466, %vm472
    %vm474 = vmand %vm467, %vm472
    %vm475 = vmand %vm468, %vm472
    %vm476 = vmand %vm469, %vm472
    %s477 = sld [smem:[#allocation7 + $0x10]]
    %v478 = vstv %s477
    %v479 = vsel %vm473, %v478, 0.0
    %v480 = vsel %vm474, %v478, 0.0
    %v481 = vsel %vm475, %v478, 0.0
    %v482 = vsel %vm476, %v478, 0.0
    %v483 = vadd.f32 %v460, %v479
    %v484 = vadd.f32 %v461, %v480
    %v485 = vadd.f32 %v462, %v481
    %v486 = vadd.f32 %v463, %v482
    %s487 = sld [smem:[#allocation2 + $0x11]]
    %v488 = vstv %s487
    %vm489 = vcmp.eq.s32.totalorder %v90, %v488
    %vm490 = vcmp.eq.s32.totalorder %v91, %v488
    %vm491 = vcmp.eq.s32.totalorder %v92, %v488
    %vm492 = vcmp.eq.s32.totalorder %v93, %v488
    %s493 = sld [smem:[#allocation5 + $0x11]]
    %v494 = vstv %s493
    %vm495 = vcmp.eq.s32.totalorder %v95, %v494
    %vm496 = vmand %vm489, %vm495
    %vm497 = vmand %vm490, %vm495
    %vm498 = vmand %vm491, %vm495
    %vm499 = vmand %vm492, %vm495
    %s500 = sld [smem:[#allocation7 + $0x11]]
    %v501 = vstv %s500
    %v502 = vsel %vm496, %v501, 0.0
    %v503 = vsel %vm497, %v501, 0.0
    %v504 = vsel %vm498, %v501, 0.0
    %v505 = vsel %vm499, %v501, 0.0
    %v506 = vadd.f32 %v483, %v502
    %v507 = vadd.f32 %v484, %v503
    %v508 = vadd.f32 %v485, %v504
    %v509 = vadd.f32 %v486, %v505
    %s510 = sld [smem:[#allocation2 + $0x12]]
    %v511 = vstv %s510
    %vm512 = vcmp.eq.s32.totalorder %v90, %v511
    %vm513 = vcmp.eq.s32.totalorder %v91, %v511
    %vm514 = vcmp.eq.s32.totalorder %v92, %v511
    %vm515 = vcmp.eq.s32.totalorder %v93, %v511
    %s516 = sld [smem:[#allocation5 + $0x12]]
    %v517 = vstv %s516
    %vm518 = vcmp.eq.s32.totalorder %v95, %v517
    %vm519 = vmand %vm512, %vm518
    %vm520 = vmand %vm513, %vm518
    %vm521 = vmand %vm514, %vm518
    %vm522 = vmand %vm515, %vm518
    %s523 = sld [smem:[#allocation7 + $0x12]]
    %v524 = vstv %s523
    %v525 = vsel %vm519, %v524, 0.0
    %v526 = vsel %vm520, %v524, 0.0
    %v527 = vsel %vm521, %v524, 0.0
    %v528 = vsel %vm522, %v524, 0.0
    %v529 = vadd.f32 %v506, %v525
    %v530 = vadd.f32 %v507, %v526
    %v531 = vadd.f32 %v508, %v527
    %v532 = vadd.f32 %v509, %v528
    %s533 = sld [smem:[#allocation2 + $0x13]]
    %v534 = vstv %s533
    %vm535 = vcmp.eq.s32.totalorder %v90, %v534
    %vm536 = vcmp.eq.s32.totalorder %v91, %v534
    %vm537 = vcmp.eq.s32.totalorder %v92, %v534
    %vm538 = vcmp.eq.s32.totalorder %v93, %v534
    %s539 = sld [smem:[#allocation5 + $0x13]]
    %v540 = vstv %s539
    %vm541 = vcmp.eq.s32.totalorder %v95, %v540
    %vm542 = vmand %vm535, %vm541
    %vm543 = vmand %vm536, %vm541
    %vm544 = vmand %vm537, %vm541
    %vm545 = vmand %vm538, %vm541
    %s546 = sld [smem:[#allocation7 + $0x13]]
    %v547 = vstv %s546
    %v548 = vsel %vm542, %v547, 0.0
    %v549 = vsel %vm543, %v547, 0.0
    %v550 = vsel %vm544, %v547, 0.0
    %v551 = vsel %vm545, %v547, 0.0
    %v552 = vadd.f32 %v529, %v548
    %v553 = vadd.f32 %v530, %v549
    %v554 = vadd.f32 %v531, %v550
    %v555 = vadd.f32 %v532, %v551
    %s556 = sld [smem:[#allocation2 + $0x14]]
    %v557 = vstv %s556
    %vm558 = vcmp.eq.s32.totalorder %v90, %v557
    %vm559 = vcmp.eq.s32.totalorder %v91, %v557
    %vm560 = vcmp.eq.s32.totalorder %v92, %v557
    %vm561 = vcmp.eq.s32.totalorder %v93, %v557
    %s562 = sld [smem:[#allocation5 + $0x14]]
    %v563 = vstv %s562
    %vm564 = vcmp.eq.s32.totalorder %v95, %v563
    %vm565 = vmand %vm558, %vm564
    %vm566 = vmand %vm559, %vm564
    %vm567 = vmand %vm560, %vm564
    %vm568 = vmand %vm561, %vm564
    %s569 = sld [smem:[#allocation7 + $0x14]]
    %v570 = vstv %s569
    %v571 = vsel %vm565, %v570, 0.0
    %v572 = vsel %vm566, %v570, 0.0
    %v573 = vsel %vm567, %v570, 0.0
    %v574 = vsel %vm568, %v570, 0.0
    %v575 = vadd.f32 %v552, %v571
    %v576 = vadd.f32 %v553, %v572
    %v577 = vadd.f32 %v554, %v573
    %v578 = vadd.f32 %v555, %v574
    %s579 = sld [smem:[#allocation2 + $0x15]]
    %v580 = vstv %s579
    %vm581 = vcmp.eq.s32.totalorder %v90, %v580
    %vm582 = vcmp.eq.s32.totalorder %v91, %v580
    %vm583 = vcmp.eq.s32.totalorder %v92, %v580
    %vm584 = vcmp.eq.s32.totalorder %v93, %v580
    %s585 = sld [smem:[#allocation5 + $0x15]]
    %v586 = vstv %s585
    %vm587 = vcmp.eq.s32.totalorder %v95, %v586
    %vm588 = vmand %vm581, %vm587
    %vm589 = vmand %vm582, %vm587
    %vm590 = vmand %vm583, %vm587
    %vm591 = vmand %vm584, %vm587
    %s592 = sld [smem:[#allocation7 + $0x15]]
    %v593 = vstv %s592
    %v594 = vsel %vm588, %v593, 0.0
    %v595 = vsel %vm589, %v593, 0.0
    %v596 = vsel %vm590, %v593, 0.0
    %v597 = vsel %vm591, %v593, 0.0
    %v598 = vadd.f32 %v575, %v594
    %v599 = vadd.f32 %v576, %v595
    %v600 = vadd.f32 %v577, %v596
    %v601 = vadd.f32 %v578, %v597
    %s602 = sld [smem:[#allocation2 + $0x16]]
    %v603 = vstv %s602
    %vm604 = vcmp.eq.s32.totalorder %v90, %v603
    %vm605 = vcmp.eq.s32.totalorder %v91, %v603
    %vm606 = vcmp.eq.s32.totalorder %v92, %v603
    %vm607 = vcmp.eq.s32.totalorder %v93, %v603
    %s608 = sld [smem:[#allocation5 + $0x16]]
    %v609 = vstv %s608
    %vm610 = vcmp.eq.s32.totalorder %v95, %v609
    %vm611 = vmand %vm604, %vm610
    %vm612 = vmand %vm605, %vm610
    %vm613 = vmand %vm606, %vm610
    %vm614 = vmand %vm607, %vm610
    %s615 = sld [smem:[#allocation7 + $0x16]]
    %v616 = vstv %s615
    %v617 = vsel %vm611, %v616, 0.0
    %v618 = vsel %vm612, %v616, 0.0
    %v619 = vsel %vm613, %v616, 0.0
    %v620 = vsel %vm614, %v616, 0.0
    %v621 = vadd.f32 %v598, %v617
    %v622 = vadd.f32 %v599, %v618
    %v623 = vadd.f32 %v600, %v619
    %v624 = vadd.f32 %v601, %v620
    %s625 = sld [smem:[#allocation2 + $0x17]]
    %v626 = vstv %s625
    %vm627 = vcmp.eq.s32.totalorder %v90, %v626
    %vm628 = vcmp.eq.s32.totalorder %v91, %v626
    %vm629 = vcmp.eq.s32.totalorder %v92, %v626
    %vm630 = vcmp.eq.s32.totalorder %v93, %v626
    %s631 = sld [smem:[#allocation5 + $0x17]]
    %v632 = vstv %s631
    %vm633 = vcmp.eq.s32.totalorder %v95, %v632
    %vm634 = vmand %vm627, %vm633
    %vm635 = vmand %vm628, %vm633
    %vm636 = vmand %vm629, %vm633
    %vm637 = vmand %vm630, %vm633
    %s638 = sld [smem:[#allocation7 + $0x17]]
    %v639 = vstv %s638
    %v640 = vsel %vm634, %v639, 0.0
    %v641 = vsel %vm635, %v639, 0.0
    %v642 = vsel %vm636, %v639, 0.0
    %v643 = vsel %vm637, %v639, 0.0
    %v644 = vadd.f32 %v621, %v640
    %v645 = vadd.f32 %v622, %v641
    %v646 = vadd.f32 %v623, %v642
    %v647 = vadd.f32 %v624, %v643
    %s648 = sld [smem:[#allocation2 + $0x18]]
    %v649 = vstv %s648
    %vm650 = vcmp.eq.s32.totalorder %v90, %v649
    %vm651 = vcmp.eq.s32.totalorder %v91, %v649
    %vm652 = vcmp.eq.s32.totalorder %v92, %v649
    %vm653 = vcmp.eq.s32.totalorder %v93, %v649
    %s654 = sld [smem:[#allocation5 + $0x18]]
    %v655 = vstv %s654
    %vm656 = vcmp.eq.s32.totalorder %v95, %v655
    %vm657 = vmand %vm650, %vm656
    %vm658 = vmand %vm651, %vm656
    %vm659 = vmand %vm652, %vm656
    %vm660 = vmand %vm653, %vm656
    %s661 = sld [smem:[#allocation7 + $0x18]]
    %v662 = vstv %s661
    %v663 = vsel %vm657, %v662, 0.0
    %v664 = vsel %vm658, %v662, 0.0
    %v665 = vsel %vm659, %v662, 0.0
    %v666 = vsel %vm660, %v662, 0.0
    %v667 = vadd.f32 %v644, %v663
    %v668 = vadd.f32 %v645, %v664
    %v669 = vadd.f32 %v646, %v665
    %v670 = vadd.f32 %v647, %v666
    %s671 = sld [smem:[#allocation2 + $0x19]]
    %v672 = vstv %s671
    %vm673 = vcmp.eq.s32.totalorder %v90, %v672
    %vm674 = vcmp.eq.s32.totalorder %v91, %v672
    %vm675 = vcmp.eq.s32.totalorder %v92, %v672
    %vm676 = vcmp.eq.s32.totalorder %v93, %v672
    %s677 = sld [smem:[#allocation5 + $0x19]]
    %v678 = vstv %s677
    %vm679 = vcmp.eq.s32.totalorder %v95, %v678
    %vm680 = vmand %vm673, %vm679
    %vm681 = vmand %vm674, %vm679
    %vm682 = vmand %vm675, %vm679
    %vm683 = vmand %vm676, %vm679
    %s684 = sld [smem:[#allocation7 + $0x19]]
    %v685 = vstv %s684
    %v686 = vsel %vm680, %v685, 0.0
    %v687 = vsel %vm681, %v685, 0.0
    %v688 = vsel %vm682, %v685, 0.0
    %v689 = vsel %vm683, %v685, 0.0
    %v690 = vadd.f32 %v667, %v686
    %v691 = vadd.f32 %v668, %v687
    %v692 = vadd.f32 %v669, %v688
    %v693 = vadd.f32 %v670, %v689
    %s694 = sld [smem:[#allocation2 + $0x1a]]
    %v695 = vstv %s694
    %vm696 = vcmp.eq.s32.totalorder %v90, %v695
    %vm697 = vcmp.eq.s32.totalorder %v91, %v695
    %vm698 = vcmp.eq.s32.totalorder %v92, %v695
    %vm699 = vcmp.eq.s32.totalorder %v93, %v695
    %s700 = sld [smem:[#allocation5 + $0x1a]]
    %v701 = vstv %s700
    %vm702 = vcmp.eq.s32.totalorder %v95, %v701
    %vm703 = vmand %vm696, %vm702
    %vm704 = vmand %vm697, %vm702
    %vm705 = vmand %vm698, %vm702
    %vm706 = vmand %vm699, %vm702
    %s707 = sld [smem:[#allocation7 + $0x1a]]
    %v708 = vstv %s707
    %v709 = vsel %vm703, %v708, 0.0
    %v710 = vsel %vm704, %v708, 0.0
    %v711 = vsel %vm705, %v708, 0.0
    %v712 = vsel %vm706, %v708, 0.0
    %v713 = vadd.f32 %v690, %v709
    %v714 = vadd.f32 %v691, %v710
    %v715 = vadd.f32 %v692, %v711
    %v716 = vadd.f32 %v693, %v712
    %s717 = sld [smem:[#allocation2 + $0x1b]]
    %v718 = vstv %s717
    %vm719 = vcmp.eq.s32.totalorder %v90, %v718
    %vm720 = vcmp.eq.s32.totalorder %v91, %v718
    %vm721 = vcmp.eq.s32.totalorder %v92, %v718
    %vm722 = vcmp.eq.s32.totalorder %v93, %v718
    %s723 = sld [smem:[#allocation5 + $0x1b]]
    %v724 = vstv %s723
    %vm725 = vcmp.eq.s32.totalorder %v95, %v724
    %vm726 = vmand %vm719, %vm725
    %vm727 = vmand %vm720, %vm725
    %vm728 = vmand %vm721, %vm725
    %vm729 = vmand %vm722, %vm725
    %s730 = sld [smem:[#allocation7 + $0x1b]]
    %v731 = vstv %s730
    %v732 = vsel %vm726, %v731, 0.0
    %v733 = vsel %vm727, %v731, 0.0
    %v734 = vsel %vm728, %v731, 0.0
    %v735 = vsel %vm729, %v731, 0.0
    %v736 = vadd.f32 %v713, %v732
    %v737 = vadd.f32 %v714, %v733
    %v738 = vadd.f32 %v715, %v734
    %v739 = vadd.f32 %v716, %v735
    %s740 = sld [smem:[#allocation2 + $0x1c]]
    %v741 = vstv %s740
    %vm742 = vcmp.eq.s32.totalorder %v90, %v741
    %vm743 = vcmp.eq.s32.totalorder %v91, %v741
    %vm744 = vcmp.eq.s32.totalorder %v92, %v741
    %vm745 = vcmp.eq.s32.totalorder %v93, %v741
    %s746 = sld [smem:[#allocation5 + $0x1c]]
    %v747 = vstv %s746
    %vm748 = vcmp.eq.s32.totalorder %v95, %v747
    %vm749 = vmand %vm742, %vm748
    %vm750 = vmand %vm743, %vm748
    %vm751 = vmand %vm744, %vm748
    %vm752 = vmand %vm745, %vm748
    %s753 = sld [smem:[#allocation7 + $0x1c]]
    %v754 = vstv %s753
    %v755 = vsel %vm749, %v754, 0.0
    %v756 = vsel %vm750, %v754, 0.0
    %v757 = vsel %vm751, %v754, 0.0
    %v758 = vsel %vm752, %v754, 0.0
    %v759 = vadd.f32 %v736, %v755
    %v760 = vadd.f32 %v737, %v756
    %v761 = vadd.f32 %v738, %v757
    %v762 = vadd.f32 %v739, %v758
    %s763 = sld [smem:[#allocation2 + $0x1d]]
    %v764 = vstv %s763
    %vm765 = vcmp.eq.s32.totalorder %v90, %v764
    %vm766 = vcmp.eq.s32.totalorder %v91, %v764
    %vm767 = vcmp.eq.s32.totalorder %v92, %v764
    %vm768 = vcmp.eq.s32.totalorder %v93, %v764
    %s769 = sld [smem:[#allocation5 + $0x1d]]
    %v770 = vstv %s769
    %vm771 = vcmp.eq.s32.totalorder %v95, %v770
    %vm772 = vmand %vm765, %vm771
    %vm773 = vmand %vm766, %vm771
    %vm774 = vmand %vm767, %vm771
    %vm775 = vmand %vm768, %vm771
    %s776 = sld [smem:[#allocation7 + $0x1d]]
    %v777 = vstv %s776
    %v778 = vsel %vm772, %v777, 0.0
    %v779 = vsel %vm773, %v777, 0.0
    %v780 = vsel %vm774, %v777, 0.0
    %v781 = vsel %vm775, %v777, 0.0
    %v782 = vadd.f32 %v759, %v778
    %v783 = vadd.f32 %v760, %v779
    %v784 = vadd.f32 %v761, %v780
    %v785 = vadd.f32 %v762, %v781
    %s786 = sld [smem:[#allocation2 + $0x1e]]
    %v787 = vstv %s786
    %vm788 = vcmp.eq.s32.totalorder %v90, %v787
    %vm789 = vcmp.eq.s32.totalorder %v91, %v787
    %vm790 = vcmp.eq.s32.totalorder %v92, %v787
    %vm791 = vcmp.eq.s32.totalorder %v93, %v787
    %s792 = sld [smem:[#allocation5 + $0x1e]]
    %v793 = vstv %s792
    %vm794 = vcmp.eq.s32.totalorder %v95, %v793
    %vm795 = vmand %vm788, %vm794
    %vm796 = vmand %vm789, %vm794
    %vm797 = vmand %vm790, %vm794
    %vm798 = vmand %vm791, %vm794
    %s799 = sld [smem:[#allocation7 + $0x1e]]
    %v800 = vstv %s799
    %v801 = vsel %vm795, %v800, 0.0
    %v802 = vsel %vm796, %v800, 0.0
    %v803 = vsel %vm797, %v800, 0.0
    %v804 = vsel %vm798, %v800, 0.0
    %v805 = vadd.f32 %v782, %v801
    %v806 = vadd.f32 %v783, %v802
    %v807 = vadd.f32 %v784, %v803
    %v808 = vadd.f32 %v785, %v804
    %s809 = sld [smem:[#allocation2 + $0x1f]]
    %v810 = vstv %s809
    %vm811 = vcmp.eq.s32.totalorder %v90, %v810
    %vm812 = vcmp.eq.s32.totalorder %v91, %v810
    %vm813 = vcmp.eq.s32.totalorder %v92, %v810
    %vm814 = vcmp.eq.s32.totalorder %v93, %v810
    %s815 = sld [smem:[#allocation5 + $0x1f]]
    %v816 = vstv %s815
    %vm817 = vcmp.eq.s32.totalorder %v95, %v816
    %vm818 = vmand %vm811, %vm817
    %vm819 = vmand %vm812, %vm817
    %vm820 = vmand %vm813, %vm817
    %vm821 = vmand %vm814, %vm817
    %s822 = sld [smem:[#allocation7 + $0x1f]]
    %v823 = vstv %s822
    %v824 = vsel %vm818, %v823, 0.0
    %v825 = vsel %vm819, %v823, 0.0
    %v826 = vsel %vm820, %v823, 0.0
    %v827 = vsel %vm821, %v823, 0.0
    %v828 = vadd.f32 %v805, %v824
    %v829 = vadd.f32 %v806, %v825
    %v830 = vadd.f32 %v807, %v826
    %v831 = vadd.f32 %v808, %v827
    %s832 = sld [smem:[#allocation2 + $0x20]]
    %v833 = vstv %s832
    %vm834 = vcmp.eq.s32.totalorder %v90, %v833
    %vm835 = vcmp.eq.s32.totalorder %v91, %v833
    %vm836 = vcmp.eq.s32.totalorder %v92, %v833
    %vm837 = vcmp.eq.s32.totalorder %v93, %v833
    %s838 = sld [smem:[#allocation5 + $0x20]]
    %v839 = vstv %s838
    %vm840 = vcmp.eq.s32.totalorder %v95, %v839
    %vm841 = vmand %vm834, %vm840
    %vm842 = vmand %vm835, %vm840
    %vm843 = vmand %vm836, %vm840
    %vm844 = vmand %vm837, %vm840
    %s845 = sld [smem:[#allocation7 + $0x20]]
    %v846 = vstv %s845
    %v847 = vsel %vm841, %v846, 0.0
    %v848 = vsel %vm842, %v846, 0.0
    %v849 = vsel %vm843, %v846, 0.0
    %v850 = vsel %vm844, %v846, 0.0
    %v851 = vadd.f32 %v828, %v847
    %v852 = vadd.f32 %v829, %v848
    %v853 = vadd.f32 %v830, %v849
    %v854 = vadd.f32 %v831, %v850
    %s855 = sld [smem:[#allocation2 + $0x21]]
    %v856 = vstv %s855
    %vm857 = vcmp.eq.s32.totalorder %v90, %v856
    %vm858 = vcmp.eq.s32.totalorder %v91, %v856
    %vm859 = vcmp.eq.s32.totalorder %v92, %v856
    %vm860 = vcmp.eq.s32.totalorder %v93, %v856
    %s861 = sld [smem:[#allocation5 + $0x21]]
    %v862 = vstv %s861
    %vm863 = vcmp.eq.s32.totalorder %v95, %v862
    %vm864 = vmand %vm857, %vm863
    %vm865 = vmand %vm858, %vm863
    %vm866 = vmand %vm859, %vm863
    %vm867 = vmand %vm860, %vm863
    %s868 = sld [smem:[#allocation7 + $0x21]]
    %v869 = vstv %s868
    %v870 = vsel %vm864, %v869, 0.0
    %v871 = vsel %vm865, %v869, 0.0
    %v872 = vsel %vm866, %v869, 0.0
    %v873 = vsel %vm867, %v869, 0.0
    %v874 = vadd.f32 %v851, %v870
    %v875 = vadd.f32 %v852, %v871
    %v876 = vadd.f32 %v853, %v872
    %v877 = vadd.f32 %v854, %v873
    %s878 = sld [smem:[#allocation2 + $0x22]]
    %v879 = vstv %s878
    %vm880 = vcmp.eq.s32.totalorder %v90, %v879
    %vm881 = vcmp.eq.s32.totalorder %v91, %v879
    %vm882 = vcmp.eq.s32.totalorder %v92, %v879
    %vm883 = vcmp.eq.s32.totalorder %v93, %v879
    %s884 = sld [smem:[#allocation5 + $0x22]]
    %v885 = vstv %s884
    %vm886 = vcmp.eq.s32.totalorder %v95, %v885
    %vm887 = vmand %vm880, %vm886
    %vm888 = vmand %vm881, %vm886
    %vm889 = vmand %vm882, %vm886
    %vm890 = vmand %vm883, %vm886
    %s891 = sld [smem:[#allocation7 + $0x22]]
    %v892 = vstv %s891
    %v893 = vsel %vm887, %v892, 0.0
    %v894 = vsel %vm888, %v892, 0.0
    %v895 = vsel %vm889, %v892, 0.0
    %v896 = vsel %vm890, %v892, 0.0
    %v897 = vadd.f32 %v874, %v893
    %v898 = vadd.f32 %v875, %v894
    %v899 = vadd.f32 %v876, %v895
    %v900 = vadd.f32 %v877, %v896
    %s901 = sld [smem:[#allocation2 + $0x23]]
    %v902 = vstv %s901
    %vm903 = vcmp.eq.s32.totalorder %v90, %v902
    %vm904 = vcmp.eq.s32.totalorder %v91, %v902
    %vm905 = vcmp.eq.s32.totalorder %v92, %v902
    %vm906 = vcmp.eq.s32.totalorder %v93, %v902
    %s907 = sld [smem:[#allocation5 + $0x23]]
    %v908 = vstv %s907
    %vm909 = vcmp.eq.s32.totalorder %v95, %v908
    %vm910 = vmand %vm903, %vm909
    %vm911 = vmand %vm904, %vm909
    %vm912 = vmand %vm905, %vm909
    %vm913 = vmand %vm906, %vm909
    %s914 = sld [smem:[#allocation7 + $0x23]]
    %v915 = vstv %s914
    %v916 = vsel %vm910, %v915, 0.0
    %v917 = vsel %vm911, %v915, 0.0
    %v918 = vsel %vm912, %v915, 0.0
    %v919 = vsel %vm913, %v915, 0.0
    %v920 = vadd.f32 %v897, %v916
    %v921 = vadd.f32 %v898, %v917
    %v922 = vadd.f32 %v899, %v918
    %v923 = vadd.f32 %v900, %v919
    %s924 = sld [smem:[#allocation2 + $0x24]]
    %v925 = vstv %s924
    %vm926 = vcmp.eq.s32.totalorder %v90, %v925
    %vm927 = vcmp.eq.s32.totalorder %v91, %v925
    %vm928 = vcmp.eq.s32.totalorder %v92, %v925
    %vm929 = vcmp.eq.s32.totalorder %v93, %v925
    %s930 = sld [smem:[#allocation5 + $0x24]]
    %v931 = vstv %s930
    %vm932 = vcmp.eq.s32.totalorder %v95, %v931
    %vm933 = vmand %vm926, %vm932
    %vm934 = vmand %vm927, %vm932
    %vm935 = vmand %vm928, %vm932
    %vm936 = vmand %vm929, %vm932
    %s937 = sld [smem:[#allocation7 + $0x24]]
    %v938 = vstv %s937
    %v939 = vsel %vm933, %v938, 0.0
    %v940 = vsel %vm934, %v938, 0.0
    %v941 = vsel %vm935, %v938, 0.0
    %v942 = vsel %vm936, %v938, 0.0
    %v943 = vadd.f32 %v920, %v939
    %v944 = vadd.f32 %v921, %v940
    %v945 = vadd.f32 %v922, %v941
    %v946 = vadd.f32 %v923, %v942
    %s947 = sld [smem:[#allocation2 + $0x25]]
    %v948 = vstv %s947
    %vm949 = vcmp.eq.s32.totalorder %v90, %v948
    %vm950 = vcmp.eq.s32.totalorder %v91, %v948
    %vm951 = vcmp.eq.s32.totalorder %v92, %v948
    %vm952 = vcmp.eq.s32.totalorder %v93, %v948
    %s953 = sld [smem:[#allocation5 + $0x25]]
    %v954 = vstv %s953
    %vm955 = vcmp.eq.s32.totalorder %v95, %v954
    %vm956 = vmand %vm949, %vm955
    %vm957 = vmand %vm950, %vm955
    %vm958 = vmand %vm951, %vm955
    %vm959 = vmand %vm952, %vm955
    %s960 = sld [smem:[#allocation7 + $0x25]]
    %v961 = vstv %s960
    %v962 = vsel %vm956, %v961, 0.0
    %v963 = vsel %vm957, %v961, 0.0
    %v964 = vsel %vm958, %v961, 0.0
    %v965 = vsel %vm959, %v961, 0.0
    %v966 = vadd.f32 %v943, %v962
    %v967 = vadd.f32 %v944, %v963
    %v968 = vadd.f32 %v945, %v964
    %v969 = vadd.f32 %v946, %v965
    %s970 = sld [smem:[#allocation2 + $0x26]]
    %v971 = vstv %s970
    %vm972 = vcmp.eq.s32.totalorder %v90, %v971
    %vm973 = vcmp.eq.s32.totalorder %v91, %v971
    %vm974 = vcmp.eq.s32.totalorder %v92, %v971
    %vm975 = vcmp.eq.s32.totalorder %v93, %v971
    %s976 = sld [smem:[#allocation5 + $0x26]]
    %v977 = vstv %s976
    %vm978 = vcmp.eq.s32.totalorder %v95, %v977
    %vm979 = vmand %vm972, %vm978
    %vm980 = vmand %vm973, %vm978
    %vm981 = vmand %vm974, %vm978
    %vm982 = vmand %vm975, %vm978
    %s983 = sld [smem:[#allocation7 + $0x26]]
    %v984 = vstv %s983
    %v985 = vsel %vm979, %v984, 0.0
    %v986 = vsel %vm980, %v984, 0.0
    %v987 = vsel %vm981, %v984, 0.0
    %v988 = vsel %vm982, %v984, 0.0
    %v989 = vadd.f32 %v966, %v985
    %v990 = vadd.f32 %v967, %v986
    %v991 = vadd.f32 %v968, %v987
    %v992 = vadd.f32 %v969, %v988
    %s993 = sld [smem:[#allocation2 + $0x27]]
    %v994 = vstv %s993
    %vm995 = vcmp.eq.s32.totalorder %v90, %v994
    %vm996 = vcmp.eq.s32.totalorder %v91, %v994
    %vm997 = vcmp.eq.s32.totalorder %v92, %v994
    %vm998 = vcmp.eq.s32.totalorder %v93, %v994
    %s999 = sld [smem:[#allocation5 + $0x27]]
    %v1000 = vstv %s999
    %vm1001 = vcmp.eq.s32.totalorder %v95, %v1000
    %vm1002 = vmand %vm995, %vm1001
    %vm1003 = vmand %vm996, %vm1001
    %vm1004 = vmand %vm997, %vm1001
    %vm1005 = vmand %vm998, %vm1001
    %s1006 = sld [smem:[#allocation7 + $0x27]]
    %v1007 = vstv %s1006
    %v1008 = vsel %vm1002, %v1007, 0.0
    %v1009 = vsel %vm1003, %v1007, 0.0
    %v1010 = vsel %vm1004, %v1007, 0.0
    %v1011 = vsel %vm1005, %v1007, 0.0
    %v1012 = vadd.f32 %v989, %v1008
    %v1013 = vadd.f32 %v990, %v1009
    %v1014 = vadd.f32 %v991, %v1010
    %v1015 = vadd.f32 %v992, %v1011
    %s1016 = sld [smem:[#allocation2 + $0x28]]
    %v1017 = vstv %s1016
    %vm1018 = vcmp.eq.s32.totalorder %v90, %v1017
    %vm1019 = vcmp.eq.s32.totalorder %v91, %v1017
    %vm1020 = vcmp.eq.s32.totalorder %v92, %v1017
    %vm1021 = vcmp.eq.s32.totalorder %v93, %v1017
    %s1022 = sld [smem:[#allocation5 + $0x28]]
    %v1023 = vstv %s1022
    %vm1024 = vcmp.eq.s32.totalorder %v95, %v1023
    %vm1025 = vmand %vm1018, %vm1024
    %vm1026 = vmand %vm1019, %vm1024
    %vm1027 = vmand %vm1020, %vm1024
    %vm1028 = vmand %vm1021, %vm1024
    %s1029 = sld [smem:[#allocation7 + $0x28]]
    %v1030 = vstv %s1029
    %v1031 = vsel %vm1025, %v1030, 0.0
    %v1032 = vsel %vm1026, %v1030, 0.0
    %v1033 = vsel %vm1027, %v1030, 0.0
    %v1034 = vsel %vm1028, %v1030, 0.0
    %v1035 = vadd.f32 %v1012, %v1031
    %v1036 = vadd.f32 %v1013, %v1032
    %v1037 = vadd.f32 %v1014, %v1033
    %v1038 = vadd.f32 %v1015, %v1034
    %s1039 = sld [smem:[#allocation2 + $0x29]]
    %v1040 = vstv %s1039
    %vm1041 = vcmp.eq.s32.totalorder %v90, %v1040
    %vm1042 = vcmp.eq.s32.totalorder %v91, %v1040
    %vm1043 = vcmp.eq.s32.totalorder %v92, %v1040
    %vm1044 = vcmp.eq.s32.totalorder %v93, %v1040
    %s1045 = sld [smem:[#allocation5 + $0x29]]
    %v1046 = vstv %s1045
    %vm1047 = vcmp.eq.s32.totalorder %v95, %v1046
    %vm1048 = vmand %vm1041, %vm1047
    %vm1049 = vmand %vm1042, %vm1047
    %vm1050 = vmand %vm1043, %vm1047
    %vm1051 = vmand %vm1044, %vm1047
    %s1052 = sld [smem:[#allocation7 + $0x29]]
    %v1053 = vstv %s1052
    %v1054 = vsel %vm1048, %v1053, 0.0
    %v1055 = vsel %vm1049, %v1053, 0.0
    %v1056 = vsel %vm1050, %v1053, 0.0
    %v1057 = vsel %vm1051, %v1053, 0.0
    %v1058 = vadd.f32 %v1035, %v1054
    %v1059 = vadd.f32 %v1036, %v1055
    %v1060 = vadd.f32 %v1037, %v1056
    %v1061 = vadd.f32 %v1038, %v1057
    %s1062 = sld [smem:[#allocation2 + $0x2a]]
    %v1063 = vstv %s1062
    %vm1064 = vcmp.eq.s32.totalorder %v90, %v1063
    %vm1065 = vcmp.eq.s32.totalorder %v91, %v1063
    %vm1066 = vcmp.eq.s32.totalorder %v92, %v1063
    %vm1067 = vcmp.eq.s32.totalorder %v93, %v1063
    %s1068 = sld [smem:[#allocation5 + $0x2a]]
    %v1069 = vstv %s1068
    %vm1070 = vcmp.eq.s32.totalorder %v95, %v1069
    %vm1071 = vmand %vm1064, %vm1070
    %vm1072 = vmand %vm1065, %vm1070
    %vm1073 = vmand %vm1066, %vm1070
    %vm1074 = vmand %vm1067, %vm1070
    %s1075 = sld [smem:[#allocation7 + $0x2a]]
    %v1076 = vstv %s1075
    %v1077 = vsel %vm1071, %v1076, 0.0
    %v1078 = vsel %vm1072, %v1076, 0.0
    %v1079 = vsel %vm1073, %v1076, 0.0
    %v1080 = vsel %vm1074, %v1076, 0.0
    %v1081 = vadd.f32 %v1058, %v1077
    %v1082 = vadd.f32 %v1059, %v1078
    %v1083 = vadd.f32 %v1060, %v1079
    %v1084 = vadd.f32 %v1061, %v1080
    %s1085 = sld [smem:[#allocation2 + $0x2b]]
    %v1086 = vstv %s1085
    %vm1087 = vcmp.eq.s32.totalorder %v90, %v1086
    %vm1088 = vcmp.eq.s32.totalorder %v91, %v1086
    %vm1089 = vcmp.eq.s32.totalorder %v92, %v1086
    %vm1090 = vcmp.eq.s32.totalorder %v93, %v1086
    %s1091 = sld [smem:[#allocation5 + $0x2b]]
    %v1092 = vstv %s1091
    %vm1093 = vcmp.eq.s32.totalorder %v95, %v1092
    %vm1094 = vmand %vm1087, %vm1093
    %vm1095 = vmand %vm1088, %vm1093
    %vm1096 = vmand %vm1089, %vm1093
    %vm1097 = vmand %vm1090, %vm1093
    %s1098 = sld [smem:[#allocation7 + $0x2b]]
    %v1099 = vstv %s1098
    %v1100 = vsel %vm1094, %v1099, 0.0
    %v1101 = vsel %vm1095, %v1099, 0.0
    %v1102 = vsel %vm1096, %v1099, 0.0
    %v1103 = vsel %vm1097, %v1099, 0.0
    %v1104 = vadd.f32 %v1081, %v1100
    %v1105 = vadd.f32 %v1082, %v1101
    %v1106 = vadd.f32 %v1083, %v1102
    %v1107 = vadd.f32 %v1084, %v1103
    %s1108 = sld [smem:[#allocation2 + $0x2c]]
    %v1109 = vstv %s1108
    %vm1110 = vcmp.eq.s32.totalorder %v90, %v1109
    %vm1111 = vcmp.eq.s32.totalorder %v91, %v1109
    %vm1112 = vcmp.eq.s32.totalorder %v92, %v1109
    %vm1113 = vcmp.eq.s32.totalorder %v93, %v1109
    %s1114 = sld [smem:[#allocation5 + $0x2c]]
    %v1115 = vstv %s1114
    %vm1116 = vcmp.eq.s32.totalorder %v95, %v1115
    %vm1117 = vmand %vm1110, %vm1116
    %vm1118 = vmand %vm1111, %vm1116
    %vm1119 = vmand %vm1112, %vm1116
    %vm1120 = vmand %vm1113, %vm1116
    %s1121 = sld [smem:[#allocation7 + $0x2c]]
    %v1122 = vstv %s1121
    %v1123 = vsel %vm1117, %v1122, 0.0
    %v1124 = vsel %vm1118, %v1122, 0.0
    %v1125 = vsel %vm1119, %v1122, 0.0
    %v1126 = vsel %vm1120, %v1122, 0.0
    %v1127 = vadd.f32 %v1104, %v1123
    %v1128 = vadd.f32 %v1105, %v1124
    %v1129 = vadd.f32 %v1106, %v1125
    %v1130 = vadd.f32 %v1107, %v1126
    %s1131 = sld [smem:[#allocation2 + $0x2d]]
    %v1132 = vstv %s1131
    %vm1133 = vcmp.eq.s32.totalorder %v90, %v1132
    %vm1134 = vcmp.eq.s32.totalorder %v91, %v1132
    %vm1135 = vcmp.eq.s32.totalorder %v92, %v1132
    %vm1136 = vcmp.eq.s32.totalorder %v93, %v1132
    %s1137 = sld [smem:[#allocation5 + $0x2d]]
    %v1138 = vstv %s1137
    %vm1139 = vcmp.eq.s32.totalorder %v95, %v1138
    %vm1140 = vmand %vm1133, %vm1139
    %vm1141 = vmand %vm1134, %vm1139
    %vm1142 = vmand %vm1135, %vm1139
    %vm1143 = vmand %vm1136, %vm1139
    %s1144 = sld [smem:[#allocation7 + $0x2d]]
    %v1145 = vstv %s1144
    %v1146 = vsel %vm1140, %v1145, 0.0
    %v1147 = vsel %vm1141, %v1145, 0.0
    %v1148 = vsel %vm1142, %v1145, 0.0
    %v1149 = vsel %vm1143, %v1145, 0.0
    %v1150 = vadd.f32 %v1127, %v1146
    %v1151 = vadd.f32 %v1128, %v1147
    %v1152 = vadd.f32 %v1129, %v1148
    %v1153 = vadd.f32 %v1130, %v1149
    %s1154 = sld [smem:[#allocation2 + $0x2e]]
    %v1155 = vstv %s1154
    %vm1156 = vcmp.eq.s32.totalorder %v90, %v1155
    %vm1157 = vcmp.eq.s32.totalorder %v91, %v1155
    %vm1158 = vcmp.eq.s32.totalorder %v92, %v1155
    %vm1159 = vcmp.eq.s32.totalorder %v93, %v1155
    %s1160 = sld [smem:[#allocation5 + $0x2e]]
    %v1161 = vstv %s1160
    %vm1162 = vcmp.eq.s32.totalorder %v95, %v1161
    %vm1163 = vmand %vm1156, %vm1162
    %vm1164 = vmand %vm1157, %vm1162
    %vm1165 = vmand %vm1158, %vm1162
    %vm1166 = vmand %vm1159, %vm1162
    %s1167 = sld [smem:[#allocation7 + $0x2e]]
    %v1168 = vstv %s1167
    %v1169 = vsel %vm1163, %v1168, 0.0
    %v1170 = vsel %vm1164, %v1168, 0.0
    %v1171 = vsel %vm1165, %v1168, 0.0
    %v1172 = vsel %vm1166, %v1168, 0.0
    %v1173 = vadd.f32 %v1150, %v1169
    %v1174 = vadd.f32 %v1151, %v1170
    %v1175 = vadd.f32 %v1152, %v1171
    %v1176 = vadd.f32 %v1153, %v1172
    %s1177 = sld [smem:[#allocation2 + $0x2f]]
    %v1178 = vstv %s1177
    %vm1179 = vcmp.eq.s32.totalorder %v90, %v1178
    %vm1180 = vcmp.eq.s32.totalorder %v91, %v1178
    %vm1181 = vcmp.eq.s32.totalorder %v92, %v1178
    %vm1182 = vcmp.eq.s32.totalorder %v93, %v1178
    %s1183 = sld [smem:[#allocation5 + $0x2f]]
    %v1184 = vstv %s1183
    %vm1185 = vcmp.eq.s32.totalorder %v95, %v1184
    %vm1186 = vmand %vm1179, %vm1185
    %vm1187 = vmand %vm1180, %vm1185
    %vm1188 = vmand %vm1181, %vm1185
    %vm1189 = vmand %vm1182, %vm1185
    %s1190 = sld [smem:[#allocation7 + $0x2f]]
    %v1191 = vstv %s1190
    %v1192 = vsel %vm1186, %v1191, 0.0
    %v1193 = vsel %vm1187, %v1191, 0.0
    %v1194 = vsel %vm1188, %v1191, 0.0
    %v1195 = vsel %vm1189, %v1191, 0.0
    %v1196 = vadd.f32 %v1173, %v1192
    %v1197 = vadd.f32 %v1174, %v1193
    %v1198 = vadd.f32 %v1175, %v1194
    %v1199 = vadd.f32 %v1176, %v1195
    %s1200 = sld [smem:[#allocation2 + $0x30]]
    %v1201 = vstv %s1200
    %vm1202 = vcmp.eq.s32.totalorder %v90, %v1201
    %vm1203 = vcmp.eq.s32.totalorder %v91, %v1201
    %vm1204 = vcmp.eq.s32.totalorder %v92, %v1201
    %vm1205 = vcmp.eq.s32.totalorder %v93, %v1201
    %s1206 = sld [smem:[#allocation5 + $0x30]]
    %v1207 = vstv %s1206
    %vm1208 = vcmp.eq.s32.totalorder %v95, %v1207
    %vm1209 = vmand %vm1202, %vm1208
    %vm1210 = vmand %vm1203, %vm1208
    %vm1211 = vmand %vm1204, %vm1208
    %vm1212 = vmand %vm1205, %vm1208
    %s1213 = sld [smem:[#allocation7 + $0x30]]
    %v1214 = vstv %s1213
    %v1215 = vsel %vm1209, %v1214, 0.0
    %v1216 = vsel %vm1210, %v1214, 0.0
    %v1217 = vsel %vm1211, %v1214, 0.0
    %v1218 = vsel %vm1212, %v1214, 0.0
    %v1219 = vadd.f32 %v1196, %v1215
    %v1220 = vadd.f32 %v1197, %v1216
    %v1221 = vadd.f32 %v1198, %v1217
    %v1222 = vadd.f32 %v1199, %v1218
    %s1223 = sld [smem:[#allocation2 + $0x31]]
    %v1224 = vstv %s1223
    %vm1225 = vcmp.eq.s32.totalorder %v90, %v1224
    %vm1226 = vcmp.eq.s32.totalorder %v91, %v1224
    %vm1227 = vcmp.eq.s32.totalorder %v92, %v1224
    %vm1228 = vcmp.eq.s32.totalorder %v93, %v1224
    %s1229 = sld [smem:[#allocation5 + $0x31]]
    %v1230 = vstv %s1229
    %vm1231 = vcmp.eq.s32.totalorder %v95, %v1230
    %vm1232 = vmand %vm1225, %vm1231
    %vm1233 = vmand %vm1226, %vm1231
    %vm1234 = vmand %vm1227, %vm1231
    %vm1235 = vmand %vm1228, %vm1231
    %s1236 = sld [smem:[#allocation7 + $0x31]]
    %v1237 = vstv %s1236
    %v1238 = vsel %vm1232, %v1237, 0.0
    %v1239 = vsel %vm1233, %v1237, 0.0
    %v1240 = vsel %vm1234, %v1237, 0.0
    %v1241 = vsel %vm1235, %v1237, 0.0
    %v1242 = vadd.f32 %v1219, %v1238
    %v1243 = vadd.f32 %v1220, %v1239
    %v1244 = vadd.f32 %v1221, %v1240
    %v1245 = vadd.f32 %v1222, %v1241
    %s1246 = sld [smem:[#allocation2 + $0x32]]
    %v1247 = vstv %s1246
    %vm1248 = vcmp.eq.s32.totalorder %v90, %v1247
    %vm1249 = vcmp.eq.s32.totalorder %v91, %v1247
    %vm1250 = vcmp.eq.s32.totalorder %v92, %v1247
    %vm1251 = vcmp.eq.s32.totalorder %v93, %v1247
    %s1252 = sld [smem:[#allocation5 + $0x32]]
    %v1253 = vstv %s1252
    %vm1254 = vcmp.eq.s32.totalorder %v95, %v1253
    %vm1255 = vmand %vm1248, %vm1254
    %vm1256 = vmand %vm1249, %vm1254
    %vm1257 = vmand %vm1250, %vm1254
    %vm1258 = vmand %vm1251, %vm1254
    %s1259 = sld [smem:[#allocation7 + $0x32]]
    %v1260 = vstv %s1259
    %v1261 = vsel %vm1255, %v1260, 0.0
    %v1262 = vsel %vm1256, %v1260, 0.0
    %v1263 = vsel %vm1257, %v1260, 0.0
    %v1264 = vsel %vm1258, %v1260, 0.0
    %v1265 = vadd.f32 %v1242, %v1261
    %v1266 = vadd.f32 %v1243, %v1262
    %v1267 = vadd.f32 %v1244, %v1263
    %v1268 = vadd.f32 %v1245, %v1264
    %s1269 = sld [smem:[#allocation2 + $0x33]]
    %v1270 = vstv %s1269
    %vm1271 = vcmp.eq.s32.totalorder %v90, %v1270
    %vm1272 = vcmp.eq.s32.totalorder %v91, %v1270
    %vm1273 = vcmp.eq.s32.totalorder %v92, %v1270
    %vm1274 = vcmp.eq.s32.totalorder %v93, %v1270
    %s1275 = sld [smem:[#allocation5 + $0x33]]
    %v1276 = vstv %s1275
    %vm1277 = vcmp.eq.s32.totalorder %v95, %v1276
    %vm1278 = vmand %vm1271, %vm1277
    %vm1279 = vmand %vm1272, %vm1277
    %vm1280 = vmand %vm1273, %vm1277
    %vm1281 = vmand %vm1274, %vm1277
    %s1282 = sld [smem:[#allocation7 + $0x33]]
    %v1283 = vstv %s1282
    %v1284 = vsel %vm1278, %v1283, 0.0
    %v1285 = vsel %vm1279, %v1283, 0.0
    %v1286 = vsel %vm1280, %v1283, 0.0
    %v1287 = vsel %vm1281, %v1283, 0.0
    %v1288 = vadd.f32 %v1265, %v1284
    %v1289 = vadd.f32 %v1266, %v1285
    %v1290 = vadd.f32 %v1267, %v1286
    %v1291 = vadd.f32 %v1268, %v1287
    %s1292 = sld [smem:[#allocation2 + $0x34]]
    %v1293 = vstv %s1292
    %vm1294 = vcmp.eq.s32.totalorder %v90, %v1293
    %vm1295 = vcmp.eq.s32.totalorder %v91, %v1293
    %vm1296 = vcmp.eq.s32.totalorder %v92, %v1293
    %vm1297 = vcmp.eq.s32.totalorder %v93, %v1293
    %s1298 = sld [smem:[#allocation5 + $0x34]]
    %v1299 = vstv %s1298
    %vm1300 = vcmp.eq.s32.totalorder %v95, %v1299
    %vm1301 = vmand %vm1294, %vm1300
    %vm1302 = vmand %vm1295, %vm1300
    %vm1303 = vmand %vm1296, %vm1300
    %vm1304 = vmand %vm1297, %vm1300
    %s1305 = sld [smem:[#allocation7 + $0x34]]
    %v1306 = vstv %s1305
    %v1307 = vsel %vm1301, %v1306, 0.0
    %v1308 = vsel %vm1302, %v1306, 0.0
    %v1309 = vsel %vm1303, %v1306, 0.0
    %v1310 = vsel %vm1304, %v1306, 0.0
    %v1311 = vadd.f32 %v1288, %v1307
    %v1312 = vadd.f32 %v1289, %v1308
    %v1313 = vadd.f32 %v1290, %v1309
    %v1314 = vadd.f32 %v1291, %v1310
    %s1315 = sld [smem:[#allocation2 + $0x35]]
    %v1316 = vstv %s1315
    %vm1317 = vcmp.eq.s32.totalorder %v90, %v1316
    %vm1318 = vcmp.eq.s32.totalorder %v91, %v1316
    %vm1319 = vcmp.eq.s32.totalorder %v92, %v1316
    %vm1320 = vcmp.eq.s32.totalorder %v93, %v1316
    %s1321 = sld [smem:[#allocation5 + $0x35]]
    %v1322 = vstv %s1321
    %vm1323 = vcmp.eq.s32.totalorder %v95, %v1322
    %vm1324 = vmand %vm1317, %vm1323
    %vm1325 = vmand %vm1318, %vm1323
    %vm1326 = vmand %vm1319, %vm1323
    %vm1327 = vmand %vm1320, %vm1323
    %s1328 = sld [smem:[#allocation7 + $0x35]]
    %v1329 = vstv %s1328
    %v1330 = vsel %vm1324, %v1329, 0.0
    %v1331 = vsel %vm1325, %v1329, 0.0
    %v1332 = vsel %vm1326, %v1329, 0.0
    %v1333 = vsel %vm1327, %v1329, 0.0
    %v1334 = vadd.f32 %v1311, %v1330
    %v1335 = vadd.f32 %v1312, %v1331
    %v1336 = vadd.f32 %v1313, %v1332
    %v1337 = vadd.f32 %v1314, %v1333
    %s1338 = sld [smem:[#allocation2 + $0x36]]
    %v1339 = vstv %s1338
    %vm1340 = vcmp.eq.s32.totalorder %v90, %v1339
    %vm1341 = vcmp.eq.s32.totalorder %v91, %v1339
    %vm1342 = vcmp.eq.s32.totalorder %v92, %v1339
    %vm1343 = vcmp.eq.s32.totalorder %v93, %v1339
    %s1344 = sld [smem:[#allocation5 + $0x36]]
    %v1345 = vstv %s1344
    %vm1346 = vcmp.eq.s32.totalorder %v95, %v1345
    %vm1347 = vmand %vm1340, %vm1346
    %vm1348 = vmand %vm1341, %vm1346
    %vm1349 = vmand %vm1342, %vm1346
    %vm1350 = vmand %vm1343, %vm1346
    %s1351 = sld [smem:[#allocation7 + $0x36]]
    %v1352 = vstv %s1351
    %v1353 = vsel %vm1347, %v1352, 0.0
    %v1354 = vsel %vm1348, %v1352, 0.0
    %v1355 = vsel %vm1349, %v1352, 0.0
    %v1356 = vsel %vm1350, %v1352, 0.0
    %v1357 = vadd.f32 %v1334, %v1353
    %v1358 = vadd.f32 %v1335, %v1354
    %v1359 = vadd.f32 %v1336, %v1355
    %v1360 = vadd.f32 %v1337, %v1356
    %s1361 = sld [smem:[#allocation2 + $0x37]]
    %v1362 = vstv %s1361
    %vm1363 = vcmp.eq.s32.totalorder %v90, %v1362
    %vm1364 = vcmp.eq.s32.totalorder %v91, %v1362
    %vm1365 = vcmp.eq.s32.totalorder %v92, %v1362
    %vm1366 = vcmp.eq.s32.totalorder %v93, %v1362
    %s1367 = sld [smem:[#allocation5 + $0x37]]
    %v1368 = vstv %s1367
    %vm1369 = vcmp.eq.s32.totalorder %v95, %v1368
    %vm1370 = vmand %vm1363, %vm1369
    %vm1371 = vmand %vm1364, %vm1369
    %vm1372 = vmand %vm1365, %vm1369
    %vm1373 = vmand %vm1366, %vm1369
    %s1374 = sld [smem:[#allocation7 + $0x37]]
    %v1375 = vstv %s1374
    %v1376 = vsel %vm1370, %v1375, 0.0
    %v1377 = vsel %vm1371, %v1375, 0.0
    %v1378 = vsel %vm1372, %v1375, 0.0
    %v1379 = vsel %vm1373, %v1375, 0.0
    %v1380 = vadd.f32 %v1357, %v1376
    %v1381 = vadd.f32 %v1358, %v1377
    %v1382 = vadd.f32 %v1359, %v1378
    %v1383 = vadd.f32 %v1360, %v1379
    %s1384 = sld [smem:[#allocation2 + $0x38]]
    %v1385 = vstv %s1384
    %vm1386 = vcmp.eq.s32.totalorder %v90, %v1385
    %vm1387 = vcmp.eq.s32.totalorder %v91, %v1385
    %vm1388 = vcmp.eq.s32.totalorder %v92, %v1385
    %vm1389 = vcmp.eq.s32.totalorder %v93, %v1385
    %s1390 = sld [smem:[#allocation5 + $0x38]]
    %v1391 = vstv %s1390
    %vm1392 = vcmp.eq.s32.totalorder %v95, %v1391
    %vm1393 = vmand %vm1386, %vm1392
    %vm1394 = vmand %vm1387, %vm1392
    %vm1395 = vmand %vm1388, %vm1392
    %vm1396 = vmand %vm1389, %vm1392
    %s1397 = sld [smem:[#allocation7 + $0x38]]
    %v1398 = vstv %s1397
    %v1399 = vsel %vm1393, %v1398, 0.0
    %v1400 = vsel %vm1394, %v1398, 0.0
    %v1401 = vsel %vm1395, %v1398, 0.0
    %v1402 = vsel %vm1396, %v1398, 0.0
    %v1403 = vadd.f32 %v1380, %v1399
    %v1404 = vadd.f32 %v1381, %v1400
    %v1405 = vadd.f32 %v1382, %v1401
    %v1406 = vadd.f32 %v1383, %v1402
    %s1407 = sld [smem:[#allocation2 + $0x39]]
    %v1408 = vstv %s1407
    %vm1409 = vcmp.eq.s32.totalorder %v90, %v1408
    %vm1410 = vcmp.eq.s32.totalorder %v91, %v1408
    %vm1411 = vcmp.eq.s32.totalorder %v92, %v1408
    %vm1412 = vcmp.eq.s32.totalorder %v93, %v1408
    %s1413 = sld [smem:[#allocation5 + $0x39]]
    %v1414 = vstv %s1413
    %vm1415 = vcmp.eq.s32.totalorder %v95, %v1414
    %vm1416 = vmand %vm1409, %vm1415
    %vm1417 = vmand %vm1410, %vm1415
    %vm1418 = vmand %vm1411, %vm1415
    %vm1419 = vmand %vm1412, %vm1415
    %s1420 = sld [smem:[#allocation7 + $0x39]]
    %v1421 = vstv %s1420
    %v1422 = vsel %vm1416, %v1421, 0.0
    %v1423 = vsel %vm1417, %v1421, 0.0
    %v1424 = vsel %vm1418, %v1421, 0.0
    %v1425 = vsel %vm1419, %v1421, 0.0
    %v1426 = vadd.f32 %v1403, %v1422
    %v1427 = vadd.f32 %v1404, %v1423
    %v1428 = vadd.f32 %v1405, %v1424
    %v1429 = vadd.f32 %v1406, %v1425
    %s1430 = sld [smem:[#allocation2 + $0x3a]]
    %v1431 = vstv %s1430
    %vm1432 = vcmp.eq.s32.totalorder %v90, %v1431
    %vm1433 = vcmp.eq.s32.totalorder %v91, %v1431
    %vm1434 = vcmp.eq.s32.totalorder %v92, %v1431
    %vm1435 = vcmp.eq.s32.totalorder %v93, %v1431
    %s1436 = sld [smem:[#allocation5 + $0x3a]]
    %v1437 = vstv %s1436
    %vm1438 = vcmp.eq.s32.totalorder %v95, %v1437
    %vm1439 = vmand %vm1432, %vm1438
    %vm1440 = vmand %vm1433, %vm1438
    %vm1441 = vmand %vm1434, %vm1438
    %vm1442 = vmand %vm1435, %vm1438
    %s1443 = sld [smem:[#allocation7 + $0x3a]]
    %v1444 = vstv %s1443
    %v1445 = vsel %vm1439, %v1444, 0.0
    %v1446 = vsel %vm1440, %v1444, 0.0
    %v1447 = vsel %vm1441, %v1444, 0.0
    %v1448 = vsel %vm1442, %v1444, 0.0
    %v1449 = vadd.f32 %v1426, %v1445
    %v1450 = vadd.f32 %v1427, %v1446
    %v1451 = vadd.f32 %v1428, %v1447
    %v1452 = vadd.f32 %v1429, %v1448
    %s1453 = sld [smem:[#allocation2 + $0x3b]]
    %v1454 = vstv %s1453
    %vm1455 = vcmp.eq.s32.totalorder %v90, %v1454
    %vm1456 = vcmp.eq.s32.totalorder %v91, %v1454
    %vm1457 = vcmp.eq.s32.totalorder %v92, %v1454
    %vm1458 = vcmp.eq.s32.totalorder %v93, %v1454
    %s1459 = sld [smem:[#allocation5 + $0x3b]]
    %v1460 = vstv %s1459
    %vm1461 = vcmp.eq.s32.totalorder %v95, %v1460
    %vm1462 = vmand %vm1455, %vm1461
    %vm1463 = vmand %vm1456, %vm1461
    %vm1464 = vmand %vm1457, %vm1461
    %vm1465 = vmand %vm1458, %vm1461
    %s1466 = sld [smem:[#allocation7 + $0x3b]]
    %v1467 = vstv %s1466
    %v1468 = vsel %vm1462, %v1467, 0.0
    %v1469 = vsel %vm1463, %v1467, 0.0
    %v1470 = vsel %vm1464, %v1467, 0.0
    %v1471 = vsel %vm1465, %v1467, 0.0
    %v1472 = vadd.f32 %v1449, %v1468
    %v1473 = vadd.f32 %v1450, %v1469
    %v1474 = vadd.f32 %v1451, %v1470
    %v1475 = vadd.f32 %v1452, %v1471
    %s1476 = sld [smem:[#allocation2 + $0x3c]]
    %v1477 = vstv %s1476
    %vm1478 = vcmp.eq.s32.totalorder %v90, %v1477
    %vm1479 = vcmp.eq.s32.totalorder %v91, %v1477
    %vm1480 = vcmp.eq.s32.totalorder %v92, %v1477
    %vm1481 = vcmp.eq.s32.totalorder %v93, %v1477
    %s1482 = sld [smem:[#allocation5 + $0x3c]]
    %v1483 = vstv %s1482
    %vm1484 = vcmp.eq.s32.totalorder %v95, %v1483
    %vm1485 = vmand %vm1478, %vm1484
    %vm1486 = vmand %vm1479, %vm1484
    %vm1487 = vmand %vm1480, %vm1484
    %vm1488 = vmand %vm1481, %vm1484
    %s1489 = sld [smem:[#allocation7 + $0x3c]]
    %v1490 = vstv %s1489
    %v1491 = vsel %vm1485, %v1490, 0.0
    %v1492 = vsel %vm1486, %v1490, 0.0
    %v1493 = vsel %vm1487, %v1490, 0.0
    %v1494 = vsel %vm1488, %v1490, 0.0
    %v1495 = vadd.f32 %v1472, %v1491
    %v1496 = vadd.f32 %v1473, %v1492
    %v1497 = vadd.f32 %v1474, %v1493
    %v1498 = vadd.f32 %v1475, %v1494
    %s1499 = sld [smem:[#allocation2 + $0x3d]]
    %v1500 = vstv %s1499
    %vm1501 = vcmp.eq.s32.totalorder %v90, %v1500
    %vm1502 = vcmp.eq.s32.totalorder %v91, %v1500
    %vm1503 = vcmp.eq.s32.totalorder %v92, %v1500
    %vm1504 = vcmp.eq.s32.totalorder %v93, %v1500
    %s1505 = sld [smem:[#allocation5 + $0x3d]]
    %v1506 = vstv %s1505
    %vm1507 = vcmp.eq.s32.totalorder %v95, %v1506
    %vm1508 = vmand %vm1501, %vm1507
    %vm1509 = vmand %vm1502, %vm1507
    %vm1510 = vmand %vm1503, %vm1507
    %vm1511 = vmand %vm1504, %vm1507
    %s1512 = sld [smem:[#allocation7 + $0x3d]]
    %v1513 = vstv %s1512
    %v1514 = vsel %vm1508, %v1513, 0.0
    %v1515 = vsel %vm1509, %v1513, 0.0
    %v1516 = vsel %vm1510, %v1513, 0.0
    %v1517 = vsel %vm1511, %v1513, 0.0
    %v1518 = vadd.f32 %v1495, %v1514
    %v1519 = vadd.f32 %v1496, %v1515
    %v1520 = vadd.f32 %v1497, %v1516
    %v1521 = vadd.f32 %v1498, %v1517
    %s1522 = sld [smem:[#allocation2 + $0x3e]]
    %v1523 = vstv %s1522
    %vm1524 = vcmp.eq.s32.totalorder %v90, %v1523
    %vm1525 = vcmp.eq.s32.totalorder %v91, %v1523
    %vm1526 = vcmp.eq.s32.totalorder %v92, %v1523
    %vm1527 = vcmp.eq.s32.totalorder %v93, %v1523
    %s1528 = sld [smem:[#allocation5 + $0x3e]]
    %v1529 = vstv %s1528
    %vm1530 = vcmp.eq.s32.totalorder %v95, %v1529
    %vm1531 = vmand %vm1524, %vm1530
    %vm1532 = vmand %vm1525, %vm1530
    %vm1533 = vmand %vm1526, %vm1530
    %vm1534 = vmand %vm1527, %vm1530
    %s1535 = sld [smem:[#allocation7 + $0x3e]]
    %v1536 = vstv %s1535
    %v1537 = vsel %vm1531, %v1536, 0.0
    %v1538 = vsel %vm1532, %v1536, 0.0
    %v1539 = vsel %vm1533, %v1536, 0.0
    %v1540 = vsel %vm1534, %v1536, 0.0
    %v1541 = vadd.f32 %v1518, %v1537
    %v1542 = vadd.f32 %v1519, %v1538
    %v1543 = vadd.f32 %v1520, %v1539
    %v1544 = vadd.f32 %v1521, %v1540
    %s1545 = sld [smem:[#allocation2 + $0x3f]]
    %v1546 = vstv %s1545
    %vm1547 = vcmp.eq.s32.totalorder %v90, %v1546
    %vm1548 = vcmp.eq.s32.totalorder %v91, %v1546
    %vm1549 = vcmp.eq.s32.totalorder %v92, %v1546
    %vm1550 = vcmp.eq.s32.totalorder %v93, %v1546
    %s1551 = sld [smem:[#allocation5 + $0x3f]]
    %v1552 = vstv %s1551
    %vm1553 = vcmp.eq.s32.totalorder %v95, %v1552
    %vm1554 = vmand %vm1547, %vm1553
    %vm1555 = vmand %vm1548, %vm1553
    %vm1556 = vmand %vm1549, %vm1553
    %vm1557 = vmand %vm1550, %vm1553
    %s1558 = sld [smem:[#allocation7 + $0x3f]]
    %v1559 = vstv %s1558
    %v1560 = vsel %vm1554, %v1559, 0.0
    %v1561 = vsel %vm1555, %v1559, 0.0
    %v1562 = vsel %vm1556, %v1559, 0.0
    %v1563 = vsel %vm1557, %v1559, 0.0
    %v1564 = vadd.f32 %v1541, %v1560
    %v1565 = vadd.f32 %v1542, %v1561
    %v1566 = vadd.f32 %v1543, %v1562
    %v1567 = vadd.f32 %v1544, %v1563
    %s1568 = sld [smem:[#allocation2 + $0x40]]
    %v1569 = vstv %s1568
    %vm1570 = vcmp.eq.s32.totalorder %v90, %v1569
    %vm1571 = vcmp.eq.s32.totalorder %v91, %v1569
    %vm1572 = vcmp.eq.s32.totalorder %v92, %v1569
    %vm1573 = vcmp.eq.s32.totalorder %v93, %v1569
    %s1574 = sld [smem:[#allocation5 + $0x40]]
    %v1575 = vstv %s1574
    %vm1576 = vcmp.eq.s32.totalorder %v95, %v1575
    %vm1577 = vmand %vm1570, %vm1576
    %vm1578 = vmand %vm1571, %vm1576
    %vm1579 = vmand %vm1572, %vm1576
    %vm1580 = vmand %vm1573, %vm1576
    %s1581 = sld [smem:[#allocation7 + $0x40]]
    %v1582 = vstv %s1581
    %v1583 = vsel %vm1577, %v1582, 0.0
    %v1584 = vsel %vm1578, %v1582, 0.0
    %v1585 = vsel %vm1579, %v1582, 0.0
    %v1586 = vsel %vm1580, %v1582, 0.0
    %v1587 = vadd.f32 %v1564, %v1583
    %v1588 = vadd.f32 %v1565, %v1584
    %v1589 = vadd.f32 %v1566, %v1585
    %v1590 = vadd.f32 %v1567, %v1586
    %s1591 = sld [smem:[#allocation2 + $0x41]]
    %v1592 = vstv %s1591
    %vm1593 = vcmp.eq.s32.totalorder %v90, %v1592
    %vm1594 = vcmp.eq.s32.totalorder %v91, %v1592
    %vm1595 = vcmp.eq.s32.totalorder %v92, %v1592
    %vm1596 = vcmp.eq.s32.totalorder %v93, %v1592
    %s1597 = sld [smem:[#allocation5 + $0x41]]
    %v1598 = vstv %s1597
    %vm1599 = vcmp.eq.s32.totalorder %v95, %v1598
    %vm1600 = vmand %vm1593, %vm1599
    %vm1601 = vmand %vm1594, %vm1599
    %vm1602 = vmand %vm1595, %vm1599
    %vm1603 = vmand %vm1596, %vm1599
    %s1604 = sld [smem:[#allocation7 + $0x41]]
    %v1605 = vstv %s1604
    %v1606 = vsel %vm1600, %v1605, 0.0
    %v1607 = vsel %vm1601, %v1605, 0.0
    %v1608 = vsel %vm1602, %v1605, 0.0
    %v1609 = vsel %vm1603, %v1605, 0.0
    %v1610 = vadd.f32 %v1587, %v1606
    %v1611 = vadd.f32 %v1588, %v1607
    %v1612 = vadd.f32 %v1589, %v1608
    %v1613 = vadd.f32 %v1590, %v1609
    %s1614 = sld [smem:[#allocation2 + $0x42]]
    %v1615 = vstv %s1614
    %vm1616 = vcmp.eq.s32.totalorder %v90, %v1615
    %vm1617 = vcmp.eq.s32.totalorder %v91, %v1615
    %vm1618 = vcmp.eq.s32.totalorder %v92, %v1615
    %vm1619 = vcmp.eq.s32.totalorder %v93, %v1615
    %s1620 = sld [smem:[#allocation5 + $0x42]]
    %v1621 = vstv %s1620
    %vm1622 = vcmp.eq.s32.totalorder %v95, %v1621
    %vm1623 = vmand %vm1616, %vm1622
    %vm1624 = vmand %vm1617, %vm1622
    %vm1625 = vmand %vm1618, %vm1622
    %vm1626 = vmand %vm1619, %vm1622
    %s1627 = sld [smem:[#allocation7 + $0x42]]
    %v1628 = vstv %s1627
    %v1629 = vsel %vm1623, %v1628, 0.0
    %v1630 = vsel %vm1624, %v1628, 0.0
    %v1631 = vsel %vm1625, %v1628, 0.0
    %v1632 = vsel %vm1626, %v1628, 0.0
    %v1633 = vadd.f32 %v1610, %v1629
    %v1634 = vadd.f32 %v1611, %v1630
    %v1635 = vadd.f32 %v1612, %v1631
    %v1636 = vadd.f32 %v1613, %v1632
    %s1637 = sld [smem:[#allocation2 + $0x43]]
    %v1638 = vstv %s1637
    %vm1639 = vcmp.eq.s32.totalorder %v90, %v1638
    %vm1640 = vcmp.eq.s32.totalorder %v91, %v1638
    %vm1641 = vcmp.eq.s32.totalorder %v92, %v1638
    %vm1642 = vcmp.eq.s32.totalorder %v93, %v1638
    %s1643 = sld [smem:[#allocation5 + $0x43]]
    %v1644 = vstv %s1643
    %vm1645 = vcmp.eq.s32.totalorder %v95, %v1644
    %vm1646 = vmand %vm1639, %vm1645
    %vm1647 = vmand %vm1640, %vm1645
    %vm1648 = vmand %vm1641, %vm1645
    %vm1649 = vmand %vm1642, %vm1645
    %s1650 = sld [smem:[#allocation7 + $0x43]]
    %v1651 = vstv %s1650
    %v1652 = vsel %vm1646, %v1651, 0.0
    %v1653 = vsel %vm1647, %v1651, 0.0
    %v1654 = vsel %vm1648, %v1651, 0.0
    %v1655 = vsel %vm1649, %v1651, 0.0
    %v1656 = vadd.f32 %v1633, %v1652
    %v1657 = vadd.f32 %v1634, %v1653
    %v1658 = vadd.f32 %v1635, %v1654
    %v1659 = vadd.f32 %v1636, %v1655
    %s1660 = sld [smem:[#allocation2 + $0x44]]
    %v1661 = vstv %s1660
    %vm1662 = vcmp.eq.s32.totalorder %v90, %v1661
    %vm1663 = vcmp.eq.s32.totalorder %v91, %v1661
    %vm1664 = vcmp.eq.s32.totalorder %v92, %v1661
    %vm1665 = vcmp.eq.s32.totalorder %v93, %v1661
    %s1666 = sld [smem:[#allocation5 + $0x44]]
    %v1667 = vstv %s1666
    %vm1668 = vcmp.eq.s32.totalorder %v95, %v1667
    %vm1669 = vmand %vm1662, %vm1668
    %vm1670 = vmand %vm1663, %vm1668
    %vm1671 = vmand %vm1664, %vm1668
    %vm1672 = vmand %vm1665, %vm1668
    %s1673 = sld [smem:[#allocation7 + $0x44]]
    %v1674 = vstv %s1673
    %v1675 = vsel %vm1669, %v1674, 0.0
    %v1676 = vsel %vm1670, %v1674, 0.0
    %v1677 = vsel %vm1671, %v1674, 0.0
    %v1678 = vsel %vm1672, %v1674, 0.0
    %v1679 = vadd.f32 %v1656, %v1675
    %v1680 = vadd.f32 %v1657, %v1676
    %v1681 = vadd.f32 %v1658, %v1677
    %v1682 = vadd.f32 %v1659, %v1678
    %s1683 = sld [smem:[#allocation2 + $0x45]]
    %v1684 = vstv %s1683
    %vm1685 = vcmp.eq.s32.totalorder %v90, %v1684
    %vm1686 = vcmp.eq.s32.totalorder %v91, %v1684
    %vm1687 = vcmp.eq.s32.totalorder %v92, %v1684
    %vm1688 = vcmp.eq.s32.totalorder %v93, %v1684
    %s1689 = sld [smem:[#allocation5 + $0x45]]
    %v1690 = vstv %s1689
    %vm1691 = vcmp.eq.s32.totalorder %v95, %v1690
    %vm1692 = vmand %vm1685, %vm1691
    %vm1693 = vmand %vm1686, %vm1691
    %vm1694 = vmand %vm1687, %vm1691
    %vm1695 = vmand %vm1688, %vm1691
    %s1696 = sld [smem:[#allocation7 + $0x45]]
    %v1697 = vstv %s1696
    %v1698 = vsel %vm1692, %v1697, 0.0
    %v1699 = vsel %vm1693, %v1697, 0.0
    %v1700 = vsel %vm1694, %v1697, 0.0
    %v1701 = vsel %vm1695, %v1697, 0.0
    %v1702 = vadd.f32 %v1679, %v1698
    %v1703 = vadd.f32 %v1680, %v1699
    %v1704 = vadd.f32 %v1681, %v1700
    %v1705 = vadd.f32 %v1682, %v1701
    %s1706 = sld [smem:[#allocation2 + $0x46]]
    %v1707 = vstv %s1706
    %vm1708 = vcmp.eq.s32.totalorder %v90, %v1707
    %vm1709 = vcmp.eq.s32.totalorder %v91, %v1707
    %vm1710 = vcmp.eq.s32.totalorder %v92, %v1707
    %vm1711 = vcmp.eq.s32.totalorder %v93, %v1707
    %s1712 = sld [smem:[#allocation5 + $0x46]]
    %v1713 = vstv %s1712
    %vm1714 = vcmp.eq.s32.totalorder %v95, %v1713
    %vm1715 = vmand %vm1708, %vm1714
    %vm1716 = vmand %vm1709, %vm1714
    %vm1717 = vmand %vm1710, %vm1714
    %vm1718 = vmand %vm1711, %vm1714
    %s1719 = sld [smem:[#allocation7 + $0x46]]
    %v1720 = vstv %s1719
    %v1721 = vsel %vm1715, %v1720, 0.0
    %v1722 = vsel %vm1716, %v1720, 0.0
    %v1723 = vsel %vm1717, %v1720, 0.0
    %v1724 = vsel %vm1718, %v1720, 0.0
    %v1725 = vadd.f32 %v1702, %v1721
    %v1726 = vadd.f32 %v1703, %v1722
    %v1727 = vadd.f32 %v1704, %v1723
    %v1728 = vadd.f32 %v1705, %v1724
    %s1729 = sld [smem:[#allocation2 + $0x47]]
    %v1730 = vstv %s1729
    %vm1731 = vcmp.eq.s32.totalorder %v90, %v1730
    %vm1732 = vcmp.eq.s32.totalorder %v91, %v1730
    %vm1733 = vcmp.eq.s32.totalorder %v92, %v1730
    %vm1734 = vcmp.eq.s32.totalorder %v93, %v1730
    %s1735 = sld [smem:[#allocation5 + $0x47]]
    %v1736 = vstv %s1735
    %vm1737 = vcmp.eq.s32.totalorder %v95, %v1736
    %vm1738 = vmand %vm1731, %vm1737
    %vm1739 = vmand %vm1732, %vm1737
    %vm1740 = vmand %vm1733, %vm1737
    %vm1741 = vmand %vm1734, %vm1737
    %s1742 = sld [smem:[#allocation7 + $0x47]]
    %v1743 = vstv %s1742
    %v1744 = vsel %vm1738, %v1743, 0.0
    %v1745 = vsel %vm1739, %v1743, 0.0
    %v1746 = vsel %vm1740, %v1743, 0.0
    %v1747 = vsel %vm1741, %v1743, 0.0
    %v1748 = vadd.f32 %v1725, %v1744
    %v1749 = vadd.f32 %v1726, %v1745
    %v1750 = vadd.f32 %v1727, %v1746
    %v1751 = vadd.f32 %v1728, %v1747
    %s1752 = sld [smem:[#allocation8]]
    %v1753 = vstv %s1752
    %vm1754 = vcmp.eq.s32.totalorder %v90, %v1753
    %vm1755 = vcmp.eq.s32.totalorder %v91, %v1753
    %vm1756 = vcmp.eq.s32.totalorder %v92, %v1753
    %vm1757 = vcmp.eq.s32.totalorder %v93, %v1753
    %s1758 = sld [smem:[#allocation10]]
    %v1759 = vstv %s1758
    %vm1760 = vcmp.eq.s32.totalorder %v95, %v1759
    %vm1761 = vmand %vm1754, %vm1760
    %vm1762 = vmand %vm1755, %vm1760
    %vm1763 = vmand %vm1756, %vm1760
    %vm1764 = vmand %vm1757, %vm1760
    %v1765 = vsel %vm1761, -1.0, 0.0
    %v1766 = vsel %vm1762, -1.0, 0.0
    %v1767 = vsel %vm1763, -1.0, 0.0
    %v1768 = vsel %vm1764, -1.0, 0.0
    %v1769 = vadd.f32 %v1765, 0.0
    %v1770 = vadd.f32 %v1766, 0.0
    %v1771 = vadd.f32 %v1767, 0.0
    %v1772 = vadd.f32 %v1768, 0.0
    %s1773 = sld [smem:[#allocation8 + $0x1]]
    %v1774 = vstv %s1773
    %vm1775 = vcmp.eq.s32.totalorder %v90, %v1774
    %vm1776 = vcmp.eq.s32.totalorder %v91, %v1774
    %vm1777 = vcmp.eq.s32.totalorder %v92, %v1774
    %vm1778 = vcmp.eq.s32.totalorder %v93, %v1774
    %s1779 = sld [smem:[#allocation10 + $0x1]]
    %v1780 = vstv %s1779
    %vm1781 = vcmp.eq.s32.totalorder %v95, %v1780
    %vm1782 = vmand %vm1775, %vm1781
    %vm1783 = vmand %vm1776, %vm1781
    %vm1784 = vmand %vm1777, %vm1781
    %vm1785 = vmand %vm1778, %vm1781
    %v1786 = vsel %vm1782, -1.0, 0.0
    %v1787 = vsel %vm1783, -1.0, 0.0
    %v1788 = vsel %vm1784, -1.0, 0.0
    %v1789 = vsel %vm1785, -1.0, 0.0
    %v1790 = vadd.f32 %v1769, %v1786
    %v1791 = vadd.f32 %v1770, %v1787
    %v1792 = vadd.f32 %v1771, %v1788
    %v1793 = vadd.f32 %v1772, %v1789
    %s1794 = sld [smem:[#allocation8 + $0x2]]
    %v1795 = vstv %s1794
    %vm1796 = vcmp.eq.s32.totalorder %v90, %v1795
    %vm1797 = vcmp.eq.s32.totalorder %v91, %v1795
    %vm1798 = vcmp.eq.s32.totalorder %v92, %v1795
    %vm1799 = vcmp.eq.s32.totalorder %v93, %v1795
    %s1800 = sld [smem:[#allocation10 + $0x2]]
    %v1801 = vstv %s1800
    %vm1802 = vcmp.eq.s32.totalorder %v95, %v1801
    %vm1803 = vmand %vm1796, %vm1802
    %vm1804 = vmand %vm1797, %vm1802
    %vm1805 = vmand %vm1798, %vm1802
    %vm1806 = vmand %vm1799, %vm1802
    %v1807 = vsel %vm1803, -1.0, 0.0
    %v1808 = vsel %vm1804, -1.0, 0.0
    %v1809 = vsel %vm1805, -1.0, 0.0
    %v1810 = vsel %vm1806, -1.0, 0.0
    %v1811 = vadd.f32 %v1790, %v1807
    %v1812 = vadd.f32 %v1791, %v1808
    %v1813 = vadd.f32 %v1792, %v1809
    %v1814 = vadd.f32 %v1793, %v1810
    %s1815 = sld [smem:[#allocation8 + $0x3]]
    %v1816 = vstv %s1815
    %vm1817 = vcmp.eq.s32.totalorder %v90, %v1816
    %vm1818 = vcmp.eq.s32.totalorder %v91, %v1816
    %vm1819 = vcmp.eq.s32.totalorder %v92, %v1816
    %vm1820 = vcmp.eq.s32.totalorder %v93, %v1816
    %s1821 = sld [smem:[#allocation10 + $0x3]]
    %v1822 = vstv %s1821
    %vm1823 = vcmp.eq.s32.totalorder %v95, %v1822
    %vm1824 = vmand %vm1817, %vm1823
    %vm1825 = vmand %vm1818, %vm1823
    %vm1826 = vmand %vm1819, %vm1823
    %vm1827 = vmand %vm1820, %vm1823
    %v1828 = vsel %vm1824, -1.0, 0.0
    %v1829 = vsel %vm1825, -1.0, 0.0
    %v1830 = vsel %vm1826, -1.0, 0.0
    %v1831 = vsel %vm1827, -1.0, 0.0
    %v1832 = vadd.f32 %v1811, %v1828
    %v1833 = vadd.f32 %v1812, %v1829
    %v1834 = vadd.f32 %v1813, %v1830
    %v1835 = vadd.f32 %v1814, %v1831
    %s1836 = sld [smem:[#allocation8 + $0x4]]
    %v1837 = vstv %s1836
    %vm1838 = vcmp.eq.s32.totalorder %v90, %v1837
    %vm1839 = vcmp.eq.s32.totalorder %v91, %v1837
    %vm1840 = vcmp.eq.s32.totalorder %v92, %v1837
    %vm1841 = vcmp.eq.s32.totalorder %v93, %v1837
    %s1842 = sld [smem:[#allocation10 + $0x4]]
    %v1843 = vstv %s1842
    %vm1844 = vcmp.eq.s32.totalorder %v95, %v1843
    %vm1845 = vmand %vm1838, %vm1844
    %vm1846 = vmand %vm1839, %vm1844
    %vm1847 = vmand %vm1840, %vm1844
    %vm1848 = vmand %vm1841, %vm1844
    %v1849 = vsel %vm1845, -1.0, 0.0
    %v1850 = vsel %vm1846, -1.0, 0.0
    %v1851 = vsel %vm1847, -1.0, 0.0
    %v1852 = vsel %vm1848, -1.0, 0.0
    %v1853 = vadd.f32 %v1832, %v1849
    %v1854 = vadd.f32 %v1833, %v1850
    %v1855 = vadd.f32 %v1834, %v1851
    %v1856 = vadd.f32 %v1835, %v1852
    %s1857 = sld [smem:[#allocation8 + $0x5]]
    %v1858 = vstv %s1857
    %vm1859 = vcmp.eq.s32.totalorder %v90, %v1858
    %vm1860 = vcmp.eq.s32.totalorder %v91, %v1858
    %vm1861 = vcmp.eq.s32.totalorder %v92, %v1858
    %vm1862 = vcmp.eq.s32.totalorder %v93, %v1858
    %s1863 = sld [smem:[#allocation10 + $0x5]]
    %v1864 = vstv %s1863
    %vm1865 = vcmp.eq.s32.totalorder %v95, %v1864
    %vm1866 = vmand %vm1859, %vm1865
    %vm1867 = vmand %vm1860, %vm1865
    %vm1868 = vmand %vm1861, %vm1865
    %vm1869 = vmand %vm1862, %vm1865
    %v1870 = vsel %vm1866, -1.0, 0.0
    %v1871 = vsel %vm1867, -1.0, 0.0
    %v1872 = vsel %vm1868, -1.0, 0.0
    %v1873 = vsel %vm1869, -1.0, 0.0
    %v1874 = vadd.f32 %v1853, %v1870
    %v1875 = vadd.f32 %v1854, %v1871
    %v1876 = vadd.f32 %v1855, %v1872
    %v1877 = vadd.f32 %v1856, %v1873
    %s1878 = sld [smem:[#allocation8 + $0x6]]
    %v1879 = vstv %s1878
    %vm1880 = vcmp.eq.s32.totalorder %v90, %v1879
    %vm1881 = vcmp.eq.s32.totalorder %v91, %v1879
    %vm1882 = vcmp.eq.s32.totalorder %v92, %v1879
    %vm1883 = vcmp.eq.s32.totalorder %v93, %v1879
    %s1884 = sld [smem:[#allocation10 + $0x6]]
    %v1885 = vstv %s1884
    %vm1886 = vcmp.eq.s32.totalorder %v95, %v1885
    %vm1887 = vmand %vm1880, %vm1886
    %vm1888 = vmand %vm1881, %vm1886
    %vm1889 = vmand %vm1882, %vm1886
    %vm1890 = vmand %vm1883, %vm1886
    %v1891 = vsel %vm1887, -1.0, 0.0
    %v1892 = vsel %vm1888, -1.0, 0.0
    %v1893 = vsel %vm1889, -1.0, 0.0
    %v1894 = vsel %vm1890, -1.0, 0.0
    %v1895 = vadd.f32 %v1874, %v1891
    %v1896 = vadd.f32 %v1875, %v1892
    %v1897 = vadd.f32 %v1876, %v1893
    %v1898 = vadd.f32 %v1877, %v1894
    %s1899 = sld [smem:[#allocation8 + $0x7]]
    %v1900 = vstv %s1899
    %vm1901 = vcmp.eq.s32.totalorder %v90, %v1900
    %vm1902 = vcmp.eq.s32.totalorder %v91, %v1900
    %vm1903 = vcmp.eq.s32.totalorder %v92, %v1900
    %vm1904 = vcmp.eq.s32.totalorder %v93, %v1900
    %s1905 = sld [smem:[#allocation10 + $0x7]]
    %v1906 = vstv %s1905
    %vm1907 = vcmp.eq.s32.totalorder %v95, %v1906
    %vm1908 = vmand %vm1901, %vm1907
    %vm1909 = vmand %vm1902, %vm1907
    %vm1910 = vmand %vm1903, %vm1907
    %vm1911 = vmand %vm1904, %vm1907
    %v1912 = vsel %vm1908, -1.0, 0.0
    %v1913 = vsel %vm1909, -1.0, 0.0
    %v1914 = vsel %vm1910, -1.0, 0.0
    %v1915 = vsel %vm1911, -1.0, 0.0
    %v1916 = vadd.f32 %v1895, %v1912
    %v1917 = vadd.f32 %v1896, %v1913
    %v1918 = vadd.f32 %v1897, %v1914
    %v1919 = vadd.f32 %v1898, %v1915
    %s1920 = sld [smem:[#allocation8 + $0x8]]
    %v1921 = vstv %s1920
    %vm1922 = vcmp.eq.s32.totalorder %v90, %v1921
    %vm1923 = vcmp.eq.s32.totalorder %v91, %v1921
    %vm1924 = vcmp.eq.s32.totalorder %v92, %v1921
    %vm1925 = vcmp.eq.s32.totalorder %v93, %v1921
    %s1926 = sld [smem:[#allocation10 + $0x8]]
    %v1927 = vstv %s1926
    %vm1928 = vcmp.eq.s32.totalorder %v95, %v1927
    %vm1929 = vmand %vm1922, %vm1928
    %vm1930 = vmand %vm1923, %vm1928
    %vm1931 = vmand %vm1924, %vm1928
    %vm1932 = vmand %vm1925, %vm1928
    %v1933 = vsel %vm1929, -1.0, 0.0
    %v1934 = vsel %vm1930, -1.0, 0.0
    %v1935 = vsel %vm1931, -1.0, 0.0
    %v1936 = vsel %vm1932, -1.0, 0.0
    %v1937 = vadd.f32 %v1916, %v1933
    %v1938 = vadd.f32 %v1917, %v1934
    %v1939 = vadd.f32 %v1918, %v1935
    %v1940 = vadd.f32 %v1919, %v1936
    %s1941 = sld [smem:[#allocation8 + $0x9]]
    %v1942 = vstv %s1941
    %vm1943 = vcmp.eq.s32.totalorder %v90, %v1942
    %vm1944 = vcmp.eq.s32.totalorder %v91, %v1942
    %vm1945 = vcmp.eq.s32.totalorder %v92, %v1942
    %vm1946 = vcmp.eq.s32.totalorder %v93, %v1942
    %s1947 = sld [smem:[#allocation10 + $0x9]]
    %v1948 = vstv %s1947
    %vm1949 = vcmp.eq.s32.totalorder %v95, %v1948
    %vm1950 = vmand %vm1943, %vm1949
    %vm1951 = vmand %vm1944, %vm1949
    %vm1952 = vmand %vm1945, %vm1949
    %vm1953 = vmand %vm1946, %vm1949
    %v1954 = vsel %vm1950, -1.0, 0.0
    %v1955 = vsel %vm1951, -1.0, 0.0
    %v1956 = vsel %vm1952, -1.0, 0.0
    %v1957 = vsel %vm1953, -1.0, 0.0
    %v1958 = vadd.f32 %v1937, %v1954
    %v1959 = vadd.f32 %v1938, %v1955
    %v1960 = vadd.f32 %v1939, %v1956
    %v1961 = vadd.f32 %v1940, %v1957
    %s1962 = sld [smem:[#allocation8 + $0xa]]
    %v1963 = vstv %s1962
    %vm1964 = vcmp.eq.s32.totalorder %v90, %v1963
    %vm1965 = vcmp.eq.s32.totalorder %v91, %v1963
    %vm1966 = vcmp.eq.s32.totalorder %v92, %v1963
    %vm1967 = vcmp.eq.s32.totalorder %v93, %v1963
    %s1968 = sld [smem:[#allocation10 + $0xa]]
    %v1969 = vstv %s1968
    %vm1970 = vcmp.eq.s32.totalorder %v95, %v1969
    %vm1971 = vmand %vm1964, %vm1970
    %vm1972 = vmand %vm1965, %vm1970
    %vm1973 = vmand %vm1966, %vm1970
    %vm1974 = vmand %vm1967, %vm1970
    %v1975 = vsel %vm1971, -1.0, 0.0
    %v1976 = vsel %vm1972, -1.0, 0.0
    %v1977 = vsel %vm1973, -1.0, 0.0
    %v1978 = vsel %vm1974, -1.0, 0.0
    %v1979 = vadd.f32 %v1958, %v1975
    %v1980 = vadd.f32 %v1959, %v1976
    %v1981 = vadd.f32 %v1960, %v1977
    %v1982 = vadd.f32 %v1961, %v1978
    %s1983 = sld [smem:[#allocation8 + $0xb]]
    %v1984 = vstv %s1983
    %vm1985 = vcmp.eq.s32.totalorder %v90, %v1984
    %vm1986 = vcmp.eq.s32.totalorder %v91, %v1984
    %vm1987 = vcmp.eq.s32.totalorder %v92, %v1984
    %vm1988 = vcmp.eq.s32.totalorder %v93, %v1984
    %s1989 = sld [smem:[#allocation10 + $0xb]]
    %v1990 = vstv %s1989
    %vm1991 = vcmp.eq.s32.totalorder %v95, %v1990
    %vm1992 = vmand %vm1985, %vm1991
    %vm1993 = vmand %vm1986, %vm1991
    %vm1994 = vmand %vm1987, %vm1991
    %vm1995 = vmand %vm1988, %vm1991
    %v1996 = vsel %vm1992, -1.0, 0.0
    %v1997 = vsel %vm1993, -1.0, 0.0
    %v1998 = vsel %vm1994, -1.0, 0.0
    %v1999 = vsel %vm1995, -1.0, 0.0
    %v2000 = vadd.f32 %v1979, %v1996
    %v2001 = vadd.f32 %v1980, %v1997
    %v2002 = vadd.f32 %v1981, %v1998
    %v2003 = vadd.f32 %v1982, %v1999
    %v2004 = vld [vmem:[%s2] sm:$0xff]
    %v2005 = vld [vmem:[%s2 + $0x8] sm:$0xff]
    %v2006 = vld [vmem:[%s2 + $0x10] sm:$0xff]
    %v2007 = vld [vmem:[%s2 + $0x18] sm:$0xff]
    %vm2008 = vcmp.eq.f32.partialorder %v2004, 1.0
    %vm2009 = vcmp.eq.f32.partialorder %v2005, 1.0
    %vm2010 = vcmp.eq.f32.partialorder %v2006, 1.0
    %vm2011 = vcmp.eq.f32.partialorder %v2007, 1.0
    %v2012 = vld [vmem:[%s1] sm:$0xff]
    %v2013 = vld [vmem:[%s1 + $0x8] sm:$0xff]
    %v2014 = vld [vmem:[%s1 + $0x10] sm:$0xff]
    %v2015 = vld [vmem:[%s1 + $0x18] sm:$0xff]
    %vm2016 = vcmp.eq.f32.partialorder %v2012, 1.0
    %vm2017 = vcmp.eq.f32.partialorder %v2013, 1.0
    %vm2018 = vcmp.eq.f32.partialorder %v2014, 1.0
    %vm2019 = vcmp.eq.f32.partialorder %v2015, 1.0
    %vm2020 = vmand %vm2008, %vm2016
    %vm2021 = vmand %vm2009, %vm2017
    %vm2022 = vmand %vm2010, %vm2018
    %vm2023 = vmand %vm2011, %vm2019
    %v2024 = vsel %vm2020, %v2000, 0.0
    %v2025 = vsel %vm2021, %v2001, 0.0
    %v2026 = vsel %vm2022, %v2002, 0.0
    %v2027 = vsel %vm2023, %v2003, 0.0
    %v2028 = vadd.f32 %v1748, %v2024
    %v2029 = vadd.f32 %v1749, %v2025
    %v2030 = vadd.f32 %v1750, %v2026
    %v2031 = vadd.f32 %v1751, %v2027
    %v2032 = vld [vmem:[%s0] sm:$0xff]
    %v2033 = vld [vmem:[%s0 + $0x8] sm:$0xff]
    %v2034 = vld [vmem:[%s0 + $0x10] sm:$0xff]
    %v2035 = vld [vmem:[%s0 + $0x18] sm:$0xff]
    %v2036 = vmul.f32 %v2032, %v2028
    %v2037 = vmul.f32 %v2033, %v2029
    %v2038 = vmul.f32 %v2034, %v2030
    %v2039 = vmul.f32 %v2035, %v2031
    %v2040 = vadd.f32 %v2036, %v2037
    %v2041 = vadd.f32 %v2040, %v2038
    %v2042 = vadd.f32 %v2041, %v2039
    %2043 = vadd.xlane.f32.xlu0 %v2042
    %v2044 = vpop.xlane.xlu0 %2043
    %v2045 = vrot.slane %v2044, 4
    %v2046 = vadd.f32 %v2044, %v2045
    %v2047 = vrot.slane %v2046, 2
    %v2048 = vadd.f32 %v2046, %v2047
    %v2049 = vrot.slane %v2048, 1
    %v2050 = vadd.f32 %v2048, %v2049
    %s2051 = vtos %v2050
    %s2052 = sadd.f32 %s2051, 0.0
    %s2053 = scalar_lea.smem [#allocation11], 0
    %2054 = sst [smem:[%s2053]] %s2052
    // Predicated region
    $region54: #{loss_forward.1} parent=1 // pred_check
      _
    $region55: #{loss_forward.1} parent=1 // pred_check_branch
      %2056 = sbr.rel (0) target = $region57
    $region56: #{loss_forward.1} parent=1 // pred_region
      %s2058 = ssub.s32 16, 16
      %2059 = vsyncadd [#allocation3], %s2058
      %2062 = dma.smem_to_hbm [#allocation11], 16, %s8, [#allocation3]
    $region57: #{loss_forward.1} parent=1 // pred_fallthru
      _
    // Predicated region
    $region58: #{loss_forward.1} parent=1 // pred_check
      _
    $region59: #{loss_forward.1} parent=1 // pred_check_branch
      %2064 = sbr.rel (0) target = $region61
    $region60: #{loss_forward.1} parent=1 // pred_region
      %2065 = dma.done [#allocation3], 16
    $region61: #{loss_forward.1} parent=1 // pred_fallthru
      _
    %2066 = sfence
    %2067 = vsyncpa [#allocation3], 1
    %2068 = vsyncpa [#allocation4], 1
    %2069 = vsyncpa [#allocation6], 1
    %2070 = vsyncpa [#allocation9], 1

</llo_original>
